<compile_context>
chip_gen: v7x
topology: tpu7x:2x2x1
jax: 0.10.0
libtpu: 0.0.40
codegen_flags: <defaults>
</compile_context>

<pallas_src>
import functools

import jax
import jax.numpy as jnp
from jax.experimental import pallas as pl
from jax.experimental.pallas import tpu as pltpu


# --------------------------------------------------------------------------
# In-kernel helpers (traced inside the Pallas kernel)
# --------------------------------------------------------------------------

def _erf_poly(x):
    # Abramowitz & Stegun 7.1.26 polynomial erf, |error| <= 1.5e-7 (matches the exact
    # erf-based PyTorch nn.GELU to f32 rounding noise).  The divide rides the EUP slot.
    a1, a2, a3, a4, a5 = (0.254829592, -0.284496736, 1.421413741,
                          -1.453152027, 1.061405429)
    p = 0.3275911
    sign = jnp.where(x >= 0.0, 1.0, -1.0)
    ax = jnp.abs(x)
    t = pl.reciprocal(1.0 + p * ax)                     # EUP, exact
    poly = ((((a5 * t + a4) * t + a3) * t + a2) * t + a1) * t
    return sign * (1.0 - poly * jnp.exp(-ax * ax))


def _gelu_erf(x):
    return 0.5 * x * (1.0 + _erf_poly(x * 0.7071067811865476))


# --------------------------------------------------------------------------
# The fused encoder-layer kernel.  grid = (batch, key_tile); key axis last.
# --------------------------------------------------------------------------

def _encoder_kernel(embq_ref, embk_ref, mask_ref, ids_ref, tableT_ref,
                    eln_g_ref, eln_b_ref,
                    wq_ref, bq_ref, wkv_ref, bkv_ref, wo_ref, bo_ref,
                    aln_g_ref, aln_b_ref,
                    w1_ref, b1_ref, w2_ref, b2_ref,
                    fln_g_ref, fln_b_ref,
                    o_ref,
                    m_sc, l_sc, acc_sc,
                    *, S, TK, H, F, nh, dh, R, scale, eps):
    kt = pl.program_id(1)

    def layer_norm(xv, g, b):
        mu = jnp.mean(xv, axis=-1, keepdims=True)
        var = jnp.mean((xv - mu) ** 2, axis=-1, keepdims=True)
        return (xv - mu) * jax.lax.rsqrt(var + eps) * g + b

    def bdot(a, b):
        # bf16 operands, f32 accumulation on the MXU (LN/softmax/GELU stay f32).
        return jnp.dot(a.astype(jnp.bfloat16), b.astype(jnp.bfloat16),
                       preferred_element_type=jnp.float32)

    # ---- reset online-softmax state at the first key tile of each batch --------
    @pl.when(kt == 0)
    def _():
        m_sc[...] = jnp.full(m_sc.shape, -jnp.inf, jnp.float32)
        l_sc[...] = jnp.zeros(l_sc.shape, jnp.float32)
        acc_sc[...] = jnp.zeros(acc_sc.shape, jnp.float32)

    # ---- query-side activations (full S; cheap relative to the scores) ---------
    h0_q = layer_norm(embq_ref[0], eln_g_ref[...], eln_b_ref[...])       # (S, H)
    q = bdot(h0_q, wq_ref[...]) + bq_ref[...]                            # (S, H)

    # ---- key-side activations for THIS key tile only ---------------------------
    h0_k = layer_norm(embk_ref[0], eln_g_ref[...], eln_b_ref[...])       # (TK, H)
    kv = bdot(h0_k, wkv_ref[...]) + bkv_ref[...]                         # (TK, 2H)

    # additive attention mask, exactly the PyTorch line (1 - mask) * -10000
    mask_add = (1.0 - mask_ref[0]) * -10000.0                            # (1, TK)

    # ---- multi-hot relation selector for this (S, TK) tile ---------------------
    # lane dim padded to R = 128; built ONCE per step and shared by all heads.
    r_iota = jax.lax.broadcasted_iota(jnp.int32, (S, TK, R), 2)
    onehot = jnp.zeros((S, TK, R), jnp.float32)
    for kind in range(4):                     # x / y / dist / angle bucket kinds
        onehot = onehot + (ids_ref[0, kind][:, :, None] == r_iota).astype(jnp.float32)

    # ---- relation-aware attention with online softmax --------------------------
    for h in range(nh):        # static unroll: nh is tiny here (TODO fori_loop at prod nh)
        lo, hi = h * dh, (h + 1) * dh
        q_h = q[:, lo:hi]                                                # (S, dh)
        k_h = kv[:, lo:hi]                                               # (TK, dh)
        v_h = kv[:, H + lo:H + hi]                                       # (TK, dh)

        content = bdot(q_h, k_h.T)                                       # (S, TK)
        # relation reformulated: project q onto the relation table first; the
        # (S, S, H) relative-embedding tensor is never materialized anywhere.
        qt_h = bdot(q_h, tableT_ref[lo:hi, :])                           # (S, R) lane-dense
        relation = jnp.sum(onehot * qt_h[:, None, :], axis=-1)           # (S, TK)

        s = (content + relation) * scale + mask_add                      # (S, TK)

        m_prev = m_sc[:, h:h + 1]                                        # (S, 1)
        m_new = jnp.maximum(m_prev, jnp.max(s, axis=-1, keepdims=True))
        alpha = jnp.exp(m_prev - m_new)
        p = jnp.exp(s - m_new)                                           # (S, TK)
        l_sc[:, h:h + 1] = alpha * l_sc[:, h:h + 1] + jnp.sum(p, axis=-1, keepdims=True)
        acc_sc[:, lo:hi] = alpha * acc_sc[:, lo:hi] + bdot(p, v_h)       # (S, dh)
        m_sc[:, h:h + 1] = m_new

    # ---- finalize on the last key tile ------------------------------------------
    @pl.when(kt == pl.num_programs(1) - 1)
    def _():
        inv_l = pl.reciprocal(l_sc[...], approx=True)                    # (S, nh) EUP
        ctx = jnp.concatenate(
            [acc_sc[:, h * dh:(h + 1) * dh] * inv_l[:, h:h + 1] for h in range(nh)],
            axis=-1)                                                     # (S, H)
        attn = bdot(ctx, wo_ref[...]) + bo_ref[...]                      # ONE full-K out-proj

        h1 = layer_norm(attn + h0_q, aln_g_ref[...], aln_b_ref[...])     # (S, H)
        ff = bdot(h1, w1_ref[...]) + b1_ref[...]                         # (S, F)
        ff = _gelu_erf(ff)
        ff = bdot(ff, w2_ref[...]) + b2_ref[...]                         # (S, H)
        o_ref[0] = layer_norm(ff + h1, fln_g_ref[...], fln_b_ref[...])


# --------------------------------------------------------------------------
# Parameters + forward (only tiny table gathers / weight packing in JAX glue)
# --------------------------------------------------------------------------

class Config:
    vocab_size = 64
    hidden_size = 32
    pad_token_id = 0
    num_heads = 2
    type_vocab_size = 2
    n_spatial_buckets = 16
    ffn_size = 64


def init_params(key, cfg):
    H, F = cfg.hidden_size, cfg.ffn_size
    keys = jax.random.split(key, 16)
    n = lambda k, shape: (0.02 * jax.random.normal(k, shape)).astype(jnp.float32)
    return {
        "word_emb":  n(keys[0], (cfg.vocab_size, H)),
        "tt_emb":    n(keys[1], (cfg.type_vocab_size, H)),
        "x_emb":     n(keys[2], (cfg.n_spatial_buckets, H)),
        "y_emb":     n(keys[3], (cfg.n_spatial_buckets, H)),
        "dist_emb":  n(keys[4], (cfg.n_spatial_buckets, H)),
        "angle_emb": n(keys[5], (cfg.n_spatial_buckets, H)),
        "emb_ln_g":  jnp.ones((H,), jnp.float32),
        "emb_ln_b":  jnp.zeros((H,), jnp.float32),
        "wq": n(keys[6], (H, H)),  "bq": jnp.zeros((H,), jnp.float32),
        "wk": n(keys[7], (H, H)),  "bk": jnp.zeros((H,), jnp.float32),
        "wv": n(keys[8], (H, H)),  "bv": jnp.zeros((H,), jnp.float32),
        "wo": n(keys[9], (H, H)),  "bo": jnp.zeros((H,), jnp.float32),
        "attn_ln_g": jnp.ones((H,), jnp.float32),
        "attn_ln_b": jnp.zeros((H,), jnp.float32),
        "w1": n(keys[10], (H, F)), "b1": jnp.zeros((F,), jnp.float32),
        "w2": n(keys[11], (F, H)), "b2": jnp.zeros((H,), jnp.float32),
        "ffn_ln_g": jnp.ones((H,), jnp.float32),
        "ffn_ln_b": jnp.zeros((H,), jnp.float32),
    }


def spatial_text_encoder_forward(params, cfg, text_tok_ids, x, y, dist, angle,
                                 attention_mask=None, token_type_ids=None,
                                 key_tile=None):
    B, S = text_tok_ids.shape
    H, F, nh = cfg.hidden_size, cfg.ffn_size, cfg.num_heads
    dh = H // nh
    NB = cfg.n_spatial_buckets
    n_rel = 4 * NB
    R = max(128, ((n_rel + 127) // 128) * 128)      # bucket axis padded to lane width

    # key tile: full S at toy shapes; <=512 (multiple of 128) at production S.
    if key_tile is None:
        key_tile = S if S <= 512 else 512
    assert S % key_tile == 0
    n_kt = S // key_tile

    if attention_mask is None:
        attention_mask = jnp.ones((B, S), jnp.float32)
    if token_type_ids is None:
        token_type_ids = jnp.zeros((B, S), jnp.int32)

    # ---- tiny (B,S,H) token / token-type gathers kept as XLA glue ---------------
    embeds = (params["word_emb"][text_tok_ids]
              + params["tt_emb"][token_type_ids]).astype(jnp.float32)    # (B, S, H)

    # ---- relative-spatial bucket ids, offset into ONE concatenated table --------
    # (B, 4, S, S) so the BlockSpec tiles them per key tile; the (B,S,S,H) relative
    # embedding tensor is never materialized anywhere.
    rel_ids = jnp.stack([x, y + NB, dist + 2 * NB, angle + 3 * NB],
                        axis=1).astype(jnp.int32)                        # (B, 4, S, S)
    rel_table = jnp.concatenate([params["x_emb"], params["y_emb"],
                                 params["dist_emb"], params["angle_emb"]],
                                axis=0).astype(jnp.float32)              # (n_rel, H)
    rel_table_t = jnp.pad(rel_table, ((0, R - n_rel), (0, 0))).T         # (H, R) padded

    # fused K/V weights (Q is projected from the full-S query block separately)
    wkv = jnp.concatenate([params["wk"], params["wv"]], axis=1)          # (H, 2H)
    bkv = jnp.concatenate([params["bk"], params["bv"]], axis=0).reshape(1, 2 * H)

    mask3 = attention_mask.astype(jnp.float32).reshape(B, 1, S)

    kernel = functools.partial(_encoder_kernel, S=S, TK=key_tile, H=H, F=F,
                               nh=nh, dh=dh, R=R,
                               scale=1.0 / float(dh) ** 0.5, eps=1e-12)

    cw = lambda b, kt: (0, 0)      # weight / table blocks: resident across the grid

    out = pl.pallas_call(
        kernel,
        out_shape=jax.ShapeDtypeStruct((B, S, H), jnp.float32),
        grid=(B, n_kt),
        in_specs=[
            pl.BlockSpec((1, S, H), lambda b, kt: (b, 0, 0)),            # embeds (query side)
            pl.BlockSpec((1, key_tile, H), lambda b, kt: (b, kt, 0)),    # embeds (key tile)
            pl.BlockSpec((1, 1, key_tile), lambda b, kt: (b, 0, kt)),    # raw mask (key tile)
            pl.BlockSpec((1, 4, S, key_tile), lambda b, kt: (b, 0, 0, kt)),  # rel bucket ids
            pl.BlockSpec((H, R), cw),                                    # rel table (padded, T)
            pl.BlockSpec((1, H), cw), pl.BlockSpec((1, H), cw),          # emb LN g/b
            pl.BlockSpec((H, H), cw), pl.BlockSpec((1, H), cw),          # wq, bq
            pl.BlockSpec((H, 2 * H), cw), pl.BlockSpec((1, 2 * H), cw),  # wkv, bkv
            pl.BlockSpec((H, H), cw), pl.BlockSpec((1, H), cw),          # wo, bo
            pl.BlockSpec((1, H), cw), pl.BlockSpec((1, H), cw),          # attn LN g/b
            pl.BlockSpec((H, F), cw), pl.BlockSpec((1, F), cw),          # w1, b1
            pl.BlockSpec((F, H), cw), pl.BlockSpec((1, H), cw),          # w2, b2
            pl.BlockSpec((1, H), cw), pl.BlockSpec((1, H), cw),          # ffn LN g/b
        ],
        out_specs=pl.BlockSpec((1, S, H), lambda b, kt: (b, 0, 0)),
        scratch_shapes=[
            pltpu.VMEM((S, nh), jnp.float32),     # online-softmax running max
            pltpu.VMEM((S, nh), jnp.float32),     # online-softmax running denom
            pltpu.VMEM((S, H), jnp.float32),      # per-head context accumulator
        ],
        compiler_params=pltpu.CompilerParams(
            dimension_semantics=("parallel", "arbitrary"),
            # 48 MiB fits every generation (v7x physical VMEM is 64 MiB); raise
            # toward 64-100 MiB on v5e/v6e if larger key tiles are used.
            vmem_limit_bytes=48 * 1024 * 1024),
    )(embeds, embeds, mask3, rel_ids, rel_table_t,
      params["emb_ln_g"].reshape(1, H), params["emb_ln_b"].reshape(1, H),
      params["wq"], params["bq"].reshape(1, H),
      wkv, bkv,
      params["wo"], params["bo"].reshape(1, H),
      params["attn_ln_g"].reshape(1, H), params["attn_ln_b"].reshape(1, H),
      params["w1"], params["b1"].reshape(1, F),
      params["w2"], params["b2"].reshape(1, H),
      params["ffn_ln_g"].reshape(1, H), params["ffn_ln_b"].reshape(1, H))
    return out


# --------------------------------------------------------------------------
# Pure-JAX reference (f32, no tiling) for a tolerance check of the fused kernel
# --------------------------------------------------------------------------

def reference_forward(params, cfg, text_tok_ids, x, y, dist, angle,
                      attention_mask=None, token_type_ids=None):
    B, S = text_tok_ids.shape
    H, nh = cfg.hidden_size, cfg.num_heads
    dh = H // nh
    if attention_mask is None:
        attention_mask = jnp.ones((B, S), jnp.float32)
    if token_type_ids is None:
        token_type_ids = jnp.zeros((B, S), jnp.int32)

    def ln(xv, g, b):
        mu = jnp.mean(xv, axis=-1, keepdims=True)
        var = jnp.mean((xv - mu) ** 2, axis=-1, keepdims=True)
        return (xv - mu) / jnp.sqrt(var + 1e-12) * g + b

    emb = params["word_emb"][text_tok_ids] + params["tt_emb"][token_type_ids]
    h0 = ln(emb, params["emb_ln_g"], params["emb_ln_b"])                 # (B,S,H)
    rel = (params["x_emb"][x] + params["y_emb"][y]
           + params["dist_emb"][dist] + params["angle_emb"][angle])      # (B,S,S,H)

    q = h0 @ params["wq"] + params["bq"]
    k = h0 @ params["wk"] + params["bk"]
    v = h0 @ params["wv"] + params["bv"]
    mask_add = (1.0 - attention_mask)[:, None, :] * -10000.0             # (B,1,S)
    scale = 1.0 / float(dh) ** 0.5

    attn = jnp.zeros((B, S, H), jnp.float32)
    for h in range(nh):
        lo, hi = h * dh, (h + 1) * dh
        qh, kh, vh = q[..., lo:hi], k[..., lo:hi], v[..., lo:hi]
        relh = rel[..., lo:hi]
        content = jnp.einsum('bqd,bkd->bqk', qh, kh)
        relation = jnp.einsum('bqkd,bqd->bqk', relh, qh)
        s = (content + relation) * scale + mask_add
        p = jax.nn.softmax(s, axis=-1)
        ctx = jnp.einsum('bqk,bkd->bqd', p, vh)
        attn = attn + ctx @ params["wo"][lo:hi, :]
    attn = attn + params["bo"]

    h1 = ln(attn + h0, params["attn_ln_g"], params["attn_ln_b"])
    ff = jax.nn.gelu(h1 @ params["w1"] + params["b1"], approximate=False)
    ff = ff @ params["w2"] + params["b2"]
    return ln(ff + h1, params["ffn_ln_g"], params["ffn_ln_b"])


# --------------------------------------------------------------------------

if __name__ == "__main__":
    cfg = Config()
    root = jax.random.PRNGKey(0)
    kp, kid, kx, ky, kd, ka = jax.random.split(root, 6)

    params = init_params(kp, cfg)

    B, S = 2, 8
    text_tok_ids = jax.random.randint(kid, (B, S), 1, cfg.vocab_size, dtype=jnp.int32)
    # pad the tail of the second sequence to exercise the attention mask
    text_tok_ids = text_tok_ids.at[1, 6:].set(cfg.pad_token_id)
    attention_mask = (text_tok_ids != cfg.pad_token_id).astype(jnp.float32)

    x     = jax.random.randint(kx, (B, S, S), 0, cfg.n_spatial_buckets, dtype=jnp.int32)
    y     = jax.random.randint(ky, (B, S, S), 0, cfg.n_spatial_buckets, dtype=jnp.int32)
    dist  = jax.random.randint(kd, (B, S, S), 0, cfg.n_spatial_buckets, dtype=jnp.int32)
    angle = jax.random.randint(ka, (B, S, S), 0, cfg.n_spatial_buckets, dtype=jnp.int32)

    out = spatial_text_encoder_forward(params, cfg, text_tok_ids, x, y, dist, angle,
                                       attention_mask=attention_mask)
    out = jax.block_until_ready(out)

    assert out.shape == (B, S, cfg.hidden_size), out.shape
    assert bool(jnp.all(jnp.isfinite(out))), "non-finite output"

    ref = reference_forward(params, cfg, text_tok_ids, x, y, dist, angle,
                            attention_mask=attention_mask)
    max_diff = float(jnp.max(jnp.abs(out - ref)))
    assert max_diff < 5e-2, f"kernel deviates from f32 reference by {max_diff}"

    print("KERNEL_OK")
</pallas_src>

<mosaic_0001>
module attributes {stable_mosaic.version = 11 : i64} {
  func.func @_encoder_kernel(%arg0: i32, %arg1: i32, %arg2: memref<1x8x32xf32, #tpu.memory_space<vmem>>, %arg3: memref<1x8x32xf32, #tpu.memory_space<vmem>>, %arg4: memref<1x1x8xf32, #tpu.memory_space<vmem>>, %arg5: memref<1x4x8x8xi32, #tpu.memory_space<vmem>>, %arg6: memref<32x128xf32, #tpu.memory_space<vmem>>, %arg7: memref<1x32xf32, #tpu.memory_space<vmem>>, %arg8: memref<1x32xf32, #tpu.memory_space<vmem>>, %arg9: memref<32x32xf32, #tpu.memory_space<vmem>>, %arg10: memref<1x32xf32, #tpu.memory_space<vmem>>, %arg11: memref<32x64xf32, #tpu.memory_space<vmem>>, %arg12: memref<1x64xf32, #tpu.memory_space<vmem>>, %arg13: memref<32x32xf32, #tpu.memory_space<vmem>>, %arg14: memref<1x32xf32, #tpu.memory_space<vmem>>, %arg15: memref<1x32xf32, #tpu.memory_space<vmem>>, %arg16: memref<1x32xf32, #tpu.memory_space<vmem>>, %arg17: memref<32x64xf32, #tpu.memory_space<vmem>>, %arg18: memref<1x64xf32, #tpu.memory_space<vmem>>, %arg19: memref<64x32xf32, #tpu.memory_space<vmem>>, %arg20: memref<1x32xf32, #tpu.memory_space<vmem>>, %arg21: memref<1x32xf32, #tpu.memory_space<vmem>>, %arg22: memref<1x32xf32, #tpu.memory_space<vmem>>, %arg23: memref<1x8x32xf32, #tpu.memory_space<vmem>>, %arg24: memref<8x2xf32, #tpu.memory_space<vmem>>, %arg25: memref<8x2xf32, #tpu.memory_space<vmem>>, %arg26: memref<8x32xf32, #tpu.memory_space<vmem>>) attributes {dimension_semantics = [#tpu.dimension_semantics<parallel>, #tpu.dimension_semantics<arbitrary>], iteration_bounds = array<i64: 2, 1>, scalar_prefetch = 0 : i64, scratch_operands = 3 : i64, tpu.core_type = #tpu.core_type<tc>, window_params = [{transform_indices = @transform_0, window_bounds = array<i64: 1, 8, 32>}, {transform_indices = @transform_1, window_bounds = array<i64: 1, 8, 32>}, {transform_indices = @transform_2, window_bounds = array<i64: 1, 1, 8>}, {transform_indices = @transform_3, window_bounds = array<i64: 1, 4, 8, 8>}, {pipeline_mode = #tpu.pipeline_mode<synchronous>, transform_indices = @transform_4, window_bounds = array<i64: 32, 128>}, {pipeline_mode = #tpu.pipeline_mode<synchronous>, transform_indices = @transform_5, window_bounds = array<i64: 1, 32>}, {pipeline_mode = #tpu.pipeline_mode<synchronous>, transform_indices = @transform_6, window_bounds = array<i64: 1, 32>}, {pipeline_mode = #tpu.pipeline_mode<synchronous>, transform_indices = @transform_7, window_bounds = array<i64: 32, 32>}, {pipeline_mode = #tpu.pipeline_mode<synchronous>, transform_indices = @transform_8, window_bounds = array<i64: 1, 32>}, {pipeline_mode = #tpu.pipeline_mode<synchronous>, transform_indices = @transform_9, window_bounds = array<i64: 32, 64>}, {pipeline_mode = #tpu.pipeline_mode<synchronous>, transform_indices = @transform_10, window_bounds = array<i64: 1, 64>}, {pipeline_mode = #tpu.pipeline_mode<synchronous>, transform_indices = @transform_11, window_bounds = array<i64: 32, 32>}, {pipeline_mode = #tpu.pipeline_mode<synchronous>, transform_indices = @transform_12, window_bounds = array<i64: 1, 32>}, {pipeline_mode = #tpu.pipeline_mode<synchronous>, transform_indices = @transform_13, window_bounds = array<i64: 1, 32>}, {pipeline_mode = #tpu.pipeline_mode<synchronous>, transform_indices = @transform_14, window_bounds = array<i64: 1, 32>}, {pipeline_mode = #tpu.pipeline_mode<synchronous>, transform_indices = @transform_15, window_bounds = array<i64: 32, 64>}, {pipeline_mode = #tpu.pipeline_mode<synchronous>, transform_indices = @transform_16, window_bounds = array<i64: 1, 64>}, {pipeline_mode = #tpu.pipeline_mode<synchronous>, transform_indices = @transform_17, window_bounds = array<i64: 64, 32>}, {pipeline_mode = #tpu.pipeline_mode<synchronous>, transform_indices = @transform_18, window_bounds = array<i64: 1, 32>}, {pipeline_mode = #tpu.pipeline_mode<synchronous>, transform_indices = @transform_19, window_bounds = array<i64: 1, 32>}, {pipeline_mode = #tpu.pipeline_mode<synchronous>, transform_indices = @transform_20, window_bounds = array<i64: 1, 32>}, {transform_indices = @transform_21, window_bounds = array<i64: 1, 8, 32>}]} {
    %c0_i32 = arith.constant 0 : i32
    %0 = arith.cmpi eq, %arg1, %c0_i32 : i32
    %1 = arith.extui %0 : i1 to i32
    %c0_i32_0 = arith.constant 0 : i32
    %2 = arith.cmpi ne, %1, %c0_i32_0 : i32
    scf.if %2 {
      %cst_95 = arith.constant 0xFF800000 : f32
      %200 = vector.broadcast %cst_95 : f32 to vector<8x2xf32>
      %c0_96 = arith.constant 0 : index
      %c0_97 = arith.constant 0 : index
      %201 = vector.load %arg24[%c0_96, %c0_97] : memref<8x2xf32, #tpu.memory_space<vmem>>, vector<8x2xf32>
      tpu.vector_store %arg24[%c0_96, %c0_97], %200 {strides = array<i32>} : memref<8x2xf32, #tpu.memory_space<vmem>>, vector<8x2xf32>,
      %cst_98 = arith.constant 0.000000e+00 : f32
      %202 = vector.broadcast %cst_98 : f32 to vector<8x2xf32>
      %c0_99 = arith.constant 0 : index
      %c0_100 = arith.constant 0 : index
      %203 = vector.load %arg25[%c0_99, %c0_100] : memref<8x2xf32, #tpu.memory_space<vmem>>, vector<8x2xf32>
      tpu.vector_store %arg25[%c0_99, %c0_100], %202 {strides = array<i32>} : memref<8x2xf32, #tpu.memory_space<vmem>>, vector<8x2xf32>,
      %cst_101 = arith.constant 0.000000e+00 : f32
      %204 = vector.broadcast %cst_101 : f32 to vector<8x32xf32>
      %c0_102 = arith.constant 0 : index
      %c0_103 = arith.constant 0 : index
      %205 = vector.load %arg26[%c0_102, %c0_103] : memref<8x32xf32, #tpu.memory_space<vmem>>, vector<8x32xf32>
      tpu.vector_store %arg26[%c0_102, %c0_103], %204 {strides = array<i32>} : memref<8x32xf32, #tpu.memory_space<vmem>>, vector<8x32xf32>,
    } else {
    }
    %c0 = arith.constant 0 : index
    %c0_1 = arith.constant 0 : index
    %c0_2 = arith.constant 0 : index
    %3 = vector.load %arg2[%c0, %c0_1, %c0_2] : memref<1x8x32xf32, #tpu.memory_space<vmem>>, vector<1x8x32xf32>
    %4 = vector.shape_cast %3 : vector<1x8x32xf32> to vector<8x32xf32>
    %c0_3 = arith.constant 0 : index
    %c0_4 = arith.constant 0 : index
    %5 = vector.load %arg7[%c0_3, %c0_4] : memref<1x32xf32, #tpu.memory_space<vmem>>, vector<1x32xf32>
    %c0_5 = arith.constant 0 : index
    %c0_6 = arith.constant 0 : index
    %6 = vector.load %arg8[%c0_5, %c0_6] : memref<1x32xf32, #tpu.memory_space<vmem>>, vector<1x32xf32>
    %cst = arith.constant dense<0.000000e+00> : vector<8xf32>
    %7 = vector.multi_reduction <add>, %4, %cst [1] : vector<8x32xf32> to vector<8xf32>
    %8 = vector.shape_cast %7 : vector<8xf32> to vector<8x1xf32>
    %cst_7 = arith.constant 3.200000e+01 : f32
    %9 = vector.broadcast %cst_7 : f32 to vector<8x1xf32>
    %10 = arith.divf %8, %9 : vector<8x1xf32>
    %11 = vector.broadcast %10 : vector<8x1xf32> to vector<8x32xf32>
    %12 = arith.subf %4, %11 : vector<8x32xf32>
    %13 = arith.mulf %12, %12 : vector<8x32xf32>
    %cst_8 = arith.constant dense<0.000000e+00> : vector<8xf32>
    %14 = vector.multi_reduction <add>, %13, %cst_8 [1] : vector<8x32xf32> to vector<8xf32>
    %15 = vector.shape_cast %14 : vector<8xf32> to vector<8x1xf32>
    %cst_9 = arith.constant 3.200000e+01 : f32
    %16 = vector.broadcast %cst_9 : f32 to vector<8x1xf32>
    %17 = arith.divf %15, %16 : vector<8x1xf32>
    %18 = vector.broadcast %10 : vector<8x1xf32> to vector<8x32xf32>
    %19 = arith.subf %4, %18 : vector<8x32xf32>
    %cst_10 = arith.constant 9.99999996E-13 : f32
    %20 = vector.broadcast %cst_10 : f32 to vector<8x1xf32>
    %21 = arith.addf %17, %20 : vector<8x1xf32>
    %22 = math.rsqrt %21 : vector<8x1xf32>
    %23 = vector.broadcast %22 : vector<8x1xf32> to vector<8x32xf32>
    %24 = arith.mulf %19, %23 : vector<8x32xf32>
    %25 = vector.broadcast %5 : vector<1x32xf32> to vector<8x32xf32>
    %26 = arith.mulf %24, %25 : vector<8x32xf32>
    %27 = vector.broadcast %6 : vector<1x32xf32> to vector<8x32xf32>
    %28 = arith.addf %26, %27 : vector<8x32xf32>
    %c0_11 = arith.constant 0 : index
    %c0_12 = arith.constant 0 : index
    %29 = vector.load %arg9[%c0_11, %c0_12] : memref<32x32xf32, #tpu.memory_space<vmem>>, vector<32x32xf32>
    %30 = arith.truncf %28 : vector<8x32xf32> to vector<8x32xbf16>
    %31 = arith.truncf %29 : vector<32x32xf32> to vector<32x32xbf16>
    %cst_13 = arith.constant dense<0.000000e+00> : vector<8x32xf32>
    %32 = tpu.matmul %30, %31, %cst_13 {dimension_numbers = #tpu.dot_dimension_numbers<[1], [0], [0], [1], [0, 0, 1, 1], [], []>} : vector<8x32xbf16>, vector<32x32xbf16>, vector<8x32xf32> -> vector<8x32xf32>
    %c0_14 = arith.constant 0 : index
    %c0_15 = arith.constant 0 : index
    %33 = vector.load %arg10[%c0_14, %c0_15] : memref<1x32xf32, #tpu.memory_space<vmem>>, vector<1x32xf32>
    %34 = vector.broadcast %33 : vector<1x32xf32> to vector<8x32xf32>
    %35 = arith.addf %32, %34 : vector<8x32xf32>
    %c0_16 = arith.constant 0 : index
    %c0_17 = arith.constant 0 : index
    %c0_18 = arith.constant 0 : index
    %36 = vector.load %arg3[%c0_16, %c0_17, %c0_18] : memref<1x8x32xf32, #tpu.memory_space<vmem>>, vector<1x8x32xf32>
    %37 = vector.shape_cast %36 : vector<1x8x32xf32> to vector<8x32xf32>
    %c0_19 = arith.constant 0 : index
    %c0_20 = arith.constant 0 : index
    %38 = vector.load %arg7[%c0_19, %c0_20] : memref<1x32xf32, #tpu.memory_space<vmem>>, vector<1x32xf32>
    %c0_21 = arith.constant 0 : index
    %c0_22 = arith.constant 0 : index
    %39 = vector.load %arg8[%c0_21, %c0_22] : memref<1x32xf32, #tpu.memory_space<vmem>>, vector<1x32xf32>
    %cst_23 = arith.constant dense<0.000000e+00> : vector<8xf32>
    %40 = vector.multi_reduction <add>, %37, %cst_23 [1] : vector<8x32xf32> to vector<8xf32>
    %41 = vector.shape_cast %40 : vector<8xf32> to vector<8x1xf32>
    %cst_24 = arith.constant 3.200000e+01 : f32
    %42 = vector.broadcast %cst_24 : f32 to vector<8x1xf32>
    %43 = arith.divf %41, %42 : vector<8x1xf32>
    %44 = vector.broadcast %43 : vector<8x1xf32> to vector<8x32xf32>
    %45 = arith.subf %37, %44 : vector<8x32xf32>
    %46 = arith.mulf %45, %45 : vector<8x32xf32>
    %cst_25 = arith.constant dense<0.000000e+00> : vector<8xf32>
    %47 = vector.multi_reduction <add>, %46, %cst_25 [1] : vector<8x32xf32> to vector<8xf32>
    %48 = vector.shape_cast %47 : vector<8xf32> to vector<8x1xf32>
    %cst_26 = arith.constant 3.200000e+01 : f32
    %49 = vector.broadcast %cst_26 : f32 to vector<8x1xf32>
    %50 = arith.divf %48, %49 : vector<8x1xf32>
    %51 = vector.broadcast %43 : vector<8x1xf32> to vector<8x32xf32>
    %52 = arith.subf %37, %51 : vector<8x32xf32>
    %cst_27 = arith.constant 9.99999996E-13 : f32
    %53 = vector.broadcast %cst_27 : f32 to vector<8x1xf32>
    %54 = arith.addf %50, %53 : vector<8x1xf32>
    %55 = math.rsqrt %54 : vector<8x1xf32>
    %56 = vector.broadcast %55 : vector<8x1xf32> to vector<8x32xf32>
    %57 = arith.mulf %52, %56 : vector<8x32xf32>
    %58 = vector.broadcast %38 : vector<1x32xf32> to vector<8x32xf32>
    %59 = arith.mulf %57, %58 : vector<8x32xf32>
    %60 = vector.broadcast %39 : vector<1x32xf32> to vector<8x32xf32>
    %61 = arith.addf %59, %60 : vector<8x32xf32>
    %c0_28 = arith.constant 0 : index
    %c0_29 = arith.constant 0 : index
    %62 = vector.load %arg11[%c0_28, %c0_29] : memref<32x64xf32, #tpu.memory_space<vmem>>, vector<32x64xf32>
    %63 = arith.truncf %61 : vector<8x32xf32> to vector<8x32xbf16>
    %64 = arith.truncf %62 : vector<32x64xf32> to vector<32x64xbf16>
    %cst_30 = arith.constant dense<0.000000e+00> : vector<8x64xf32>
    %65 = tpu.matmul %63, %64, %cst_30 {dimension_numbers = #tpu.dot_dimension_numbers<[1], [0], [0], [1], [0, 0, 1, 1], [], []>} : vector<8x32xbf16>, vector<32x64xbf16>, vector<8x64xf32> -> vector<8x64xf32>
    %c0_31 = arith.constant 0 : index
    %c0_32 = arith.constant 0 : index
    %66 = vector.load %arg12[%c0_31, %c0_32] : memref<1x64xf32, #tpu.memory_space<vmem>>, vector<1x64xf32>
    %67 = vector.broadcast %66 : vector<1x64xf32> to vector<8x64xf32>
    %68 = arith.addf %65, %67 : vector<8x64xf32>
    %c0_33 = arith.constant 0 : index
    %c0_34 = arith.constant 0 : index
    %c0_35 = arith.constant 0 : index
    %69 = vector.load %arg4[%c0_33, %c0_34, %c0_35] : memref<1x1x8xf32, #tpu.memory_space<vmem>>, vector<1x1x8xf32>
    %70 = vector.shape_cast %69 : vector<1x1x8xf32> to vector<1x8xf32>
    %cst_36 = arith.constant 1.000000e+00 : f32
    %71 = vector.broadcast %cst_36 : f32 to vector<1x8xf32>
    %72 = arith.subf %71, %70 : vector<1x8xf32>
    %cst_37 = arith.constant -1.000000e+04 : f32
    %73 = vector.broadcast %cst_37 : f32 to vector<1x8xf32>
    %74 = arith.mulf %72, %73 : vector<1x8xf32>
    %75 = tpu.iota {dimensions = array<i32: 2>} : vector<8x8x128xi32>
    %cst_38 = arith.constant 0.000000e+00 : f32
    %76 = vector.broadcast %cst_38 : f32 to vector<8x8x128xf32>
    %c0_39 = arith.constant 0 : index
    %c0_40 = arith.constant 0 : index
    %c0_41 = arith.constant 0 : index
    %c0_42 = arith.constant 0 : index
    %77 = vector.load %arg5[%c0_39, %c0_40, %c0_41, %c0_42] : memref<1x4x8x8xi32, #tpu.memory_space<vmem>>, vector<1x1x8x8xi32>
    %78 = vector.shape_cast %77 : vector<1x1x8x8xi32> to vector<8x8xi32>
    %79 = vector.shape_cast %78 : vector<8x8xi32> to vector<8x8x1xi32>
    %80 = vector.broadcast %79 : vector<8x8x1xi32> to vector<8x8x128xi32>
    %81 = arith.cmpi eq, %80, %75 : vector<8x8x128xi32>
    %82 = arith.extui %81 : vector<8x8x128xi1> to vector<8x8x128xi32>
    %83 = arith.sitofp %82 : vector<8x8x128xi32> to vector<8x8x128xf32>
    %84 = arith.addf %76, %83 : vector<8x8x128xf32>
    %c0_43 = arith.constant 0 : index
    %c1 = arith.constant 1 : index
    %c0_44 = arith.constant 0 : index
    %c0_45 = arith.constant 0 : index
    %85 = vector.load %arg5[%c0_43, %c1, %c0_44, %c0_45] : memref<1x4x8x8xi32, #tpu.memory_space<vmem>>, vector<1x1x8x8xi32>
    %86 = vector.shape_cast %85 : vector<1x1x8x8xi32> to vector<8x8xi32>
    %87 = vector.shape_cast %86 : vector<8x8xi32> to vector<8x8x1xi32>
    %88 = vector.broadcast %87 : vector<8x8x1xi32> to vector<8x8x128xi32>
    %89 = arith.cmpi eq, %88, %75 : vector<8x8x128xi32>
    %90 = arith.extui %89 : vector<8x8x128xi1> to vector<8x8x128xi32>
    %91 = arith.sitofp %90 : vector<8x8x128xi32> to vector<8x8x128xf32>
    %92 = arith.addf %84, %91 : vector<8x8x128xf32>
    %c0_46 = arith.constant 0 : index
    %c2 = arith.constant 2 : index
    %c0_47 = arith.constant 0 : index
    %c0_48 = arith.constant 0 : index
    %93 = vector.load %arg5[%c0_46, %c2, %c0_47, %c0_48] : memref<1x4x8x8xi32, #tpu.memory_space<vmem>>, vector<1x1x8x8xi32>
    %94 = vector.shape_cast %93 : vector<1x1x8x8xi32> to vector<8x8xi32>
    %95 = vector.shape_cast %94 : vector<8x8xi32> to vector<8x8x1xi32>
    %96 = vector.broadcast %95 : vector<8x8x1xi32> to vector<8x8x128xi32>
    %97 = arith.cmpi eq, %96, %75 : vector<8x8x128xi32>
    %98 = arith.extui %97 : vector<8x8x128xi1> to vector<8x8x128xi32>
    %99 = arith.sitofp %98 : vector<8x8x128xi32> to vector<8x8x128xf32>
    %100 = arith.addf %92, %99 : vector<8x8x128xf32>
    %c0_49 = arith.constant 0 : index
    %c3 = arith.constant 3 : index
    %c0_50 = arith.constant 0 : index
    %c0_51 = arith.constant 0 : index
    %101 = vector.load %arg5[%c0_49, %c3, %c0_50, %c0_51] : memref<1x4x8x8xi32, #tpu.memory_space<vmem>>, vector<1x1x8x8xi32>
    %102 = vector.shape_cast %101 : vector<1x1x8x8xi32> to vector<8x8xi32>
    %103 = vector.shape_cast %102 : vector<8x8xi32> to vector<8x8x1xi32>
    %104 = vector.broadcast %103 : vector<8x8x1xi32> to vector<8x8x128xi32>
    %105 = arith.cmpi eq, %104, %75 : vector<8x8x128xi32>
    %106 = arith.extui %105 : vector<8x8x128xi1> to vector<8x8x128xi32>
    %107 = arith.sitofp %106 : vector<8x8x128xi32> to vector<8x8x128xf32>
    %108 = arith.addf %100, %107 : vector<8x8x128xf32>
    %109 = vector.extract_strided_slice %35 {offsets = [0, 0], sizes = [8, 16], strides = [1, 1]} : vector<8x32xf32> to vector<8x16xf32>
    %110 = vector.extract_strided_slice %68 {offsets = [0, 0], sizes = [8, 16], strides = [1, 1]} : vector<8x64xf32> to vector<8x16xf32>
    %111 = vector.extract_strided_slice %68 {offsets = [0, 32], sizes = [8, 16], strides = [1, 1]} : vector<8x64xf32> to vector<8x16xf32>
    %112 = tpu.transpose %110, [1, 0] : vector<8x16xf32> -> vector<16x8xf32>
    %113 = arith.truncf %109 : vector<8x16xf32> to vector<8x16xbf16>
    %114 = arith.truncf %112 : vector<16x8xf32> to vector<16x8xbf16>
    %cst_52 = arith.constant dense<0.000000e+00> : vector<8x8xf32>
    %115 = tpu.matmul %113, %114, %cst_52 {dimension_numbers = #tpu.dot_dimension_numbers<[1], [0], [0], [1], [0, 0, 1, 1], [], []>} : vector<8x16xbf16>, vector<16x8xbf16>, vector<8x8xf32> -> vector<8x8xf32>
    %c0_53 = arith.constant 0 : index
    %c0_54 = arith.constant 0 : index
    %116 = vector.load %arg6[%c0_53, %c0_54] : memref<32x128xf32, #tpu.memory_space<vmem>>, vector<16x128xf32>
    %117 = arith.truncf %109 : vector<8x16xf32> to vector<8x16xbf16>
    %118 = arith.truncf %116 : vector<16x128xf32> to vector<16x128xbf16>
    %cst_55 = arith.constant dense<0.000000e+00> : vector<8x128xf32>
    %119 = tpu.matmul %117, %118, %cst_55 {dimension_numbers = #tpu.dot_dimension_numbers<[1], [0], [0], [1], [0, 0, 1, 1], [], []>} : vector<8x16xbf16>, vector<16x128xbf16>, vector<8x128xf32> -> vector<8x128xf32>
    %120 = vector.shape_cast %119 : vector<8x128xf32> to vector<8x1x128xf32>
    %121 = vector.broadcast %120 : vector<8x1x128xf32> to vector<8x8x128xf32>
    %122 = arith.mulf %108, %121 : vector<8x8x128xf32>
    %cst_56 = arith.constant dense<0.000000e+00> : vector<8x8xf32>
    %123 = vector.multi_reduction <add>, %122, %cst_56 [2] : vector<8x8x128xf32> to vector<8x8xf32>
    %124 = arith.addf %115, %123 : vector<8x8xf32>
    %cst_57 = arith.constant 2.500000e-01 : f32
    %125 = vector.broadcast %cst_57 : f32 to vector<8x8xf32>
    %126 = arith.mulf %124, %125 : vector<8x8xf32>
    %127 = vector.broadcast %74 : vector<1x8xf32> to vector<8x8xf32>
    %128 = arith.addf %126, %127 : vector<8x8xf32>
    %c0_58 = arith.constant 0 : index
    %c0_59 = arith.constant 0 : index
    %129 = vector.load %arg24[%c0_58, %c0_59] : memref<8x2xf32, #tpu.memory_space<vmem>>, vector<8x1xf32>
    %cst_60 = arith.constant dense<0xFF800000> : vector<8xf32>
    %130 = vector.multi_reduction <maximumf>, %128, %cst_60 [1] : vector<8x8xf32> to vector<8xf32>
    %131 = vector.shape_cast %130 : vector<8xf32> to vector<8x1xf32>
    %132 = arith.maximumf %129, %131 : vector<8x1xf32>
    %133 = arith.subf %129, %132 : vector<8x1xf32>
    %134 = math.exp %133 : vector<8x1xf32>
    %135 = vector.broadcast %132 : vector<8x1xf32> to vector<8x8xf32>
    %136 = arith.subf %128, %135 : vector<8x8xf32>
    %137 = math.exp %136 : vector<8x8xf32>
    %c0_61 = arith.constant 0 : index
    %c0_62 = arith.constant 0 : index
    %138 = vector.load %arg25[%c0_61, %c0_62] : memref<8x2xf32, #tpu.memory_space<vmem>>, vector<8x1xf32>
    %139 = arith.mulf %134, %138 : vector<8x1xf32>
    %cst_63 = arith.constant dense<0.000000e+00> : vector<8xf32>
    %140 = vector.multi_reduction <add>, %137, %cst_63 [1] : vector<8x8xf32> to vector<8xf32>
    %141 = vector.shape_cast %140 : vector<8xf32> to vector<8x1xf32>
    %142 = arith.addf %139, %141 : vector<8x1xf32>
    %c0_64 = arith.constant 0 : index
    %c0_65 = arith.constant 0 : index
    %143 = vector.load %arg25[%c0_64, %c0_65] : memref<8x2xf32, #tpu.memory_space<vmem>>, vector<8x1xf32>
    tpu.vector_store %arg25[%c0_64, %c0_65], %142 {strides = array<i32>} : memref<8x2xf32, #tpu.memory_space<vmem>>, vector<8x1xf32>,
    %c0_66 = arith.constant 0 : index
    %c0_67 = arith.constant 0 : index
    %144 = vector.load %arg26[%c0_66, %c0_67] : memref<8x32xf32, #tpu.memory_space<vmem>>, vector<8x16xf32>
    %145 = vector.broadcast %134 : vector<8x1xf32> to vector<8x16xf32>
    %146 = arith.mulf %145, %144 : vector<8x16xf32>
    %147 = arith.truncf %137 : vector<8x8xf32> to vector<8x8xbf16>
    %148 = arith.truncf %111 : vector<8x16xf32> to vector<8x16xbf16>
    %cst_68 = arith.constant dense<0.000000e+00> : vector<8x16xf32>
    %149 = tpu.matmul %147, %148, %cst_68 {dimension_numbers = #tpu.dot_dimension_numbers<[1], [0], [0], [1], [0, 0, 1, 1], [], []>} : vector<8x8xbf16>, vector<8x16xbf16>, vector<8x16xf32> -> vector<8x16xf32>
    %150 = arith.addf %146, %149 : vector<8x16xf32>
    %c0_69 = arith.constant 0 : index
    %c0_70 = arith.constant 0 : index
    %151 = vector.load %arg26[%c0_69, %c0_70] : memref<8x32xf32, #tpu.memory_space<vmem>>, vector<8x16xf32>
    tpu.vector_store %arg26[%c0_69, %c0_70], %150 {strides = array<i32>} : memref<8x32xf32, #tpu.memory_space<vmem>>, vector<8x16xf32>,
    %c0_71 = arith.constant 0 : index
    %c0_72 = arith.constant 0 : index
    %152 = vector.load %arg24[%c0_71, %c0_72] : memref<8x2xf32, #tpu.memory_space<vmem>>, vector<8x1xf32>
    tpu.vector_store %arg24[%c0_71, %c0_72], %132 {strides = array<i32>} : memref<8x2xf32, #tpu.memory_space<vmem>>, vector<8x1xf32>,
    %153 = vector.extract_strided_slice %35 {offsets = [0, 16], sizes = [8, 16], strides = [1, 1]} : vector<8x32xf32> to vector<8x16xf32>
    %154 = vector.extract_strided_slice %68 {offsets = [0, 16], sizes = [8, 16], strides = [1, 1]} : vector<8x64xf32> to vector<8x16xf32>
    %155 = vector.extract_strided_slice %68 {offsets = [0, 48], sizes = [8, 16], strides = [1, 1]} : vector<8x64xf32> to vector<8x16xf32>
    %156 = tpu.transpose %154, [1, 0] : vector<8x16xf32> -> vector<16x8xf32>
    %157 = arith.truncf %153 : vector<8x16xf32> to vector<8x16xbf16>
    %158 = arith.truncf %156 : vector<16x8xf32> to vector<16x8xbf16>
    %cst_73 = arith.constant dense<0.000000e+00> : vector<8x8xf32>
    %159 = tpu.matmul %157, %158, %cst_73 {dimension_numbers = #tpu.dot_dimension_numbers<[1], [0], [0], [1], [0, 0, 1, 1], [], []>} : vector<8x16xbf16>, vector<16x8xbf16>, vector<8x8xf32> -> vector<8x8xf32>
    %c16 = arith.constant 16 : index
    %c0_74 = arith.constant 0 : index
    %160 = vector.load %arg6[%c16, %c0_74] : memref<32x128xf32, #tpu.memory_space<vmem>>, vector<16x128xf32>
    %161 = arith.truncf %153 : vector<8x16xf32> to vector<8x16xbf16>
    %162 = arith.truncf %160 : vector<16x128xf32> to vector<16x128xbf16>
    %cst_75 = arith.constant dense<0.000000e+00> : vector<8x128xf32>
    %163 = tpu.matmul %161, %162, %cst_75 {dimension_numbers = #tpu.dot_dimension_numbers<[1], [0], [0], [1], [0, 0, 1, 1], [], []>} : vector<8x16xbf16>, vector<16x128xbf16>, vector<8x128xf32> -> vector<8x128xf32>
    %164 = vector.shape_cast %163 : vector<8x128xf32> to vector<8x1x128xf32>
    %165 = vector.broadcast %164 : vector<8x1x128xf32> to vector<8x8x128xf32>
    %166 = arith.mulf %108, %165 : vector<8x8x128xf32>
    %cst_76 = arith.constant dense<0.000000e+00> : vector<8x8xf32>
    %167 = vector.multi_reduction <add>, %166, %cst_76 [2] : vector<8x8x128xf32> to vector<8x8xf32>
    %168 = arith.addf %159, %167 : vector<8x8xf32>
    %cst_77 = arith.constant 2.500000e-01 : f32
    %169 = vector.broadcast %cst_77 : f32 to vector<8x8xf32>
    %170 = arith.mulf %168, %169 : vector<8x8xf32>
    %171 = vector.broadcast %74 : vector<1x8xf32> to vector<8x8xf32>
    %172 = arith.addf %170, %171 : vector<8x8xf32>
    %c0_78 = arith.constant 0 : index
    %c1_79 = arith.constant 1 : index
    %173 = vector.load %arg24[%c0_78, %c1_79] : memref<8x2xf32, #tpu.memory_space<vmem>>, vector<8x1xf32>
    %cst_80 = arith.constant dense<0xFF800000> : vector<8xf32>
    %174 = vector.multi_reduction <maximumf>, %172, %cst_80 [1] : vector<8x8xf32> to vector<8xf32>
    %175 = vector.shape_cast %174 : vector<8xf32> to vector<8x1xf32>
    %176 = arith.maximumf %173, %175 : vector<8x1xf32>
    %177 = arith.subf %173, %176 : vector<8x1xf32>
    %178 = math.exp %177 : vector<8x1xf32>
    %179 = vector.broadcast %176 : vector<8x1xf32> to vector<8x8xf32>
    %180 = arith.subf %172, %179 : vector<8x8xf32>
    %181 = math.exp %180 : vector<8x8xf32>
    %c0_81 = arith.constant 0 : index
    %c1_82 = arith.constant 1 : index
    %182 = vector.load %arg25[%c0_81, %c1_82] : memref<8x2xf32, #tpu.memory_space<vmem>>, vector<8x1xf32>
    %183 = arith.mulf %178, %182 : vector<8x1xf32>
    %cst_83 = arith.constant dense<0.000000e+00> : vector<8xf32>
    %184 = vector.multi_reduction <add>, %181, %cst_83 [1] : vector<8x8xf32> to vector<8xf32>
    %185 = vector.shape_cast %184 : vector<8xf32> to vector<8x1xf32>
    %186 = arith.addf %183, %185 : vector<8x1xf32>
    %c0_84 = arith.constant 0 : index
    %c1_85 = arith.constant 1 : index
    %187 = vector.load %arg25[%c0_84, %c1_85] : memref<8x2xf32, #tpu.memory_space<vmem>>, vector<8x1xf32>
    tpu.vector_store %arg25[%c0_84, %c1_85], %186 {strides = array<i32>} : memref<8x2xf32, #tpu.memory_space<vmem>>, vector<8x1xf32>,
    %c0_86 = arith.constant 0 : index
    %c16_87 = arith.constant 16 : index
    %188 = vector.load %arg26[%c0_86, %c16_87] : memref<8x32xf32, #tpu.memory_space<vmem>>, vector<8x16xf32>
    %189 = vector.broadcast %178 : vector<8x1xf32> to vector<8x16xf32>
    %190 = arith.mulf %189, %188 : vector<8x16xf32>
    %191 = arith.truncf %181 : vector<8x8xf32> to vector<8x8xbf16>
    %192 = arith.truncf %155 : vector<8x16xf32> to vector<8x16xbf16>
    %cst_88 = arith.constant dense<0.000000e+00> : vector<8x16xf32>
    %193 = tpu.matmul %191, %192, %cst_88 {dimension_numbers = #tpu.dot_dimension_numbers<[1], [0], [0], [1], [0, 0, 1, 1], [], []>} : vector<8x8xbf16>, vector<8x16xbf16>, vector<8x16xf32> -> vector<8x16xf32>
    %194 = arith.addf %190, %193 : vector<8x16xf32>
    %c0_89 = arith.constant 0 : index
    %c16_90 = arith.constant 16 : index
    %195 = vector.load %arg26[%c0_89, %c16_90] : memref<8x32xf32, #tpu.memory_space<vmem>>, vector<8x16xf32>
    tpu.vector_store %arg26[%c0_89, %c16_90], %194 {strides = array<i32>} : memref<8x32xf32, #tpu.memory_space<vmem>>, vector<8x16xf32>,
    %c0_91 = arith.constant 0 : index
    %c1_92 = arith.constant 1 : index
    %196 = vector.load %arg24[%c0_91, %c1_92] : memref<8x2xf32, #tpu.memory_space<vmem>>, vector<8x1xf32>
    tpu.vector_store %arg24[%c0_91, %c1_92], %176 {strides = array<i32>} : memref<8x2xf32, #tpu.memory_space<vmem>>, vector<8x1xf32>,
    %c0_i32_93 = arith.constant 0 : i32
    %197 = arith.cmpi eq, %arg1, %c0_i32_93 : i32
    %198 = arith.extui %197 : i1 to i32
    %c0_i32_94 = arith.constant 0 : i32
    %199 = arith.cmpi ne, %198, %c0_i32_94 : i32
    scf.if %199 {
      %c0_95 = arith.constant 0 : index
      %c0_96 = arith.constant 0 : index
      %200 = vector.load %arg25[%c0_95, %c0_96] : memref<8x2xf32, #tpu.memory_space<vmem>>, vector<8x2xf32>
      %201 = tpu.reciprocal %200 {approx = true} : vector<8x2xf32> -> vector<8x2xf32>
      %c0_97 = arith.constant 0 : index
      %c0_98 = arith.constant 0 : index
      %202 = vector.load %arg26[%c0_97, %c0_98] : memref<8x32xf32, #tpu.memory_space<vmem>>, vector<8x16xf32>
      %203 = vector.extract_strided_slice %201 {offsets = [0, 0], sizes = [8, 1], strides = [1, 1]} : vector<8x2xf32> to vector<8x1xf32>
      %204 = vector.broadcast %203 : vector<8x1xf32> to vector<8x16xf32>
      %205 = arith.mulf %202, %204 : vector<8x16xf32>
      %c0_99 = arith.constant 0 : index
      %c16_100 = arith.constant 16 : index
      %206 = vector.load %arg26[%c0_99, %c16_100] : memref<8x32xf32, #tpu.memory_space<vmem>>, vector<8x16xf32>
      %207 = vector.extract_strided_slice %201 {offsets = [0, 1], sizes = [8, 1], strides = [1, 1]} : vector<8x2xf32> to vector<8x1xf32>
      %208 = vector.broadcast %207 : vector<8x1xf32> to vector<8x16xf32>
      %209 = arith.mulf %206, %208 : vector<8x16xf32>
      %210 = tpu.concatenate %205, %209 in 1 : vector<8x16xf32>, vector<8x16xf32> -> vector<8x32xf32>
      %c0_101 = arith.constant 0 : index
      %c0_102 = arith.constant 0 : index
      %211 = vector.load %arg13[%c0_101, %c0_102] : memref<32x32xf32, #tpu.memory_space<vmem>>, vector<32x32xf32>
      %212 = arith.truncf %210 : vector<8x32xf32> to vector<8x32xbf16>
      %213 = arith.truncf %211 : vector<32x32xf32> to vector<32x32xbf16>
      %cst_103 = arith.constant dense<0.000000e+00> : vector<8x32xf32>
      %214 = tpu.matmul %212, %213, %cst_103 {dimension_numbers = #tpu.dot_dimension_numbers<[1], [0], [0], [1], [0, 0, 1, 1], [], []>} : vector<8x32xbf16>, vector<32x32xbf16>, vector<8x32xf32> -> vector<8x32xf32>
      %c0_104 = arith.constant 0 : index
      %c0_105 = arith.constant 0 : index
      %215 = vector.load %arg14[%c0_104, %c0_105] : memref<1x32xf32, #tpu.memory_space<vmem>>, vector<1x32xf32>
      %216 = vector.broadcast %215 : vector<1x32xf32> to vector<8x32xf32>
      %217 = arith.addf %214, %216 : vector<8x32xf32>
      %218 = arith.addf %217, %28 : vector<8x32xf32>
      %c0_106 = arith.constant 0 : index
      %c0_107 = arith.constant 0 : index
      %219 = vector.load %arg15[%c0_106, %c0_107] : memref<1x32xf32, #tpu.memory_space<vmem>>, vector<1x32xf32>
      %c0_108 = arith.constant 0 : index
      %c0_109 = arith.constant 0 : index
      %220 = vector.load %arg16[%c0_108, %c0_109] : memref<1x32xf32, #tpu.memory_space<vmem>>, vector<1x32xf32>
      %cst_110 = arith.constant dense<0.000000e+00> : vector<8xf32>
      %221 = vector.multi_reduction <add>, %218, %cst_110 [1] : vector<8x32xf32> to vector<8xf32>
      %222 = vector.shape_cast %221 : vector<8xf32> to vector<8x1xf32>
      %cst_111 = arith.constant 3.200000e+01 : f32
      %223 = vector.broadcast %cst_111 : f32 to vector<8x1xf32>
      %224 = arith.divf %222, %223 : vector<8x1xf32>
      %225 = vector.broadcast %224 : vector<8x1xf32> to vector<8x32xf32>
      %226 = arith.subf %218, %225 : vector<8x32xf32>
      %227 = arith.mulf %226, %226 : vector<8x32xf32>
      %cst_112 = arith.constant dense<0.000000e+00> : vector<8xf32>
      %228 = vector.multi_reduction <add>, %227, %cst_112 [1] : vector<8x32xf32> to vector<8xf32>
      %229 = vector.shape_cast %228 : vector<8xf32> to vector<8x1xf32>
      %cst_113 = arith.constant 3.200000e+01 : f32
      %230 = vector.broadcast %cst_113 : f32 to vector<8x1xf32>
      %231 = arith.divf %229, %230 : vector<8x1xf32>
      %232 = vector.broadcast %224 : vector<8x1xf32> to vector<8x32xf32>
      %233 = arith.subf %218, %232 : vector<8x32xf32>
      %cst_114 = arith.constant 9.99999996E-13 : f32
      %234 = vector.broadcast %cst_114 : f32 to vector<8x1xf32>
      %235 = arith.addf %231, %234 : vector<8x1xf32>
      %236 = math.rsqrt %235 : vector<8x1xf32>
      %237 = vector.broadcast %236 : vector<8x1xf32> to vector<8x32xf32>
      %238 = arith.mulf %233, %237 : vector<8x32xf32>
      %239 = vector.broadcast %219 : vector<1x32xf32> to vector<8x32xf32>
      %240 = arith.mulf %238, %239 : vector<8x32xf32>
      %241 = vector.broadcast %220 : vector<1x32xf32> to vector<8x32xf32>
      %242 = arith.addf %240, %241 : vector<8x32xf32>
      %c0_115 = arith.constant 0 : index
      %c0_116 = arith.constant 0 : index
      %243 = vector.load %arg17[%c0_115, %c0_116] : memref<32x64xf32, #tpu.memory_space<vmem>>, vector<32x64xf32>
      %244 = arith.truncf %242 : vector<8x32xf32> to vector<8x32xbf16>
      %245 = arith.truncf %243 : vector<32x64xf32> to vector<32x64xbf16>
      %cst_117 = arith.constant dense<0.000000e+00> : vector<8x64xf32>
      %246 = tpu.matmul %244, %245, %cst_117 {dimension_numbers = #tpu.dot_dimension_numbers<[1], [0], [0], [1], [0, 0, 1, 1], [], []>} : vector<8x32xbf16>, vector<32x64xbf16>, vector<8x64xf32> -> vector<8x64xf32>
      %c0_118 = arith.constant 0 : index
      %c0_119 = arith.constant 0 : index
      %247 = vector.load %arg18[%c0_118, %c0_119] : memref<1x64xf32, #tpu.memory_space<vmem>>, vector<1x64xf32>
      %248 = vector.broadcast %247 : vector<1x64xf32> to vector<8x64xf32>
      %249 = arith.addf %246, %248 : vector<8x64xf32>
      %cst_120 = arith.constant 5.000000e-01 : f32
      %250 = vector.broadcast %cst_120 : f32 to vector<8x64xf32>
      %251 = arith.mulf %250, %249 : vector<8x64xf32>
      %cst_121 = arith.constant 0.707106769 : f32
      %252 = vector.broadcast %cst_121 : f32 to vector<8x64xf32>
      %253 = arith.mulf %249, %252 : vector<8x64xf32>
      %cst_122 = arith.constant 0.000000e+00 : f32
      %254 = vector.broadcast %cst_122 : f32 to vector<8x64xf32>
      %255 = arith.cmpf oge, %253, %254 : vector<8x64xf32>
      %cst_123 = arith.constant 1.000000e+00 : f32
      %cst_124 = arith.constant -1.000000e+00 : f32
      %256 = vector.broadcast %cst_123 : f32 to vector<8x64xf32>
      %257 = vector.broadcast %cst_124 : f32 to vector<8x64xf32>
      %258 = arith.select %255, %256, %257 : vector<8x64xi1>, vector<8x64xf32>
      %259 = math.absf %253 : vector<8x64xf32>
      %cst_125 = arith.constant 0.327591091 : f32
      %260 = vector.broadcast %cst_125 : f32 to vector<8x64xf32>
      %261 = arith.mulf %260, %259 : vector<8x64xf32>
      %cst_126 = arith.constant 1.000000e+00 : f32
      %262 = vector.broadcast %cst_126 : f32 to vector<8x64xf32>
      %263 = arith.addf %262, %261 : vector<8x64xf32>
      %264 = tpu.reciprocal %263 : vector<8x64xf32> -> vector<8x64xf32>
      %cst_127 = arith.constant 1.06140542 : f32
      %265 = vector.broadcast %cst_127 : f32 to vector<8x64xf32>
      %266 = arith.mulf %265, %264 : vector<8x64xf32>
      %cst_128 = arith.constant -1.45315206 : f32
      %267 = vector.broadcast %cst_128 : f32 to vector<8x64xf32>
      %268 = arith.addf %266, %267 : vector<8x64xf32>
      %269 = arith.mulf %268, %264 : vector<8x64xf32>
      %cst_129 = arith.constant 1.42141378 : f32
      %270 = vector.broadcast %cst_129 : f32 to vector<8x64xf32>
      %271 = arith.addf %269, %270 : vector<8x64xf32>
      %272 = arith.mulf %271, %264 : vector<8x64xf32>
      %cst_130 = arith.constant -0.284496725 : f32
      %273 = vector.broadcast %cst_130 : f32 to vector<8x64xf32>
      %274 = arith.addf %272, %273 : vector<8x64xf32>
      %275 = arith.mulf %274, %264 : vector<8x64xf32>
      %cst_131 = arith.constant 0.254829586 : f32
      %276 = vector.broadcast %cst_131 : f32 to vector<8x64xf32>
      %277 = arith.addf %275, %276 : vector<8x64xf32>
      %278 = arith.mulf %277, %264 : vector<8x64xf32>
      %cst_132 = arith.constant 0.000000e+00 : f32
      %279 = vector.broadcast %cst_132 : f32 to vector<8x64xf32>
      %280 = arith.subf %279, %259 : vector<8x64xf32>
      %281 = arith.mulf %280, %259 : vector<8x64xf32>
      %282 = math.exp %281 : vector<8x64xf32>
      %283 = arith.mulf %278, %282 : vector<8x64xf32>
      %cst_133 = arith.constant 1.000000e+00 : f32
      %284 = vector.broadcast %cst_133 : f32 to vector<8x64xf32>
      %285 = arith.subf %284, %283 : vector<8x64xf32>
      %286 = arith.mulf %258, %285 : vector<8x64xf32>
      %cst_134 = arith.constant 1.000000e+00 : f32
      %287 = vector.broadcast %cst_134 : f32 to vector<8x64xf32>
      %288 = arith.addf %287, %286 : vector<8x64xf32>
      %289 = arith.mulf %251, %288 : vector<8x64xf32>
      %c0_135 = arith.constant 0 : index
      %c0_136 = arith.constant 0 : index
      %290 = vector.load %arg19[%c0_135, %c0_136] : memref<64x32xf32, #tpu.memory_space<vmem>>, vector<64x32xf32>
      %291 = arith.truncf %289 : vector<8x64xf32> to vector<8x64xbf16>
      %292 = arith.truncf %290 : vector<64x32xf32> to vector<64x32xbf16>
      %cst_137 = arith.constant dense<0.000000e+00> : vector<8x32xf32>
      %293 = tpu.matmul %291, %292, %cst_137 {dimension_numbers = #tpu.dot_dimension_numbers<[1], [0], [0], [1], [0, 0, 1, 1], [], []>} : vector<8x64xbf16>, vector<64x32xbf16>, vector<8x32xf32> -> vector<8x32xf32>
      %c0_138 = arith.constant 0 : index
      %c0_139 = arith.constant 0 : index
      %294 = vector.load %arg20[%c0_138, %c0_139] : memref<1x32xf32, #tpu.memory_space<vmem>>, vector<1x32xf32>
      %295 = vector.broadcast %294 : vector<1x32xf32> to vector<8x32xf32>
      %296 = arith.addf %293, %295 : vector<8x32xf32>
      %297 = arith.addf %296, %242 : vector<8x32xf32>
      %c0_140 = arith.constant 0 : index
      %c0_141 = arith.constant 0 : index
      %298 = vector.load %arg21[%c0_140, %c0_141] : memref<1x32xf32, #tpu.memory_space<vmem>>, vector<1x32xf32>
      %c0_142 = arith.constant 0 : index
      %c0_143 = arith.constant 0 : index
      %299 = vector.load %arg22[%c0_142, %c0_143] : memref<1x32xf32, #tpu.memory_space<vmem>>, vector<1x32xf32>
      %cst_144 = arith.constant dense<0.000000e+00> : vector<8xf32>
      %300 = vector.multi_reduction <add>, %297, %cst_144 [1] : vector<8x32xf32> to vector<8xf32>
      %301 = vector.shape_cast %300 : vector<8xf32> to vector<8x1xf32>
      %cst_145 = arith.constant 3.200000e+01 : f32
      %302 = vector.broadcast %cst_145 : f32 to vector<8x1xf32>
      %303 = arith.divf %301, %302 : vector<8x1xf32>
      %304 = vector.broadcast %303 : vector<8x1xf32> to vector<8x32xf32>
      %305 = arith.subf %297, %304 : vector<8x32xf32>
      %306 = arith.mulf %305, %305 : vector<8x32xf32>
      %cst_146 = arith.constant dense<0.000000e+00> : vector<8xf32>
      %307 = vector.multi_reduction <add>, %306, %cst_146 [1] : vector<8x32xf32> to vector<8xf32>
      %308 = vector.shape_cast %307 : vector<8xf32> to vector<8x1xf32>
      %cst_147 = arith.constant 3.200000e+01 : f32
      %309 = vector.broadcast %cst_147 : f32 to vector<8x1xf32>
      %310 = arith.divf %308, %309 : vector<8x1xf32>
      %311 = vector.broadcast %303 : vector<8x1xf32> to vector<8x32xf32>
      %312 = arith.subf %297, %311 : vector<8x32xf32>
      %cst_148 = arith.constant 9.99999996E-13 : f32
      %313 = vector.broadcast %cst_148 : f32 to vector<8x1xf32>
      %314 = arith.addf %310, %313 : vector<8x1xf32>
      %315 = math.rsqrt %314 : vector<8x1xf32>
      %316 = vector.broadcast %315 : vector<8x1xf32> to vector<8x32xf32>
      %317 = arith.mulf %312, %316 : vector<8x32xf32>
      %318 = vector.broadcast %298 : vector<1x32xf32> to vector<8x32xf32>
      %319 = arith.mulf %317, %318 : vector<8x32xf32>
      %320 = vector.broadcast %299 : vector<1x32xf32> to vector<8x32xf32>
      %321 = arith.addf %319, %320 : vector<8x32xf32>
      %c0_149 = arith.constant 0 : index
      %c0_150 = arith.constant 0 : index
      %c0_151 = arith.constant 0 : index
      %322 = vector.load %arg23[%c0_149, %c0_150, %c0_151] : memref<1x8x32xf32, #tpu.memory_space<vmem>>, vector<1x8x32xf32>
      %323 = vector.shape_cast %322 : vector<1x8x32xf32> to vector<8x32xf32>
      %324 = vector.shape_cast %321 : vector<8x32xf32> to vector<1x8x32xf32>
      tpu.vector_store %arg23[%c0_149, %c0_150, %c0_151], %324 {strides = array<i32>} : memref<1x8x32xf32, #tpu.memory_space<vmem>>, vector<1x8x32xf32>,
    } else {
    }
    return
  }
  func.func @transform_0(%arg0: i32, %arg1: i32) -> (i32, i32, i32) {
    %c0_i32 = arith.constant 0 : i32
    %c0_i32_0 = arith.constant 0 : i32
    %c0_i32_1 = arith.constant 0 : i32
    return %arg0, %c0_i32, %c0_i32_0 : i32, i32, i32
  }
  func.func @transform_1(%arg0: i32, %arg1: i32) -> (i32, i32, i32) {
    %c0_i32 = arith.constant 0 : i32
    %c0_i32_0 = arith.constant 0 : i32
    return %arg0, %arg1, %c0_i32 : i32, i32, i32
  }
  func.func @transform_2(%arg0: i32, %arg1: i32) -> (i32, i32, i32) {
    %c0_i32 = arith.constant 0 : i32
    %c0_i32_0 = arith.constant 0 : i32
    return %arg0, %c0_i32, %arg1 : i32, i32, i32
  }
  func.func @transform_3(%arg0: i32, %arg1: i32) -> (i32, i32, i32, i32) {
    %c0_i32 = arith.constant 0 : i32
    %c0_i32_0 = arith.constant 0 : i32
    %c0_i32_1 = arith.constant 0 : i32
    return %arg0, %c0_i32, %c0_i32_0, %arg1 : i32, i32, i32, i32
  }
  func.func @transform_4(%arg0: i32, %arg1: i32) -> (i32, i32) {
    %c0_i32 = arith.constant 0 : i32
    %c0_i32_0 = arith.constant 0 : i32
    %c0_i32_1 = arith.constant 0 : i32
    return %c0_i32, %c0_i32_0 : i32, i32
  }
  func.func @transform_5(%arg0: i32, %arg1: i32) -> (i32, i32) {
    %c0_i32 = arith.constant 0 : i32
    %c0_i32_0 = arith.constant 0 : i32
    %c0_i32_1 = arith.constant 0 : i32
    return %c0_i32, %c0_i32_0 : i32, i32
  }
  func.func @transform_6(%arg0: i32, %arg1: i32) -> (i32, i32) {
    %c0_i32 = arith.constant 0 : i32
    %c0_i32_0 = arith.constant 0 : i32
    %c0_i32_1 = arith.constant 0 : i32
    return %c0_i32, %c0_i32_0 : i32, i32
  }
  func.func @transform_7(%arg0: i32, %arg1: i32) -> (i32, i32) {
    %c0_i32 = arith.constant 0 : i32
    %c0_i32_0 = arith.constant 0 : i32
    %c0_i32_1 = arith.constant 0 : i32
    return %c0_i32, %c0_i32_0 : i32, i32
  }
  func.func @transform_8(%arg0: i32, %arg1: i32) -> (i32, i32) {
    %c0_i32 = arith.constant 0 : i32
    %c0_i32_0 = arith.constant 0 : i32
    %c0_i32_1 = arith.constant 0 : i32
    return %c0_i32, %c0_i32_0 : i32, i32
  }
  func.func @transform_9(%arg0: i32, %arg1: i32) -> (i32, i32) {
    %c0_i32 = arith.constant 0 : i32
    %c0_i32_0 = arith.constant 0 : i32
    %c0_i32_1 = arith.constant 0 : i32
    return %c0_i32, %c0_i32_0 : i32, i32
  }
  func.func @transform_10(%arg0: i32, %arg1: i32) -> (i32, i32) {
    %c0_i32 = arith.constant 0 : i32
    %c0_i32_0 = arith.constant 0 : i32
    %c0_i32_1 = arith.constant 0 : i32
    return %c0_i32, %c0_i32_0 : i32, i32
  }
  func.func @transform_11(%arg0: i32, %arg1: i32) -> (i32, i32) {
    %c0_i32 = arith.constant 0 : i32
    %c0_i32_0 = arith.constant 0 : i32
    %c0_i32_1 = arith.constant 0 : i32
    return %c0_i32, %c0_i32_0 : i32, i32
  }
  func.func @transform_12(%arg0: i32, %arg1: i32) -> (i32, i32) {
    %c0_i32 = arith.constant 0 : i32
    %c0_i32_0 = arith.constant 0 : i32
    %c0_i32_1 = arith.constant 0 : i32
    return %c0_i32, %c0_i32_0 : i32, i32
  }
  func.func @transform_13(%arg0: i32, %arg1: i32) -> (i32, i32) {
    %c0_i32 = arith.constant 0 : i32
    %c0_i32_0 = arith.constant 0 : i32
    %c0_i32_1 = arith.constant 0 : i32
    return %c0_i32, %c0_i32_0 : i32, i32
  }
  func.func @transform_14(%arg0: i32, %arg1: i32) -> (i32, i32) {
    %c0_i32 = arith.constant 0 : i32
    %c0_i32_0 = arith.constant 0 : i32
    %c0_i32_1 = arith.constant 0 : i32
    return %c0_i32, %c0_i32_0 : i32, i32
  }
  func.func @transform_15(%arg0: i32, %arg1: i32) -> (i32, i32) {
    %c0_i32 = arith.constant 0 : i32
    %c0_i32_0 = arith.constant 0 : i32
    %c0_i32_1 = arith.constant 0 : i32
    return %c0_i32, %c0_i32_0 : i32, i32
  }
  func.func @transform_16(%arg0: i32, %arg1: i32) -> (i32, i32) {
    %c0_i32 = arith.constant 0 : i32
    %c0_i32_0 = arith.constant 0 : i32
    %c0_i32_1 = arith.constant 0 : i32
    return %c0_i32, %c0_i32_0 : i32, i32
  }
  func.func @transform_17(%arg0: i32, %arg1: i32) -> (i32, i32) {
    %c0_i32 = arith.constant 0 : i32
    %c0_i32_0 = arith.constant 0 : i32
    %c0_i32_1 = arith.constant 0 : i32
    return %c0_i32, %c0_i32_0 : i32, i32
  }
  func.func @transform_18(%arg0: i32, %arg1: i32) -> (i32, i32) {
    %c0_i32 = arith.constant 0 : i32
    %c0_i32_0 = arith.constant 0 : i32
    %c0_i32_1 = arith.constant 0 : i32
    return %c0_i32, %c0_i32_0 : i32, i32
  }
  func.func @transform_19(%arg0: i32, %arg1: i32) -> (i32, i32) {
    %c0_i32 = arith.constant 0 : i32
    %c0_i32_0 = arith.constant 0 : i32
    %c0_i32_1 = arith.constant 0 : i32
    return %c0_i32, %c0_i32_0 : i32, i32
  }
  func.func @transform_20(%arg0: i32, %arg1: i32) -> (i32, i32) {
    %c0_i32 = arith.constant 0 : i32
    %c0_i32_0 = arith.constant 0 : i32
    %c0_i32_1 = arith.constant 0 : i32
    return %c0_i32, %c0_i32_0 : i32, i32
  }
  func.func @transform_21(%arg0: i32, %arg1: i32) -> (i32, i32, i32) {
    %c0_i32 = arith.constant 0 : i32
    %c0_i32_0 = arith.constant 0 : i32
    %c0_i32_1 = arith.constant 0 : i32
    return %arg0, %c0_i32, %c0_i32_0 : i32, i32, i32
  }
}

</mosaic_0001>

<llo_original>
// kernel: tpu_custom_call.1
$region0: #{tpu_custom_call.1}
  #allocation0 [shape = 'u32[]', space=smem, size = 0x4, offset = 0x4, fixed_abs, tag = 'smem constant byte address 0x4 - core index']
  #allocation1 [shape = 'u32[144,128]{1,0:T(1,128)}', space=vmem, size = 0x12000, scoped, tag = 'internal scratch']
  #allocation2 [shape = 'f32[8,2]{1,0:T(8,128)}', space=vmem, size = 0x1000, scoped, tag = 'scratch operand']
  #allocation3 [shape = 'f32[8,2]{1,0:T(8,128)}', space=vmem, size = 0x1000, scoped, tag = 'scratch operand']
  #allocation4 [shape = 'f32[8,32]{1,0:T(8,128)}', space=vmem, size = 0x1000, scoped, tag = 'scratch operand']
  %s0 = inlined_call_operand.hbm [shape: f32[2,8,32], index: 0, kind: input, shape index: {}]
  %s1 = inlined_call_operand.hbm [shape: f32[2,8,32], index: 1, kind: input, shape index: {}]
  %s2 = inlined_call_operand.hbm [shape: f32[2,1,8], index: 2, kind: input, shape index: {}]
  %s3 = inlined_call_operand.vmem [shape: s32[2,4,8,8], index: 3, kind: input, shape index: {}]
  %s4 = inlined_call_operand.vmem [shape: f32[32,128], index: 4, kind: input, shape index: {}]
  %s5 = inlined_call_operand.hbm [shape: f32[1,32], index: 5, kind: input, shape index: {}]
  %s6 = inlined_call_operand.hbm [shape: f32[1,32], index: 6, kind: input, shape index: {}]
  %s7 = inlined_call_operand.hbm [shape: f32[32,32], index: 7, kind: input, shape index: {}]
  %s8 = inlined_call_operand.hbm [shape: f32[1,32], index: 8, kind: input, shape index: {}]
  %s9 = inlined_call_operand.vmem [shape: f32[32,64], index: 9, kind: input, shape index: {}]
  %s10 = inlined_call_operand.hbm [shape: f32[1,64], index: 10, kind: input, shape index: {}]
  %s11 = inlined_call_operand.hbm [shape: f32[32,32], index: 11, kind: input, shape index: {}]
  %s12 = inlined_call_operand.hbm [shape: f32[1,32], index: 12, kind: input, shape index: {}]
  %s13 = inlined_call_operand.hbm [shape: f32[1,32], index: 13, kind: input, shape index: {}]
  %s14 = inlined_call_operand.hbm [shape: f32[1,32], index: 14, kind: input, shape index: {}]
  %s15 = inlined_call_operand.hbm [shape: f32[32,64], index: 15, kind: input, shape index: {}]
  %s16 = inlined_call_operand.hbm [shape: f32[1,64], index: 16, kind: input, shape index: {}]
  %s17 = inlined_call_operand.vmem [shape: f32[64,32], index: 17, kind: input, shape index: {}]
  %s18 = inlined_call_operand.vmem [shape: f32[1,32], index: 18, kind: input, shape index: {}]
  %s19 = inlined_call_operand.vmem [shape: f32[1,32], index: 19, kind: input, shape index: {}]
  %s20 = inlined_call_operand.vmem [shape: f32[1,32], index: 20, kind: input, shape index: {}]
  %s21 = inlined_call_operand.hbm [shape: f32[2,8,32], index: 21, kind: output, shape index: {}]
  %s22 = sld [smem:[#allocation0]]
  $region181: #{tpu_custom_call.1} parent=0
    _
  %s24 = ssub.s32 1, %s22
  %s25 = scalar_select 0, %s24, %s22
  $region1: #{tpu_custom_call.1} parent=0
    #allocation5 [shape = 'u8[8192]{0}', space=vmem, size = 0x2000, scoped, tag = 'input window, operand 0']
    #allocation6 [shape = 's32[2]{0}', space=sflag, size = 0x8, scoped, tag = 'scoped memory for tpu_custom_call.1']
    #allocation7 [shape = 's32[2]{0}', space=sflag, size = 0x8, scoped, tag = 'scoped memory for tpu_custom_call.1']
    #allocation8 [shape = 'u8[8192]{0}', space=vmem, size = 0x2000, scoped, tag = 'input window, operand 1']
    #allocation9 [shape = 's32[2]{0}', space=sflag, size = 0x8, scoped, tag = 'scoped memory for tpu_custom_call.1']
    #allocation10 [shape = 'u8[1024]{0}', space=vmem, size = 0x400, scoped, tag = 'input window, operand 2']
    #allocation11 [shape = 'u8[512]{0}', space=vmem, size = 0x400, scoped, tag = 'input window, operand 5, single buffered']
    #allocation12 [shape = 's32[1]{0}', space=sflag, size = 0x4, scoped, tag = 'scoped memory for tpu_custom_call.1']
    #allocation13 [shape = 'u8[512]{0}', space=vmem, size = 0x400, scoped, tag = 'input window, operand 6, single buffered']
    #allocation14 [shape = 'u8[16384]{0}', space=vmem, size = 0x4000, scoped, tag = 'input window, operand 7, single buffered']
    #allocation15 [shape = 's32[1]{0}', space=sflag, size = 0x4, scoped, tag = 'scoped memory for tpu_custom_call.1']
    #allocation16 [shape = 'u8[512]{0}', space=vmem, size = 0x400, scoped, tag = 'input window, operand 8, single buffered']
    #allocation17 [shape = 'u8[512]{0}', space=vmem, size = 0x400, scoped, tag = 'input window, operand 10, single buffered']
    #allocation18 [shape = 's32[1]{0}', space=sflag, size = 0x4, scoped, tag = 'scoped memory for tpu_custom_call.1']
    #allocation19 [shape = 'u8[16384]{0}', space=vmem, size = 0x4000, scoped, tag = 'input window, operand 11, single buffered']
    #allocation20 [shape = 'u8[512]{0}', space=vmem, size = 0x400, scoped, tag = 'input window, operand 12, single buffered']
    #allocation21 [shape = 's32[1]{0}', space=sflag, size = 0x4, scoped, tag = 'scoped memory for tpu_custom_call.1']
    #allocation22 [shape = 'u8[512]{0}', space=vmem, size = 0x400, scoped, tag = 'input window, operand 13, single buffered']
    #allocation23 [shape = 'u8[512]{0}', space=vmem, size = 0x400, scoped, tag = 'input window, operand 14, single buffered']
    #allocation24 [shape = 's32[1]{0}', space=sflag, size = 0x4, scoped, tag = 'scoped memory for tpu_custom_call.1']
    #allocation25 [shape = 'u8[16384]{0}', space=vmem, size = 0x4000, scoped, tag = 'input window, operand 15, single buffered']
    #allocation26 [shape = 'u8[512]{0}', space=vmem, size = 0x400, scoped, tag = 'input window, operand 16, single buffered']
    #allocation27 [shape = 's32[1]{0}', space=sflag, size = 0x4, scoped, tag = 'scoped memory for tpu_custom_call.1']
    #allocation28 [shape = 'u8[8192]{0}', space=vmem, size = 0x2000, scoped, tag = 'output window, operand 0']
    %26 = vsyncpa [#allocation6], 0
    %s27 = scalar_lea.sflag [#allocation6], 1
    %28 = vsyncpa %s27, 0
    %29 = vsyncpa [#allocation9], 0
    %s30 = scalar_lea.sflag [#allocation9], 1
    %31 = vsyncpa %s30, 0
    %32 = vsyncpa [#allocation12], 0
    %33 = vsyncpa [#allocation15], 0
    %34 = vsyncpa [#allocation18], 0
    %35 = vsyncpa [#allocation21], 0
    %36 = vsyncpa [#allocation24], 0
    %37 = vsyncpa [#allocation27], 0
    %38 = vsyncpa [#allocation7], 0
    %s39 = scalar_lea.sflag [#allocation7], 1
    %40 = vsyncpa %s39, 0
    loop: start=0, step=1, limit=4
    $region2: #{tpu_custom_call.1} parent=1 // loop_pre_header
      _
    $region3: #{tpu_custom_call.1} parent=1 // loop_header
      %s42 = sphi 0, %s46
      %p43 = scmp.ge.s32.totalorder %s42, 4
      %s49 = sphi 0, %s61
      %s50 = sphi 0, %s57
      %s51 = sphi 0, %s49
      %s52 = sphi 0, %s50
      %s53 = sphi 0, %s51
      %s54 = sphi 0, %s52
      %s64 = sphi 0, %s66
      %s67 = sphi 0, %s64
      %s68 = sphi 0, %s67
      %s84 = sphi 0, %s68
      %s92 = sphi 0, %s94
      %s95 = sphi 0, %s92
      %s96 = sphi 0, %s95
      %s112 = sphi 0, %s96
      %s120 = sphi 0, %s122
      %s123 = sphi 0, %s120
      %s124 = sphi 0, %s123
      %s140 = sphi 0, %s124
      %s148 = sphi 0, %s150
      %s151 = sphi 0, %s148
      %s152 = sphi 0, %s151
      %s168 = sphi 0, %s152
      %s172 = sphi 0, %s172
      %s174 = sphi 0, %s172
      %s175 = sphi 0, %s174
      %s189 = sphi 0, %s175
      %s193 = sphi 0, %s193
      %s195 = sphi 0, %s193
      %s196 = sphi 0, %s195
      %s210 = sphi 0, %s196
      %s214 = sphi 0, %s214
      %s216 = sphi 0, %s214
      %s217 = sphi 0, %s216
      %s231 = sphi 0, %s217
      %s235 = sphi 0, %s235
      %s237 = sphi 0, %s235
      %s238 = sphi 0, %s237
      %s252 = sphi 0, %s238
      %s256 = sphi 0, %s256
      %s258 = sphi 0, %s256
      %s259 = sphi 0, %s258
      %s273 = sphi 0, %s259
      %s277 = sphi 0, %s277
      %s279 = sphi 0, %s277
      %s280 = sphi 0, %s279
      %s294 = sphi 0, %s280
      %s298 = sphi 0, %s298
      %s300 = sphi 0, %s298
      %s301 = sphi 0, %s300
      %s315 = sphi 0, %s301
      %s319 = sphi 0, %s319
      %s321 = sphi 0, %s319
      %s322 = sphi 0, %s321
      %s336 = sphi 0, %s322
      %s340 = sphi 0, %s340
      %s342 = sphi 0, %s340
      %s343 = sphi 0, %s342
      %s357 = sphi 0, %s343
      %s361 = sphi 0, %s361
      %s363 = sphi 0, %s361
      %s364 = sphi 0, %s363
      %s378 = sphi 0, %s364
      %s382 = sphi 0, %s382
      %s384 = sphi 0, %s382
      %s385 = sphi 0, %s384
      %s399 = sphi 0, %s385
      %s403 = sphi 0, %s403
      %s405 = sphi 0, %s403
      %s406 = sphi 0, %s405
      %s420 = sphi 0, %s406
      %s424 = sphi 0, %s424
      %s426 = sphi 0, %s424
      %s427 = sphi 0, %s426
      %s441 = sphi 0, %s427
      %s445 = sphi 0, %s445
      %s447 = sphi 0, %s445
      %s448 = sphi 0, %s447
      %s462 = sphi 0, %s448
      %s466 = sphi 0, %s466
      %s468 = sphi 0, %s466
      %s469 = sphi 0, %s468
      %s483 = sphi 0, %s469
      %s487 = sphi 0, %s487
      %s489 = sphi 0, %s487
      %s490 = sphi 0, %s489
      %s504 = sphi 0, %s490
      %s508 = sphi 0, %s508
      %s510 = sphi 0, %s508
      %s511 = sphi 0, %s510
      %s525 = sphi 0, %s511
      %s531 = sphi 0, %s533
      %s534 = sphi 0, %s531
      %s535 = sphi 0, %s534
      %s551 = sphi 0, %s535
    $region4: #{tpu_custom_call.1} parent=1 // loop_header_branch
      %45 = sbr.rel (%p43) target = $region8
    $region5: #{tpu_custom_call.1} parent=1 // loop_body
      %s47 = ssub.s32 %s42, 1
      %s48 = ssub.s32 %s42, 2
      %s55 = sadd.s32 1, %s50
      %p56 = scmp.ge.s32.totalorder %s55, 1
      %s57 = scalar_select %p56, 0, %s55
      %s58 = sadd.s32 1, %s49
      %s59 = scalar_select %p56, %s58, %s49
      %p60 = scmp.ge.s32.totalorder %s59, 2
      %s61 = scalar_select %p60, 0, %s59
      %s62 = ssub.s32 %s49, %s61
      %p63 = scmp.eq.s32.totalorder %s62, 0
      %s65 = sadd.s32 %s64, 1
      %s66 = scalar_select %p63, %s64, %s65
      %p69 = pneg %p63
      %p70 = scmp.eq.s32.totalorder %s42, 1
      %p71 = por %p69, %p70
      %p72 = scmp.ne.s32.totalorder %s64, %s67
      %p73 = scmp.eq.s32.totalorder %s42, 0
      %p74 = por %p72, %p73
      %p75 = scmp.ne.s32.totalorder %s64, %s67
      %p76 = scmp.eq.s32.totalorder %s47, 1
      %p77 = por %p75, %p76
      %p78 = scmp.ne.s32.totalorder %s67, %s68
      %p79 = scmp.eq.s32.totalorder %s47, 0
      %p80 = por %p78, %p79
      %p81 = scmp.ne.s32.totalorder %s67, %s68
      %p82 = scmp.eq.s32.totalorder %s48, 1
      %p83 = por %p81, %p82
      %p85 = scmp.ne.s32.totalorder %s68, %s84
      %p86 = scmp.eq.s32.totalorder %s48, 0
      %p87 = por %p85, %p86
      %s88 = ssub.s32 %s49, %s61
      %s89 = ssub.s32 %s50, %s57
      %s90 = sor.u32 %s88, %s89
      %p91 = scmp.eq.s32.totalorder %s90, 0
      %s93 = sadd.s32 %s92, 1
      %s94 = scalar_select %p91, %s92, %s93
      %p97 = pneg %p91
      %p98 = scmp.eq.s32.totalorder %s42, 1
      %p99 = por %p97, %p98
      %p100 = scmp.ne.s32.totalorder %s92, %s95
      %p101 = scmp.eq.s32.totalorder %s42, 0
      %p102 = por %p100, %p101
      %p103 = scmp.ne.s32.totalorder %s92, %s95
      %p104 = scmp.eq.s32.totalorder %s47, 1
      %p105 = por %p103, %p104
      %p106 = scmp.ne.s32.totalorder %s95, %s96
      %p107 = scmp.eq.s32.totalorder %s47, 0
      %p108 = por %p106, %p107
      %p109 = scmp.ne.s32.totalorder %s95, %s96
      %p110 = scmp.eq.s32.totalorder %s48, 1
      %p111 = por %p109, %p110
      %p113 = scmp.ne.s32.totalorder %s96, %s112
      %p114 = scmp.eq.s32.totalorder %s48, 0
      %p115 = por %p113, %p114
      %s116 = ssub.s32 %s49, %s61
      %s117 = ssub.s32 %s50, %s57
      %s118 = sor.u32 %s116, %s117
      %p119 = scmp.eq.s32.totalorder %s118, 0
      %s121 = sadd.s32 %s120, 1
      %s122 = scalar_select %p119, %s120, %s121
      %p125 = pneg %p119
      %p126 = scmp.eq.s32.totalorder %s42, 1
      %p127 = por %p125, %p126
      %p128 = scmp.ne.s32.totalorder %s120, %s123
      %p129 = scmp.eq.s32.totalorder %s42, 0
      %p130 = por %p128, %p129
      %p131 = scmp.ne.s32.totalorder %s120, %s123
      %p132 = scmp.eq.s32.totalorder %s47, 1
      %p133 = por %p131, %p132
      %p134 = scmp.ne.s32.totalorder %s123, %s124
      %p135 = scmp.eq.s32.totalorder %s47, 0
      %p136 = por %p134, %p135
      %p137 = scmp.ne.s32.totalorder %s123, %s124
      %p138 = scmp.eq.s32.totalorder %s48, 1
      %p139 = por %p137, %p138
      %p141 = scmp.ne.s32.totalorder %s124, %s140
      %p142 = scmp.eq.s32.totalorder %s48, 0
      %p143 = por %p141, %p142
      %s144 = ssub.s32 %s49, %s61
      %s145 = ssub.s32 %s50, %s57
      %s146 = sor.u32 %s144, %s145
      %p147 = scmp.eq.s32.totalorder %s146, 0
      %s149 = sadd.s32 %s148, 1
      %s150 = scalar_select %p147, %s148, %s149
      %p153 = pneg %p147
      %p154 = scmp.eq.s32.totalorder %s42, 1
      %p155 = por %p153, %p154
      %p156 = scmp.ne.s32.totalorder %s148, %s151
      %p157 = scmp.eq.s32.totalorder %s42, 0
      %p158 = por %p156, %p157
      %p159 = scmp.ne.s32.totalorder %s148, %s151
      %p160 = scmp.eq.s32.totalorder %s47, 1
      %p161 = por %p159, %p160
      %p162 = scmp.ne.s32.totalorder %s151, %s152
      %p163 = scmp.eq.s32.totalorder %s47, 0
      %p164 = por %p162, %p163
      %p165 = scmp.ne.s32.totalorder %s151, %s152
      %p166 = scmp.eq.s32.totalorder %s48, 1
      %p167 = por %p165, %p166
      %p169 = scmp.ne.s32.totalorder %s152, %s168
      %p170 = scmp.eq.s32.totalorder %s48, 0
      %p171 = por %p169, %p170
      %s173 = sadd.s32 %s172, 1
      %p176 = scmp.eq.s32.totalorder %s42, 1
      %p177 = scmp.ne.s32.totalorder %s172, %s174
      %p178 = scmp.eq.s32.totalorder %s42, 0
      %p179 = por %p177, %p178
      %p180 = scmp.ne.s32.totalorder %s172, %s174
      %p181 = scmp.eq.s32.totalorder %s47, 1
      %p182 = por %p180, %p181
      %p183 = scmp.ne.s32.totalorder %s174, %s175
      %p184 = scmp.eq.s32.totalorder %s47, 0
      %p185 = por %p183, %p184
      %p186 = scmp.ne.s32.totalorder %s174, %s175
      %p187 = scmp.eq.s32.totalorder %s48, 1
      %p188 = por %p186, %p187
      %p190 = scmp.ne.s32.totalorder %s175, %s189
      %p191 = scmp.eq.s32.totalorder %s48, 0
      %p192 = por %p190, %p191
      %s194 = sadd.s32 %s193, 1
      %p197 = scmp.eq.s32.totalorder %s42, 1
      %p198 = scmp.ne.s32.totalorder %s193, %s195
      %p199 = scmp.eq.s32.totalorder %s42, 0
      %p200 = por %p198, %p199
      %p201 = scmp.ne.s32.totalorder %s193, %s195
      %p202 = scmp.eq.s32.totalorder %s47, 1
      %p203 = por %p201, %p202
      %p204 = scmp.ne.s32.totalorder %s195, %s196
      %p205 = scmp.eq.s32.totalorder %s47, 0
      %p206 = por %p204, %p205
      %p207 = scmp.ne.s32.totalorder %s195, %s196
      %p208 = scmp.eq.s32.totalorder %s48, 1
      %p209 = por %p207, %p208
      %p211 = scmp.ne.s32.totalorder %s196, %s210
      %p212 = scmp.eq.s32.totalorder %s48, 0
      %p213 = por %p211, %p212
      %s215 = sadd.s32 %s214, 1
      %p218 = scmp.eq.s32.totalorder %s42, 1
      %p219 = scmp.ne.s32.totalorder %s214, %s216
      %p220 = scmp.eq.s32.totalorder %s42, 0
      %p221 = por %p219, %p220
      %p222 = scmp.ne.s32.totalorder %s214, %s216
      %p223 = scmp.eq.s32.totalorder %s47, 1
      %p224 = por %p222, %p223
      %p225 = scmp.ne.s32.totalorder %s216, %s217
      %p226 = scmp.eq.s32.totalorder %s47, 0
      %p227 = por %p225, %p226
      %p228 = scmp.ne.s32.totalorder %s216, %s217
      %p229 = scmp.eq.s32.totalorder %s48, 1
      %p230 = por %p228, %p229
      %p232 = scmp.ne.s32.totalorder %s217, %s231
      %p233 = scmp.eq.s32.totalorder %s48, 0
      %p234 = por %p232, %p233
      %s236 = sadd.s32 %s235, 1
      %p239 = scmp.eq.s32.totalorder %s42, 1
      %p240 = scmp.ne.s32.totalorder %s235, %s237
      %p241 = scmp.eq.s32.totalorder %s42, 0
      %p242 = por %p240, %p241
      %p243 = scmp.ne.s32.totalorder %s235, %s237
      %p244 = scmp.eq.s32.totalorder %s47, 1
      %p245 = por %p243, %p244
      %p246 = scmp.ne.s32.totalorder %s237, %s238
      %p247 = scmp.eq.s32.totalorder %s47, 0
      %p248 = por %p246, %p247
      %p249 = scmp.ne.s32.totalorder %s237, %s238
      %p250 = scmp.eq.s32.totalorder %s48, 1
      %p251 = por %p249, %p250
      %p253 = scmp.ne.s32.totalorder %s238, %s252
      %p254 = scmp.eq.s32.totalorder %s48, 0
      %p255 = por %p253, %p254
      %s257 = sadd.s32 %s256, 1
      %p260 = scmp.eq.s32.totalorder %s42, 1
      %p261 = scmp.ne.s32.totalorder %s256, %s258
      %p262 = scmp.eq.s32.totalorder %s42, 0
      %p263 = por %p261, %p262
      %p264 = scmp.ne.s32.totalorder %s256, %s258
      %p265 = scmp.eq.s32.totalorder %s47, 1
      %p266 = por %p264, %p265
      %p267 = scmp.ne.s32.totalorder %s258, %s259
      %p268 = scmp.eq.s32.totalorder %s47, 0
      %p269 = por %p267, %p268
      %p270 = scmp.ne.s32.totalorder %s258, %s259
      %p271 = scmp.eq.s32.totalorder %s48, 1
      %p272 = por %p270, %p271
      %p274 = scmp.ne.s32.totalorder %s259, %s273
      %p275 = scmp.eq.s32.totalorder %s48, 0
      %p276 = por %p274, %p275
      %s278 = sadd.s32 %s277, 1
      %p281 = scmp.eq.s32.totalorder %s42, 1
      %p282 = scmp.ne.s32.totalorder %s277, %s279
      %p283 = scmp.eq.s32.totalorder %s42, 0
      %p284 = por %p282, %p283
      %p285 = scmp.ne.s32.totalorder %s277, %s279
      %p286 = scmp.eq.s32.totalorder %s47, 1
      %p287 = por %p285, %p286
      %p288 = scmp.ne.s32.totalorder %s279, %s280
      %p289 = scmp.eq.s32.totalorder %s47, 0
      %p290 = por %p288, %p289
      %p291 = scmp.ne.s32.totalorder %s279, %s280
      %p292 = scmp.eq.s32.totalorder %s48, 1
      %p293 = por %p291, %p292
      %p295 = scmp.ne.s32.totalorder %s280, %s294
      %p296 = scmp.eq.s32.totalorder %s48, 0
      %p297 = por %p295, %p296
      %s299 = sadd.s32 %s298, 1
      %p302 = scmp.eq.s32.totalorder %s42, 1
      %p303 = scmp.ne.s32.totalorder %s298, %s300
      %p304 = scmp.eq.s32.totalorder %s42, 0
      %p305 = por %p303, %p304
      %p306 = scmp.ne.s32.totalorder %s298, %s300
      %p307 = scmp.eq.s32.totalorder %s47, 1
      %p308 = por %p306, %p307
      %p309 = scmp.ne.s32.totalorder %s300, %s301
      %p310 = scmp.eq.s32.totalorder %s47, 0
      %p311 = por %p309, %p310
      %p312 = scmp.ne.s32.totalorder %s300, %s301
      %p313 = scmp.eq.s32.totalorder %s48, 1
      %p314 = por %p312, %p313
      %p316 = scmp.ne.s32.totalorder %s301, %s315
      %p317 = scmp.eq.s32.totalorder %s48, 0
      %p318 = por %p316, %p317
      %s320 = sadd.s32 %s319, 1
      %p323 = scmp.eq.s32.totalorder %s42, 1
      %p324 = scmp.ne.s32.totalorder %s319, %s321
      %p325 = scmp.eq.s32.totalorder %s42, 0
      %p326 = por %p324, %p325
      %p327 = scmp.ne.s32.totalorder %s319, %s321
      %p328 = scmp.eq.s32.totalorder %s47, 1
      %p329 = por %p327, %p328
      %p330 = scmp.ne.s32.totalorder %s321, %s322
      %p331 = scmp.eq.s32.totalorder %s47, 0
      %p332 = por %p330, %p331
      %p333 = scmp.ne.s32.totalorder %s321, %s322
      %p334 = scmp.eq.s32.totalorder %s48, 1
      %p335 = por %p333, %p334
      %p337 = scmp.ne.s32.totalorder %s322, %s336
      %p338 = scmp.eq.s32.totalorder %s48, 0
      %p339 = por %p337, %p338
      %s341 = sadd.s32 %s340, 1
      %p344 = scmp.eq.s32.totalorder %s42, 1
      %p345 = scmp.ne.s32.totalorder %s340, %s342
      %p346 = scmp.eq.s32.totalorder %s42, 0
      %p347 = por %p345, %p346
      %p348 = scmp.ne.s32.totalorder %s340, %s342
      %p349 = scmp.eq.s32.totalorder %s47, 1
      %p350 = por %p348, %p349
      %p351 = scmp.ne.s32.totalorder %s342, %s343
      %p352 = scmp.eq.s32.totalorder %s47, 0
      %p353 = por %p351, %p352
      %p354 = scmp.ne.s32.totalorder %s342, %s343
      %p355 = scmp.eq.s32.totalorder %s48, 1
      %p356 = por %p354, %p355
      %p358 = scmp.ne.s32.totalorder %s343, %s357
      %p359 = scmp.eq.s32.totalorder %s48, 0
      %p360 = por %p358, %p359
      %s362 = sadd.s32 %s361, 1
      %p365 = scmp.eq.s32.totalorder %s42, 1
      %p366 = scmp.ne.s32.totalorder %s361, %s363
      %p367 = scmp.eq.s32.totalorder %s42, 0
      %p368 = por %p366, %p367
      %p369 = scmp.ne.s32.totalorder %s361, %s363
      %p370 = scmp.eq.s32.totalorder %s47, 1
      %p371 = por %p369, %p370
      %p372 = scmp.ne.s32.totalorder %s363, %s364
      %p373 = scmp.eq.s32.totalorder %s47, 0
      %p374 = por %p372, %p373
      %p375 = scmp.ne.s32.totalorder %s363, %s364
      %p376 = scmp.eq.s32.totalorder %s48, 1
      %p377 = por %p375, %p376
      %p379 = scmp.ne.s32.totalorder %s364, %s378
      %p380 = scmp.eq.s32.totalorder %s48, 0
      %p381 = por %p379, %p380
      %s383 = sadd.s32 %s382, 1
      %p386 = scmp.eq.s32.totalorder %s42, 1
      %p387 = scmp.ne.s32.totalorder %s382, %s384
      %p388 = scmp.eq.s32.totalorder %s42, 0
      %p389 = por %p387, %p388
      %p390 = scmp.ne.s32.totalorder %s382, %s384
      %p391 = scmp.eq.s32.totalorder %s47, 1
      %p392 = por %p390, %p391
      %p393 = scmp.ne.s32.totalorder %s384, %s385
      %p394 = scmp.eq.s32.totalorder %s47, 0
      %p395 = por %p393, %p394
      %p396 = scmp.ne.s32.totalorder %s384, %s385
      %p397 = scmp.eq.s32.totalorder %s48, 1
      %p398 = por %p396, %p397
      %p400 = scmp.ne.s32.totalorder %s385, %s399
      %p401 = scmp.eq.s32.totalorder %s48, 0
      %p402 = por %p400, %p401
      %s404 = sadd.s32 %s403, 1
      %p407 = scmp.eq.s32.totalorder %s42, 1
      %p408 = scmp.ne.s32.totalorder %s403, %s405
      %p409 = scmp.eq.s32.totalorder %s42, 0
      %p410 = por %p408, %p409
      %p411 = scmp.ne.s32.totalorder %s403, %s405
      %p412 = scmp.eq.s32.totalorder %s47, 1
      %p413 = por %p411, %p412
      %p414 = scmp.ne.s32.totalorder %s405, %s406
      %p415 = scmp.eq.s32.totalorder %s47, 0
      %p416 = por %p414, %p415
      %p417 = scmp.ne.s32.totalorder %s405, %s406
      %p418 = scmp.eq.s32.totalorder %s48, 1
      %p419 = por %p417, %p418
      %p421 = scmp.ne.s32.totalorder %s406, %s420
      %p422 = scmp.eq.s32.totalorder %s48, 0
      %p423 = por %p421, %p422
      %s425 = sadd.s32 %s424, 1
      %p428 = scmp.eq.s32.totalorder %s42, 1
      %p429 = scmp.ne.s32.totalorder %s424, %s426
      %p430 = scmp.eq.s32.totalorder %s42, 0
      %p431 = por %p429, %p430
      %p432 = scmp.ne.s32.totalorder %s424, %s426
      %p433 = scmp.eq.s32.totalorder %s47, 1
      %p434 = por %p432, %p433
      %p435 = scmp.ne.s32.totalorder %s426, %s427
      %p436 = scmp.eq.s32.totalorder %s47, 0
      %p437 = por %p435, %p436
      %p438 = scmp.ne.s32.totalorder %s426, %s427
      %p439 = scmp.eq.s32.totalorder %s48, 1
      %p440 = por %p438, %p439
      %p442 = scmp.ne.s32.totalorder %s427, %s441
      %p443 = scmp.eq.s32.totalorder %s48, 0
      %p444 = por %p442, %p443
      %s446 = sadd.s32 %s445, 1
      %p449 = scmp.eq.s32.totalorder %s42, 1
      %p450 = scmp.ne.s32.totalorder %s445, %s447
      %p451 = scmp.eq.s32.totalorder %s42, 0
      %p452 = por %p450, %p451
      %p453 = scmp.ne.s32.totalorder %s445, %s447
      %p454 = scmp.eq.s32.totalorder %s47, 1
      %p455 = por %p453, %p454
      %p456 = scmp.ne.s32.totalorder %s447, %s448
      %p457 = scmp.eq.s32.totalorder %s47, 0
      %p458 = por %p456, %p457
      %p459 = scmp.ne.s32.totalorder %s447, %s448
      %p460 = scmp.eq.s32.totalorder %s48, 1
      %p461 = por %p459, %p460
      %p463 = scmp.ne.s32.totalorder %s448, %s462
      %p464 = scmp.eq.s32.totalorder %s48, 0
      %p465 = por %p463, %p464
      %s467 = sadd.s32 %s466, 1
      %p470 = scmp.eq.s32.totalorder %s42, 1
      %p471 = scmp.ne.s32.totalorder %s466, %s468
      %p472 = scmp.eq.s32.totalorder %s42, 0
      %p473 = por %p471, %p472
      %p474 = scmp.ne.s32.totalorder %s466, %s468
      %p475 = scmp.eq.s32.totalorder %s47, 1
      %p476 = por %p474, %p475
      %p477 = scmp.ne.s32.totalorder %s468, %s469
      %p478 = scmp.eq.s32.totalorder %s47, 0
      %p479 = por %p477, %p478
      %p480 = scmp.ne.s32.totalorder %s468, %s469
      %p481 = scmp.eq.s32.totalorder %s48, 1
      %p482 = por %p480, %p481
      %p484 = scmp.ne.s32.totalorder %s469, %s483
      %p485 = scmp.eq.s32.totalorder %s48, 0
      %p486 = por %p484, %p485
      %s488 = sadd.s32 %s487, 1
      %p491 = scmp.eq.s32.totalorder %s42, 1
      %p492 = scmp.ne.s32.totalorder %s487, %s489
      %p493 = scmp.eq.s32.totalorder %s42, 0
      %p494 = por %p492, %p493
      %p495 = scmp.ne.s32.totalorder %s487, %s489
      %p496 = scmp.eq.s32.totalorder %s47, 1
      %p497 = por %p495, %p496
      %p498 = scmp.ne.s32.totalorder %s489, %s490
      %p499 = scmp.eq.s32.totalorder %s47, 0
      %p500 = por %p498, %p499
      %p501 = scmp.ne.s32.totalorder %s489, %s490
      %p502 = scmp.eq.s32.totalorder %s48, 1
      %p503 = por %p501, %p502
      %p505 = scmp.ne.s32.totalorder %s490, %s504
      %p506 = scmp.eq.s32.totalorder %s48, 0
      %p507 = por %p505, %p506
      %s509 = sadd.s32 %s508, 1
      %p512 = scmp.eq.s32.totalorder %s42, 1
      %p513 = scmp.ne.s32.totalorder %s508, %s510
      %p514 = scmp.eq.s32.totalorder %s42, 0
      %p515 = por %p513, %p514
      %p516 = scmp.ne.s32.totalorder %s508, %s510
      %p517 = scmp.eq.s32.totalorder %s47, 1
      %p518 = por %p516, %p517
      %p519 = scmp.ne.s32.totalorder %s510, %s511
      %p520 = scmp.eq.s32.totalorder %s47, 0
      %p521 = por %p519, %p520
      %p522 = scmp.ne.s32.totalorder %s510, %s511
      %p523 = scmp.eq.s32.totalorder %s48, 1
      %p524 = por %p522, %p523
      %p526 = scmp.ne.s32.totalorder %s511, %s525
      %p527 = scmp.eq.s32.totalorder %s48, 0
      %p528 = por %p526, %p527
      %s529 = ssub.s32 %s49, %s61
      %p530 = scmp.eq.s32.totalorder %s529, 0
      %s532 = sadd.s32 %s531, 1
      %s533 = scalar_select %p530, %s531, %s532
      %p536 = pneg %p530
      %p537 = scmp.eq.s32.totalorder %s42, 1
      %p538 = por %p536, %p537
      %p539 = scmp.ne.s32.totalorder %s531, %s534
      %p540 = scmp.eq.s32.totalorder %s42, 0
      %p541 = por %p539, %p540
      %p542 = scmp.ne.s32.totalorder %s531, %s534
      %p543 = scmp.eq.s32.totalorder %s47, 1
      %p544 = por %p542, %p543
      %p545 = scmp.ne.s32.totalorder %s534, %s535
      %p546 = scmp.eq.s32.totalorder %s47, 0
      %p547 = por %p545, %p546
      %p548 = scmp.ne.s32.totalorder %s534, %s535
      %p549 = scmp.eq.s32.totalorder %s48, 1
      %p550 = por %p548, %p549
      %p552 = scmp.ne.s32.totalorder %s535, %s551
      %p553 = scmp.eq.s32.totalorder %s48, 0
      %p554 = por %p552, %p553
      %p555 = scmp.le.s32.totalorder 1, %s42
      %p556 = scmp.lt.s32.totalorder %s42, 3
      %p557 = pnand %p555, %p556
      %p558 = pneg %p557
      // Predicated region
      $region9: #{tpu_custom_call.1} parent=5 // pred_check
        _
      $region10: #{tpu_custom_call.1} parent=5 // pred_check_branch
        %560 = sbr.rel (%p557) target = $region12
      $region11: #{tpu_custom_call.1} parent=5 // pred_region
        %s561 = ssub.s32 %s42, 1
        // Predicated region
        $region13: #{tpu_custom_call.1} parent=11 // pred_check
          %p562 = pneg %p185
        $region14: #{tpu_custom_call.1} parent=11 // pred_check_branch
          %564 = sbr.rel (%p562) target = $region16
        $region15: #{tpu_custom_call.1} parent=11 // pred_region
          _
        $region16: #{tpu_custom_call.1} parent=11 // pred_fallthru
          _
        // Predicated region
        $region17: #{tpu_custom_call.1} parent=11 // pred_check
          %p565 = pneg %p206
        $region18: #{tpu_custom_call.1} parent=11 // pred_check_branch
          %567 = sbr.rel (%p565) target = $region20
        $region19: #{tpu_custom_call.1} parent=11 // pred_region
          %s569 = ssub.s32 16, 16
          %570 = vsyncadd [#allocation12], %s569
          %s572 = sshll.u32 [#allocation11], 4
          %s573 = int_to_ptr.vmem [resolvable:$true] %s572
          %575 = dma.hbm_to_vmem [thread:$0]  %s5, 16, %s573, [#allocation12]
        $region20: #{tpu_custom_call.1} parent=11 // pred_fallthru
          _
        // Predicated region
        $region21: #{tpu_custom_call.1} parent=11 // pred_check
          %p576 = pneg %p227
        $region22: #{tpu_custom_call.1} parent=11 // pred_check_branch
          %578 = sbr.rel (%p576) target = $region24
        $region23: #{tpu_custom_call.1} parent=11 // pred_region
          %s580 = ssub.s32 16, 16
          %581 = vsyncadd [#allocation12], %s580
          %s583 = sshll.u32 [#allocation13], 4
          %s584 = int_to_ptr.vmem [resolvable:$true] %s583
          %586 = dma.hbm_to_vmem [thread:$0]  %s6, 16, %s584, [#allocation12]
        $region24: #{tpu_custom_call.1} parent=11 // pred_fallthru
          _
        // Predicated region
        $region25: #{tpu_custom_call.1} parent=11 // pred_check
          %p587 = pneg %p248
        $region26: #{tpu_custom_call.1} parent=11 // pred_check_branch
          %589 = sbr.rel (%p587) target = $region28
        $region27: #{tpu_custom_call.1} parent=11 // pred_region
          %s591 = ssub.s32 512, 512
          %592 = vsyncadd [#allocation15], %s591
          %s593 = sshll.u32 [#allocation14], 4
          %s594 = int_to_ptr.vmem [resolvable:$true] %s593
          %599 = dma.hbm_to_vmem [thread:$0]  %s7, 512, %s594, [#allocation15], 128, 128, 8
        $region28: #{tpu_custom_call.1} parent=11 // pred_fallthru
          _
        // Predicated region
        $region29: #{tpu_custom_call.1} parent=11 // pred_check
          %p600 = pneg %p269
        $region30: #{tpu_custom_call.1} parent=11 // pred_check_branch
          %602 = sbr.rel (%p600) target = $region32
        $region31: #{tpu_custom_call.1} parent=11 // pred_region
          %s604 = ssub.s32 16, 16
          %605 = vsyncadd [#allocation15], %s604
          %s607 = sshll.u32 [#allocation16], 4
          %s608 = int_to_ptr.vmem [resolvable:$true] %s607
          %610 = dma.hbm_to_vmem [thread:$0]  %s8, 16, %s608, [#allocation15]
        $region32: #{tpu_custom_call.1} parent=11 // pred_fallthru
          _
        // Predicated region
        $region33: #{tpu_custom_call.1} parent=11 // pred_check
          %p611 = pneg %p290
        $region34: #{tpu_custom_call.1} parent=11 // pred_check_branch
          %613 = sbr.rel (%p611) target = $region36
        $region35: #{tpu_custom_call.1} parent=11 // pred_region
          _
        $region36: #{tpu_custom_call.1} parent=11 // pred_fallthru
          _
        // Predicated region
        $region37: #{tpu_custom_call.1} parent=11 // pred_check
          %p614 = pneg %p311
        $region38: #{tpu_custom_call.1} parent=11 // pred_check_branch
          %616 = sbr.rel (%p614) target = $region40
        $region39: #{tpu_custom_call.1} parent=11 // pred_region
          %s618 = ssub.s32 16, 16
          %619 = vsyncadd [#allocation18], %s618
          %s621 = sshll.u32 [#allocation17], 4
          %s622 = int_to_ptr.vmem [resolvable:$true] %s621
          %624 = dma.hbm_to_vmem [thread:$0]  %s10, 16, %s622, [#allocation18]
        $region40: #{tpu_custom_call.1} parent=11 // pred_fallthru
          _
        // Predicated region
        $region41: #{tpu_custom_call.1} parent=11 // pred_check
          %p625 = pneg %p332
        $region42: #{tpu_custom_call.1} parent=11 // pred_check_branch
          %627 = sbr.rel (%p625) target = $region44
        $region43: #{tpu_custom_call.1} parent=11 // pred_region
          %s629 = ssub.s32 512, 512
          %630 = vsyncadd [#allocation18], %s629
          %s631 = sshll.u32 [#allocation19], 4
          %s632 = int_to_ptr.vmem [resolvable:$true] %s631
          %637 = dma.hbm_to_vmem [thread:$0]  %s11, 512, %s632, [#allocation18], 128, 128, 8
        $region44: #{tpu_custom_call.1} parent=11 // pred_fallthru
          _
        // Predicated region
        $region45: #{tpu_custom_call.1} parent=11 // pred_check
          %p638 = pneg %p353
        $region46: #{tpu_custom_call.1} parent=11 // pred_check_branch
          %640 = sbr.rel (%p638) target = $region48
        $region47: #{tpu_custom_call.1} parent=11 // pred_region
          %s642 = ssub.s32 16, 16
          %643 = vsyncadd [#allocation21], %s642
          %s645 = sshll.u32 [#allocation20], 4
          %s646 = int_to_ptr.vmem [resolvable:$true] %s645
          %648 = dma.hbm_to_vmem [thread:$0]  %s12, 16, %s646, [#allocation21]
        $region48: #{tpu_custom_call.1} parent=11 // pred_fallthru
          _
        // Predicated region
        $region49: #{tpu_custom_call.1} parent=11 // pred_check
          %p649 = pneg %p374
        $region50: #{tpu_custom_call.1} parent=11 // pred_check_branch
          %651 = sbr.rel (%p649) target = $region52
        $region51: #{tpu_custom_call.1} parent=11 // pred_region
          %s653 = ssub.s32 16, 16
          %654 = vsyncadd [#allocation21], %s653
          %s656 = sshll.u32 [#allocation22], 4
          %s657 = int_to_ptr.vmem [resolvable:$true] %s656
          %659 = dma.hbm_to_vmem [thread:$0]  %s13, 16, %s657, [#allocation21]
        $region52: #{tpu_custom_call.1} parent=11 // pred_fallthru
          _
        // Predicated region
        $region53: #{tpu_custom_call.1} parent=11 // pred_check
          %p660 = pneg %p395
        $region54: #{tpu_custom_call.1} parent=11 // pred_check_branch
          %662 = sbr.rel (%p660) target = $region56
        $region55: #{tpu_custom_call.1} parent=11 // pred_region
          %s664 = ssub.s32 16, 16
          %665 = vsyncadd [#allocation24], %s664
          %s667 = sshll.u32 [#allocation23], 4
          %s668 = int_to_ptr.vmem [resolvable:$true] %s667
          %670 = dma.hbm_to_vmem [thread:$0]  %s14, 16, %s668, [#allocation24]
        $region56: #{tpu_custom_call.1} parent=11 // pred_fallthru
          _
        // Predicated region
        $region57: #{tpu_custom_call.1} parent=11 // pred_check
          %p671 = pneg %p416
        $region58: #{tpu_custom_call.1} parent=11 // pred_check_branch
          %673 = sbr.rel (%p671) target = $region60
        $region59: #{tpu_custom_call.1} parent=11 // pred_region
          %s675 = ssub.s32 512, 512
          %676 = vsyncadd [#allocation24], %s675
          %s677 = sshll.u32 [#allocation25], 4
          %s678 = int_to_ptr.vmem [resolvable:$true] %s677
          %683 = dma.hbm_to_vmem [thread:$0]  %s15, 512, %s678, [#allocation24], 128, 128, 8
        $region60: #{tpu_custom_call.1} parent=11 // pred_fallthru
          _
        // Predicated region
        $region61: #{tpu_custom_call.1} parent=11 // pred_check
          %p684 = pneg %p437
        $region62: #{tpu_custom_call.1} parent=11 // pred_check_branch
          %686 = sbr.rel (%p684) target = $region64
        $region63: #{tpu_custom_call.1} parent=11 // pred_region
          %s688 = ssub.s32 16, 16
          %689 = vsyncadd [#allocation27], %s688
          %s691 = sshll.u32 [#allocation26], 4
          %s692 = int_to_ptr.vmem [resolvable:$true] %s691
          %694 = dma.hbm_to_vmem [thread:$0]  %s16, 16, %s692, [#allocation27]
        $region64: #{tpu_custom_call.1} parent=11 // pred_fallthru
          _
        // Predicated region
        $region65: #{tpu_custom_call.1} parent=11 // pred_check
          %p695 = pneg %p458
        $region66: #{tpu_custom_call.1} parent=11 // pred_check_branch
          %697 = sbr.rel (%p695) target = $region68
        $region67: #{tpu_custom_call.1} parent=11 // pred_region
          _
        $region68: #{tpu_custom_call.1} parent=11 // pred_fallthru
          _
        // Predicated region
        $region69: #{tpu_custom_call.1} parent=11 // pred_check
          %p698 = pneg %p479
        $region70: #{tpu_custom_call.1} parent=11 // pred_check_branch
          %700 = sbr.rel (%p698) target = $region72
        $region71: #{tpu_custom_call.1} parent=11 // pred_region
          _
        $region72: #{tpu_custom_call.1} parent=11 // pred_fallthru
          _
        // Predicated region
        $region73: #{tpu_custom_call.1} parent=11 // pred_check
          %p701 = pneg %p500
        $region74: #{tpu_custom_call.1} parent=11 // pred_check_branch
          %703 = sbr.rel (%p701) target = $region76
        $region75: #{tpu_custom_call.1} parent=11 // pred_region
          _
        $region76: #{tpu_custom_call.1} parent=11 // pred_fallthru
          _
        // Predicated region
        $region77: #{tpu_custom_call.1} parent=11 // pred_check
          %p704 = pneg %p521
        $region78: #{tpu_custom_call.1} parent=11 // pred_check_branch
          %706 = sbr.rel (%p704) target = $region80
        $region79: #{tpu_custom_call.1} parent=11 // pred_region
          _
        $region80: #{tpu_custom_call.1} parent=11 // pred_fallthru
          _
      $region12: #{tpu_custom_call.1} parent=5 // pred_fallthru
        _
      %p707 = scmp.lt.s32.totalorder %s42, 2
      // Predicated region
      $region81: #{tpu_custom_call.1} parent=5 // pred_check
        %p708 = pneg %p707
      $region82: #{tpu_custom_call.1} parent=5 // pred_check_branch
        %710 = sbr.rel (%p708) target = $region84
      $region83: #{tpu_custom_call.1} parent=5 // pred_region
        // Predicated region
        $region85: #{tpu_custom_call.1} parent=83 // pred_check
          %p711 = pneg %p74
        $region86: #{tpu_custom_call.1} parent=83 // pred_check_branch
          %713 = sbr.rel (%p711) target = $region88
        $region87: #{tpu_custom_call.1} parent=83 // pred_region
          %s714 = sand.u32 %s64, 1
          %s715 = scalar_lea.sflag [#allocation6], %s714
          %s716 = sand.u32 %s64, 1
          %s717 = smul.addr %s716, 8
          %s718 = scalar_lea.vmem [#allocation5], %s717
          %s720 = ssub.s32 128, 128
          %721 = vsyncadd %s715, %s720
          %s722 = smul.addr %s49, 128
          %s723 = scalar_lea.hbm %s0, %s722
          %s725 = sshll.u32 %s718, 4
          %s726 = int_to_ptr.vmem [resolvable:$true] %s725
          %728 = dma.hbm_to_vmem [thread:$0]  %s723, 128, %s726, %s715
        $region88: #{tpu_custom_call.1} parent=83 // pred_fallthru
          _
        // Predicated region
        $region89: #{tpu_custom_call.1} parent=83 // pred_check
          %p729 = pneg %p102
        $region90: #{tpu_custom_call.1} parent=83 // pred_check_branch
          %731 = sbr.rel (%p729) target = $region92
        $region91: #{tpu_custom_call.1} parent=83 // pred_region
          %s732 = sand.u32 %s42, 1
          %s733 = scalar_lea.sflag [#allocation9], %s732
          %s734 = sand.u32 %s92, 1
          %s735 = smul.addr %s734, 8
          %s736 = scalar_lea.vmem [#allocation8], %s735
          %s738 = ssub.s32 128, 128
          %739 = vsyncadd %s733, %s738
          %s740 = sadd.s32 %s50, %s49
          %s741 = smul.addr %s740, 128
          %s742 = scalar_lea.hbm %s1, %s741
          %s744 = sshll.u32 %s736, 4
          %s745 = int_to_ptr.vmem [resolvable:$true] %s744
          %747 = dma.hbm_to_vmem [thread:$0]  %s742, 128, %s745, %s733
        $region92: #{tpu_custom_call.1} parent=83 // pred_fallthru
          _
        // Predicated region
        $region93: #{tpu_custom_call.1} parent=83 // pred_check
          %p748 = pneg %p130
        $region94: #{tpu_custom_call.1} parent=83 // pred_check_branch
          %750 = sbr.rel (%p748) target = $region96
        $region95: #{tpu_custom_call.1} parent=83 // pred_region
          %s751 = sand.u32 %s42, 1
          %s752 = scalar_lea.sflag [#allocation9], %s751
          %s753 = sand.u32 %s120, 1
          %s754 = scalar_lea.vmem [#allocation10], %s753
          %s756 = ssub.s32 16, 16
          %757 = vsyncadd %s752, %s756
          %s758 = sadd.s32 %s50, %s49
          %s759 = smul.addr %s758, 16
          %s760 = scalar_lea.hbm %s2, %s759
          %s762 = sshll.u32 %s754, 4
          %s763 = int_to_ptr.vmem [resolvable:$true] %s762
          %765 = dma.hbm_to_vmem [thread:$0]  %s760, 16, %s763, %s752
        $region96: #{tpu_custom_call.1} parent=83 // pred_fallthru
          _
        // Predicated region
        $region97: #{tpu_custom_call.1} parent=83 // pred_check
          %p766 = pneg %p158
        $region98: #{tpu_custom_call.1} parent=83 // pred_check_branch
          %768 = sbr.rel (%p766) target = $region100
        $region99: #{tpu_custom_call.1} parent=83 // pred_region
          %p769 = scmp.lt.s32.totalorder %s49, 1
          %s770 = scalar_select %p769, %s49, 1
          %p771 = scmp.lt.s32.totalorder %s50, 0
          %s772 = scalar_select %p771, %s50, 0
          %s773 = smul.addr %s770, 4
          %s774 = sadd.s32 %s772, %s773
          %s775 = smul.addr %s774, 8
          %s776 = scalar_lea.vmem %s3, %s775
        $region100: #{tpu_custom_call.1} parent=83 // pred_fallthru
          _
      $region84: #{tpu_custom_call.1} parent=5 // pred_fallthru
        _
      %p777 = scmp.le.s32.totalorder 1, %s42
      %p778 = scmp.lt.s32.totalorder %s42, 3
      %p779 = pnand %p777, %p778
      %p780 = pneg %p779
      // Predicated region
      $region101: #{tpu_custom_call.1} parent=5 // pred_check
        _
      $region102: #{tpu_custom_call.1} parent=5 // pred_check_branch
        %782 = sbr.rel (%p779) target = $region104
      $region103: #{tpu_custom_call.1} parent=5 // pred_region
        %s783 = ssub.s32 %s42, 1
        %s784 = sand.u32 %s67, 1
        %s785 = scalar_lea.sflag [#allocation6], %s784
        %s786 = sand.u32 %s67, 1
        %s787 = smul.addr %s786, 8
        %s788 = scalar_lea.vmem [#allocation5], %s787
        // Predicated region
        $region105: #{tpu_custom_call.1} parent=103 // pred_check
          %p789 = pneg %p80
        $region106: #{tpu_custom_call.1} parent=103 // pred_check_branch
          %791 = sbr.rel (%p789) target = $region108
        $region107: #{tpu_custom_call.1} parent=103 // pred_region
          %792 = dma.done %s785, 128
        $region108: #{tpu_custom_call.1} parent=103 // pred_fallthru
          _
        %s793 = sand.u32 %s47, 1
        %s794 = scalar_lea.sflag [#allocation9], %s793
        %s795 = sand.u32 %s95, 1
        %s796 = smul.addr %s795, 8
        %s797 = scalar_lea.vmem [#allocation8], %s796
        // Predicated region
        $region109: #{tpu_custom_call.1} parent=103 // pred_check
          %p798 = pneg %p108
        $region110: #{tpu_custom_call.1} parent=103 // pred_check_branch
          %800 = sbr.rel (%p798) target = $region112
        $region111: #{tpu_custom_call.1} parent=103 // pred_region
          %801 = dma.done %s794, 128
        $region112: #{tpu_custom_call.1} parent=103 // pred_fallthru
          _
        %s802 = sand.u32 %s47, 1
        %s803 = scalar_lea.sflag [#allocation9], %s802
        %s804 = sand.u32 %s123, 1
        %s805 = scalar_lea.vmem [#allocation10], %s804
        // Predicated region
        $region113: #{tpu_custom_call.1} parent=103 // pred_check
          %p806 = pneg %p136
        $region114: #{tpu_custom_call.1} parent=103 // pred_check_branch
          %808 = sbr.rel (%p806) target = $region116
        $region115: #{tpu_custom_call.1} parent=103 // pred_region
          %809 = dma.done %s803, 16
        $region116: #{tpu_custom_call.1} parent=103 // pred_fallthru
          _
        // Predicated region
        $region117: #{tpu_custom_call.1} parent=103 // pred_check
          %p810 = pneg %p206
        $region118: #{tpu_custom_call.1} parent=103 // pred_check_branch
          %812 = sbr.rel (%p810) target = $region120
        $region119: #{tpu_custom_call.1} parent=103 // pred_region
          %813 = dma.done [#allocation12], 16
        $region120: #{tpu_custom_call.1} parent=103 // pred_fallthru
          _
        // Predicated region
        $region121: #{tpu_custom_call.1} parent=103 // pred_check
          %p814 = pneg %p227
        $region122: #{tpu_custom_call.1} parent=103 // pred_check_branch
          %816 = sbr.rel (%p814) target = $region124
        $region123: #{tpu_custom_call.1} parent=103 // pred_region
          %817 = dma.done [#allocation12], 16
        $region124: #{tpu_custom_call.1} parent=103 // pred_fallthru
          _
        // Predicated region
        $region125: #{tpu_custom_call.1} parent=103 // pred_check
          %p818 = pneg %p248
        $region126: #{tpu_custom_call.1} parent=103 // pred_check_branch
          %820 = sbr.rel (%p818) target = $region128
        $region127: #{tpu_custom_call.1} parent=103 // pred_region
          %821 = dma.done [#allocation15], 512
        $region128: #{tpu_custom_call.1} parent=103 // pred_fallthru
          _
        // Predicated region
        $region129: #{tpu_custom_call.1} parent=103 // pred_check
          %p822 = pneg %p269
        $region130: #{tpu_custom_call.1} parent=103 // pred_check_branch
          %824 = sbr.rel (%p822) target = $region132
        $region131: #{tpu_custom_call.1} parent=103 // pred_region
          %825 = dma.done [#allocation15], 16
        $region132: #{tpu_custom_call.1} parent=103 // pred_fallthru
          _
        // Predicated region
        $region133: #{tpu_custom_call.1} parent=103 // pred_check
          %p826 = pneg %p311
        $region134: #{tpu_custom_call.1} parent=103 // pred_check_branch
          %828 = sbr.rel (%p826) target = $region136
        $region135: #{tpu_custom_call.1} parent=103 // pred_region
          %829 = dma.done [#allocation18], 16
        $region136: #{tpu_custom_call.1} parent=103 // pred_fallthru
          _
        // Predicated region
        $region137: #{tpu_custom_call.1} parent=103 // pred_check
          %p830 = pneg %p332
        $region138: #{tpu_custom_call.1} parent=103 // pred_check_branch
          %832 = sbr.rel (%p830) target = $region140
        $region139: #{tpu_custom_call.1} parent=103 // pred_region
          %833 = dma.done [#allocation18], 512
        $region140: #{tpu_custom_call.1} parent=103 // pred_fallthru
          _
        // Predicated region
        $region141: #{tpu_custom_call.1} parent=103 // pred_check
          %p834 = pneg %p353
        $region142: #{tpu_custom_call.1} parent=103 // pred_check_branch
          %836 = sbr.rel (%p834) target = $region144
        $region143: #{tpu_custom_call.1} parent=103 // pred_region
          %837 = dma.done [#allocation21], 16
        $region144: #{tpu_custom_call.1} parent=103 // pred_fallthru
          _
        // Predicated region
        $region145: #{tpu_custom_call.1} parent=103 // pred_check
          %p838 = pneg %p374
        $region146: #{tpu_custom_call.1} parent=103 // pred_check_branch
          %840 = sbr.rel (%p838) target = $region148
        $region147: #{tpu_custom_call.1} parent=103 // pred_region
          %841 = dma.done [#allocation21], 16
        $region148: #{tpu_custom_call.1} parent=103 // pred_fallthru
          _
        // Predicated region
        $region149: #{tpu_custom_call.1} parent=103 // pred_check
          %p842 = pneg %p395
        $region150: #{tpu_custom_call.1} parent=103 // pred_check_branch
          %844 = sbr.rel (%p842) target = $region152
        $region151: #{tpu_custom_call.1} parent=103 // pred_region
          %845 = dma.done [#allocation24], 16
        $region152: #{tpu_custom_call.1} parent=103 // pred_fallthru
          _
        // Predicated region
        $region153: #{tpu_custom_call.1} parent=103 // pred_check
          %p846 = pneg %p416
        $region154: #{tpu_custom_call.1} parent=103 // pred_check_branch
          %848 = sbr.rel (%p846) target = $region156
        $region155: #{tpu_custom_call.1} parent=103 // pred_region
          %849 = dma.done [#allocation24], 512
        $region156: #{tpu_custom_call.1} parent=103 // pred_fallthru
          _
        // Predicated region
        $region157: #{tpu_custom_call.1} parent=103 // pred_check
          %p850 = pneg %p437
        $region158: #{tpu_custom_call.1} parent=103 // pred_check_branch
          %852 = sbr.rel (%p850) target = $region160
        $region159: #{tpu_custom_call.1} parent=103 // pred_region
          %853 = dma.done [#allocation27], 16
        $region160: #{tpu_custom_call.1} parent=103 // pred_fallthru
          _
        %s854 = sand.u32 %s67, 1
        %s855 = scalar_lea.sflag [#allocation6], %s854
        %s856 = sand.u32 %s67, 1
        %s857 = smul.addr %s856, 8
        %s858 = scalar_lea.vmem [#allocation5], %s857
        %p859 = pneg %p80
        %p860 = pneg %p77
        %s861 = sand.u32 %s47, 1
        %s862 = scalar_lea.sflag [#allocation9], %s861
        %s863 = sand.u32 %s95, 1
        %s864 = smul.addr %s863, 8
        %s865 = scalar_lea.vmem [#allocation8], %s864
        %p866 = pneg %p108
        %p867 = pneg %p105
        %s868 = sand.u32 %s47, 1
        %s869 = scalar_lea.sflag [#allocation9], %s868
        %s870 = sand.u32 %s123, 1
        %s871 = scalar_lea.vmem [#allocation10], %s870
        %p872 = pneg %p136
        %p873 = pneg %p133
        %p874 = scmp.lt.s32.totalorder %s51, 1
        %s875 = scalar_select %p874, %s51, 1
        %p876 = scmp.lt.s32.totalorder %s52, 0
        %s877 = scalar_select %p876, %s52, 0
        %s878 = smul.addr %s875, 4
        %s879 = sadd.s32 %s877, %s878
        %s880 = smul.addr %s879, 8
        %s881 = scalar_lea.vmem %s3, %s880
        %p882 = pneg %p164
        %p883 = pneg %p161
        %p884 = pneg %p185
        %p885 = pneg %p182
        %p886 = pneg %p206
        %p887 = pneg %p203
        %p888 = pneg %p227
        %p889 = pneg %p224
        %p890 = pneg %p248
        %p891 = pneg %p245
        %p892 = pneg %p269
        %p893 = pneg %p266
        %p894 = pneg %p290
        %p895 = pneg %p287
        %p896 = pneg %p311
        %p897 = pneg %p308
        %p898 = pneg %p332
        %p899 = pneg %p329
        %p900 = pneg %p353
        %p901 = pneg %p350
        %p902 = pneg %p374
        %p903 = pneg %p371
        %p904 = pneg %p395
        %p905 = pneg %p392
        %p906 = pneg %p416
        %p907 = pneg %p413
        %p908 = pneg %p437
        %p909 = pneg %p434
        %p910 = pneg %p458
        %p911 = pneg %p455
        %p912 = pneg %p479
        %p913 = pneg %p476
        %p914 = pneg %p500
        %p915 = pneg %p497
        %p916 = pneg %p521
        %p917 = pneg %p518
        %p918 = pneg %p547
        %p919 = pneg %p544
        %s920 = sand.u32 %s534, 1
        %s921 = scalar_lea.sflag [#allocation7], %s920
        %s922 = sand.u32 %s534, 1
        %s923 = smul.addr %s922, 8
        %s924 = scalar_lea.vmem [#allocation28], %s923
        %p925 = scmp.lt.s32.totalorder %s51, 1
        %s926 = scalar_select %p925, %s51, 1
        %p927 = scmp.lt.s32.totalorder %s52, 0
        %s928 = scalar_select %p927, %s52, 0
        %s929 = smul.addr %s926, 4
        %s930 = sadd.s32 %s928, %s929
        %s931 = smul.addr %s930, 8
        %s932 = scalar_lea.vmem %s3, %s931
        %p934 = scmp.eq.s32.totalorder %s52, 0
        // Predicated region
        $region161: #{tpu_custom_call.1} parent=103 // pred_check
          %p935 = pneg %p934
        $region162: #{tpu_custom_call.1} parent=103 // pred_check_branch
          %937 = sbr.rel (%p935) target = $region164
        $region163: #{tpu_custom_call.1} parent=103 // pred_region
          %vm938 = vcmask 15360
          %939 = vst.msk [vmem:[#allocation2] sm:$0xff] %vm938, -inf
          %940 = vst.msk [vmem:[#allocation3] sm:$0xff] %vm938, 0.0
          %vm941 = vcmask 261120
          %942 = vst.msk [vmem:[#allocation4] sm:$0xff] %vm941, 0.0
        $region164: #{tpu_custom_call.1} parent=103 // pred_fallthru
          _
        %v943 = vld [vmem:[%s788] sm:$0xff]
        %v944 = vld [vmem:[#allocation11] sm:$0x1]
        %v945 = vld [vmem:[#allocation13] sm:$0x1]
        %vm946 = vcmask 261120
        %v947 = vsel %vm946, %v943, 0.0
        %948 = vadd.xlane.f32.xlu0 %v947
        %v949 = vpop.xlane.xlu0 %948
        %v950 = vrcp.pop 32.0
        %v951 = vmul.f32 %v949, %v950
        %v952 = vsub.f32 %v943, %v951
        %v953 = vmul.f32 %v952, %v952
        %v954 = vsel %vm946, %v953, 0.0
        %955 = vadd.xlane.f32.xlu0 %v954
        %v956 = vpop.xlane.xlu0 %955
        %v957 = vmul.f32 %v956, %v950
        %v958 = vadd.f32 %v957, 1e-12
        %v959 = vrsqrt.pop %v958
        %v960 = vmul.f32 %v952, %v959
        %v962 = vlaneseq
        %v963 = vshrl.u32 %v962, 7
        %v964 = vsub.s32 0, %v963
        %v965 = vrot.slane %v944, %v964
        %v967 = vmul.f32 %v960, %v965
        %v969 = vlaneseq
        %v970 = vshrl.u32 %v969, 7
        %v971 = vsub.s32 0, %v970
        %v972 = vrot.slane %v945, %v971
        %v974 = vadd.f32 %v967, %v972
        %v975 = vld [vmem:[#allocation14] sm:$0xff]
        %v976 = vld [vmem:[#allocation14 + $0x8] sm:$0xff]
        %v977 = vld [vmem:[#allocation14 + $0x10] sm:$0xff]
        %v978 = vld [vmem:[#allocation14 + $0x18] sm:$0xff]
        %v979 = vpack.c.bf16 %v974, %v974
        %v980 = vpack.c.bf16 %v976, %v975
        %v981 = vpack.c.bf16 %v978, %v977
        %v982 = vld [vmem:[#allocation16] sm:$0x1]
        %v984 = vlaneseq
        %v985 = vshrl.u32 %v984, 7
        %v986 = vsub.s32 0, %v985
        %v987 = vrot.slane %v982, %v986
        %v990 = vsel %vm946, %v979, 0
        %992 = vmatprep.subr.bf16.mxu0 0
        %993 = vmatpush1.bf16.msra.mxu0 %v980
        %994 = vmatprep.subr.bf16.mxu0 0
        %995 = vmatpush1.bf16.msra.mxu0 %v981
        %996 = vmatprep.subr.bf16.mxu0 0
        %997 = vmatpush1.bf16.msra.mxu0 0
        %998 = vmatprep.subr.bf16.mxu0 0
        %999 = vmatpush1.bf16.msra.mxu0 0
        %1000 = vmatprep.subr.bf16.mxu0 0
        %1001 = vmatpush1.bf16.msra.mxu0 0
        %1002 = vmatprep.subr.bf16.mxu0 0
        %1003 = vmatpush1.bf16.msra.mxu0 0
        %1004 = vmatprep.subr.bf16.mxu0 0
        %1005 = vmatpush1.bf16.msra.mxu0 0
        %1006 = vmatprep.subr.bf16.mxu0 0
        %1007 = vmatpush1.bf16.msra.mxu0 0
        %1008 = vmatprep.subr.bf16.mxu0 0
        %1009 = vmatpush1.bf16.msra.mxu0 0
        %1010 = vmatprep.subr.bf16.mxu0 0
        %1011 = vmatpush1.bf16.msra.mxu0 0
        %1012 = vmatprep.subr.bf16.mxu0 0
        %1013 = vmatpush1.bf16.msra.mxu0 0
        %1014 = vmatprep.subr.bf16.mxu0 0
        %1015 = vmatpush1.bf16.msra.mxu0 0
        %1016 = vmatprep.subr.bf16.mxu0 0
        %1017 = vmatpush1.bf16.msra.mxu0 0
        %1018 = vmatprep.subr.bf16.mxu0 0
        %1019 = vmatpush1.bf16.msra.mxu0 0
        %1020 = vmatprep.subr.bf16.mxu0 0
        %1021 = vmatpush1.bf16.msra.mxu0 0
        %1022 = vmatprep.subr.bf16.mxu0 0
        %1023 = vmatpush1.bf16.msra.mxu0 0
        %1024 = vmatprep.mubr.bf16.mxu0 0
        %1025 = vmatmul.mubr.bf16.gmra.mrb[0].mxu0 %v990
        %v1026 = vpop.f32.mrb[0].mxu0
        %v1027 = vadd.f32 %v987, %v1026
        %v1028 = vpop.f32.mrb[0].mxu0
        %v1029 = vpop.f32.mrb[0].mxu0
        %v1030 = vpop.f32.mrb[0].mxu0
        %1031 = vdwg.mxu0
        %v1032 = vld [vmem:[%s797] sm:$0xff]
        %v1033 = vsel %vm946, %v1032, 0.0
        %1034 = vadd.xlane.f32.xlu0 %v1033
        %v1035 = vpop.xlane.xlu0 %1034
        %v1036 = vmul.f32 %v1035, %v950
        %v1037 = vsub.f32 %v1032, %v1036
        %v1038 = vmul.f32 %v1037, %v1037
        %v1039 = vsel %vm946, %v1038, 0.0
        %1040 = vadd.xlane.f32.xlu0 %v1039
        %v1041 = vpop.xlane.xlu0 %1040
        %v1042 = vmul.f32 %v1041, %v950
        %v1043 = vadd.f32 %v1042, 1e-12
        %v1044 = vrsqrt.pop %v1043
        %v1045 = vmul.f32 %v1037, %v1044
        %v1046 = vmul.f32 %v1045, %v965
        %v1047 = vadd.f32 %v1046, %v972
        %v1048 = vld [vmem:[%s9] sm:$0xff]
        %v1049 = vld [vmem:[%s9 + $0x8] sm:$0xff]
        %v1050 = vld [vmem:[%s9 + $0x10] sm:$0xff]
        %v1051 = vld [vmem:[%s9 + $0x18] sm:$0xff]
        %v1052 = vpack.c.bf16 %v1047, %v1047
        %v1053 = vpack.c.bf16 %v1049, %v1048
        %v1054 = vpack.c.bf16 %v1051, %v1050
        %v1055 = vld [vmem:[#allocation17] sm:$0x1]
        %v1057 = vlaneseq
        %v1058 = vshrl.u32 %v1057, 7
        %v1059 = vsub.s32 0, %v1058
        %v1060 = vrot.slane %v1055, %v1059
        %v1063 = vsel %vm946, %v1052, 0
        %1065 = vmatprep.subr.bf16.mxu0 0
        %1066 = vmatpush1.bf16.msra.mxu0 %v1053
        %1067 = vmatprep.subr.bf16.mxu0 0
        %1068 = vmatpush1.bf16.msra.mxu0 %v1054
        %1069 = vmatprep.subr.bf16.mxu0 0
        %1070 = vmatpush1.bf16.msra.mxu0 0
        %1071 = vmatprep.subr.bf16.mxu0 0
        %1072 = vmatpush1.bf16.msra.mxu0 0
        %1073 = vmatprep.subr.bf16.mxu0 0
        %1074 = vmatpush1.bf16.msra.mxu0 0
        %1075 = vmatprep.subr.bf16.mxu0 0
        %1076 = vmatpush1.bf16.msra.mxu0 0
        %1077 = vmatprep.subr.bf16.mxu0 0
        %1078 = vmatpush1.bf16.msra.mxu0 0
        %1079 = vmatprep.subr.bf16.mxu0 0
        %1080 = vmatpush1.bf16.msra.mxu0 0
        %1081 = vmatprep.subr.bf16.mxu0 0
        %1082 = vmatpush1.bf16.msra.mxu0 0
        %1083 = vmatprep.subr.bf16.mxu0 0
        %1084 = vmatpush1.bf16.msra.mxu0 0
        %1085 = vmatprep.subr.bf16.mxu0 0
        %1086 = vmatpush1.bf16.msra.mxu0 0
        %1087 = vmatprep.subr.bf16.mxu0 0
        %1088 = vmatpush1.bf16.msra.mxu0 0
        %1089 = vmatprep.subr.bf16.mxu0 0
        %1090 = vmatpush1.bf16.msra.mxu0 0
        %1091 = vmatprep.subr.bf16.mxu0 0
        %1092 = vmatpush1.bf16.msra.mxu0 0
        %1093 = vmatprep.subr.bf16.mxu0 0
        %1094 = vmatpush1.bf16.msra.mxu0 0
        %1095 = vmatprep.subr.bf16.mxu0 0
        %1096 = vmatpush1.bf16.msra.mxu0 0
        %1097 = vmatprep.mubr.bf16.mxu0 0
        %1098 = vmatmul.mubr.bf16.gmra.mrb[0].mxu0 %v1063
        %v1099 = vpop.f32.mrb[0].mxu0
        %v1100 = vadd.f32 %v1060, %v1099
        %v1101 = vpop.f32.mrb[0].mxu0
        %v1102 = vpop.f32.mrb[0].mxu0
        %v1103 = vpop.f32.mrb[0].mxu0
        %1104 = vdwg.mxu0
        %v1105 = vld [vmem:[%s805] sm:$0x1]
        %v1106 = vsub.f32 1.0, %v1105
        %v1107 = vmul.f32 %v1106, -10000.0
        %v1108 = vlaneseq
        %v1109 = vand.u32 %v1108, 127
        %v1110 = vld [vmem:[%s932] sm:$0xff]
        %v1111 = vlaneseq
        %v1112 = vshrl.u32 %v1111, 7
        %v1113 = vsub.s32 0, %v1112
        %v1114 = vrot.slane %v1110, %v1113
        %1116 = vbcast.lane.b32.xlu0 %v1114, 256
        %v1117 = vpop.permute.xlu0 %1116
        %v1118 = vlaneseq
        %v1119 = vshrl.u32 %v1118, 7
        %v1120 = vsub.s32 1, %v1119
        %v1121 = vrot.slane %v1110, %v1120
        %1123 = vbcast.lane.b32.xlu0 %v1121, 256
        %v1124 = vpop.permute.xlu0 %1123
        %v1125 = vlaneseq
        %v1126 = vshrl.u32 %v1125, 7
        %v1127 = vsub.s32 2, %v1126
        %v1128 = vrot.slane %v1110, %v1127
        %1130 = vbcast.lane.b32.xlu0 %v1128, 256
        %v1131 = vpop.permute.xlu0 %1130
        %v1132 = vlaneseq
        %v1133 = vshrl.u32 %v1132, 7
        %v1134 = vsub.s32 3, %v1133
        %v1135 = vrot.slane %v1110, %v1134
        %1137 = vbcast.lane.b32.xlu0 %v1135, 256
        %v1138 = vpop.permute.xlu0 %1137
        %v1139 = vlaneseq
        %v1140 = vshrl.u32 %v1139, 7
        %v1141 = vsub.s32 4, %v1140
        %v1142 = vrot.slane %v1110, %v1141
        %1144 = vbcast.lane.b32.xlu0 %v1142, 256
        %v1145 = vpop.permute.xlu0 %1144
        %v1146 = vlaneseq
        %v1147 = vshrl.u32 %v1146, 7
        %v1148 = vsub.s32 5, %v1147
        %v1149 = vrot.slane %v1110, %v1148
        %1151 = vbcast.lane.b32.xlu0 %v1149, 256
        %v1152 = vpop.permute.xlu0 %1151
        %v1153 = vlaneseq
        %v1154 = vshrl.u32 %v1153, 7
        %v1155 = vsub.s32 6, %v1154
        %v1156 = vrot.slane %v1110, %v1155
        %1158 = vbcast.lane.b32.xlu0 %v1156, 256
        %v1159 = vpop.permute.xlu0 %1158
        %v1160 = vlaneseq
        %v1161 = vshrl.u32 %v1160, 7
        %v1162 = vsub.s32 7, %v1161
        %v1163 = vrot.slane %v1110, %v1162
        %1165 = vbcast.lane.b32.xlu0 %v1163, 256
        %v1166 = vpop.permute.xlu0 %1165
        %vm1167 = vcmp.eq.s32.totalorder %v1117, %v1109
        %vm1168 = vcmp.eq.s32.totalorder %v1124, %v1109
        %vm1169 = vcmp.eq.s32.totalorder %v1131, %v1109
        %vm1170 = vcmp.eq.s32.totalorder %v1138, %v1109
        %vm1171 = vcmp.eq.s32.totalorder %v1145, %v1109
        %vm1172 = vcmp.eq.s32.totalorder %v1152, %v1109
        %vm1173 = vcmp.eq.s32.totalorder %v1159, %v1109
        %vm1174 = vcmp.eq.s32.totalorder %v1166, %v1109
        %v1175 = vsel %vm1167, 1, 0
        %v1176 = vsel %vm1168, 1, 0
        %v1177 = vsel %vm1169, 1, 0
        %v1178 = vsel %vm1170, 1, 0
        %v1179 = vsel %vm1171, 1, 0
        %v1180 = vsel %vm1172, 1, 0
        %v1181 = vsel %vm1173, 1, 0
        %v1182 = vsel %vm1174, 1, 0
        %v1183 = vcvt.s32.f32 %v1175
        %v1184 = vcvt.s32.f32 %v1176
        %v1185 = vcvt.s32.f32 %v1177
        %v1186 = vcvt.s32.f32 %v1178
        %v1187 = vcvt.s32.f32 %v1179
        %v1188 = vcvt.s32.f32 %v1180
        %v1189 = vcvt.s32.f32 %v1181
        %v1190 = vcvt.s32.f32 %v1182
        %v1191 = vadd.f32 %v1183, 0.0
        %v1192 = vadd.f32 %v1184, 0.0
        %v1193 = vadd.f32 %v1185, 0.0
        %v1194 = vadd.f32 %v1186, 0.0
        %v1195 = vadd.f32 %v1187, 0.0
        %v1196 = vadd.f32 %v1188, 0.0
        %v1197 = vadd.f32 %v1189, 0.0
        %v1198 = vadd.f32 %v1190, 0.0
        %s1199 = scalar_lea.vmem %s932, 8
        %v1200 = vld [vmem:[%s1199] sm:$0xff]
        %v1201 = vlaneseq
        %v1202 = vshrl.u32 %v1201, 7
        %v1203 = vsub.s32 0, %v1202
        %v1204 = vrot.slane %v1200, %v1203
        %1206 = vbcast.lane.b32.xlu0 %v1204, 256
        %v1207 = vpop.permute.xlu0 %1206
        %v1208 = vlaneseq
        %v1209 = vshrl.u32 %v1208, 7
        %v1210 = vsub.s32 1, %v1209
        %v1211 = vrot.slane %v1200, %v1210
        %1213 = vbcast.lane.b32.xlu0 %v1211, 256
        %v1214 = vpop.permute.xlu0 %1213
        %v1215 = vlaneseq
        %v1216 = vshrl.u32 %v1215, 7
        %v1217 = vsub.s32 2, %v1216
        %v1218 = vrot.slane %v1200, %v1217
        %1220 = vbcast.lane.b32.xlu0 %v1218, 256
        %v1221 = vpop.permute.xlu0 %1220
        %v1222 = vlaneseq
        %v1223 = vshrl.u32 %v1222, 7
        %v1224 = vsub.s32 3, %v1223
        %v1225 = vrot.slane %v1200, %v1224
        %1227 = vbcast.lane.b32.xlu0 %v1225, 256
        %v1228 = vpop.permute.xlu0 %1227
        %v1229 = vlaneseq
        %v1230 = vshrl.u32 %v1229, 7
        %v1231 = vsub.s32 4, %v1230
        %v1232 = vrot.slane %v1200, %v1231
        %1234 = vbcast.lane.b32.xlu0 %v1232, 256
        %v1235 = vpop.permute.xlu0 %1234
        %v1236 = vlaneseq
        %v1237 = vshrl.u32 %v1236, 7
        %v1238 = vsub.s32 5, %v1237
        %v1239 = vrot.slane %v1200, %v1238
        %1241 = vbcast.lane.b32.xlu0 %v1239, 256
        %v1242 = vpop.permute.xlu0 %1241
        %v1243 = vlaneseq
        %v1244 = vshrl.u32 %v1243, 7
        %v1245 = vsub.s32 6, %v1244
        %v1246 = vrot.slane %v1200, %v1245
        %1248 = vbcast.lane.b32.xlu0 %v1246, 256
        %v1249 = vpop.permute.xlu0 %1248
        %v1250 = vlaneseq
        %v1251 = vshrl.u32 %v1250, 7
        %v1252 = vsub.s32 7, %v1251
        %v1253 = vrot.slane %v1200, %v1252
        %1255 = vbcast.lane.b32.xlu0 %v1253, 256
        %v1256 = vpop.permute.xlu0 %1255
        %vm1257 = vcmp.eq.s32.totalorder %v1207, %v1109
        %vm1258 = vcmp.eq.s32.totalorder %v1214, %v1109
        %vm1259 = vcmp.eq.s32.totalorder %v1221, %v1109
        %vm1260 = vcmp.eq.s32.totalorder %v1228, %v1109
        %vm1261 = vcmp.eq.s32.totalorder %v1235, %v1109
        %vm1262 = vcmp.eq.s32.totalorder %v1242, %v1109
        %vm1263 = vcmp.eq.s32.totalorder %v1249, %v1109
        %vm1264 = vcmp.eq.s32.totalorder %v1256, %v1109
        %v1265 = vsel %vm1257, 1, 0
        %v1266 = vsel %vm1258, 1, 0
        %v1267 = vsel %vm1259, 1, 0
        %v1268 = vsel %vm1260, 1, 0
        %v1269 = vsel %vm1261, 1, 0
        %v1270 = vsel %vm1262, 1, 0
        %v1271 = vsel %vm1263, 1, 0
        %v1272 = vsel %vm1264, 1, 0
        %v1273 = vcvt.s32.f32 %v1265
        %v1274 = vcvt.s32.f32 %v1266
        %v1275 = vcvt.s32.f32 %v1267
        %v1276 = vcvt.s32.f32 %v1268
        %v1277 = vcvt.s32.f32 %v1269
        %v1278 = vcvt.s32.f32 %v1270
        %v1279 = vcvt.s32.f32 %v1271
        %v1280 = vcvt.s32.f32 %v1272
        %v1281 = vadd.f32 %v1191, %v1273
        %v1282 = vadd.f32 %v1192, %v1274
        %v1283 = vadd.f32 %v1193, %v1275
        %v1284 = vadd.f32 %v1194, %v1276
        %v1285 = vadd.f32 %v1195, %v1277
        %v1286 = vadd.f32 %v1196, %v1278
        %v1287 = vadd.f32 %v1197, %v1279
        %v1288 = vadd.f32 %v1198, %v1280
        %s1289 = scalar_lea.vmem %s932, 16
        %v1290 = vld [vmem:[%s1289] sm:$0xff]
        %v1291 = vlaneseq
        %v1292 = vshrl.u32 %v1291, 7
        %v1293 = vsub.s32 0, %v1292
        %v1294 = vrot.slane %v1290, %v1293
        %1296 = vbcast.lane.b32.xlu0 %v1294, 256
        %v1297 = vpop.permute.xlu0 %1296
        %v1298 = vlaneseq
        %v1299 = vshrl.u32 %v1298, 7
        %v1300 = vsub.s32 1, %v1299
        %v1301 = vrot.slane %v1290, %v1300
        %1303 = vbcast.lane.b32.xlu0 %v1301, 256
        %v1304 = vpop.permute.xlu0 %1303
        %v1305 = vlaneseq
        %v1306 = vshrl.u32 %v1305, 7
        %v1307 = vsub.s32 2, %v1306
        %v1308 = vrot.slane %v1290, %v1307
        %1310 = vbcast.lane.b32.xlu0 %v1308, 256
        %v1311 = vpop.permute.xlu0 %1310
        %v1312 = vlaneseq
        %v1313 = vshrl.u32 %v1312, 7
        %v1314 = vsub.s32 3, %v1313
        %v1315 = vrot.slane %v1290, %v1314
        %1317 = vbcast.lane.b32.xlu0 %v1315, 256
        %v1318 = vpop.permute.xlu0 %1317
        %v1319 = vlaneseq
        %v1320 = vshrl.u32 %v1319, 7
        %v1321 = vsub.s32 4, %v1320
        %v1322 = vrot.slane %v1290, %v1321
        %1324 = vbcast.lane.b32.xlu0 %v1322, 256
        %v1325 = vpop.permute.xlu0 %1324
        %v1326 = vlaneseq
        %v1327 = vshrl.u32 %v1326, 7
        %v1328 = vsub.s32 5, %v1327
        %v1329 = vrot.slane %v1290, %v1328
        %1331 = vbcast.lane.b32.xlu0 %v1329, 256
        %v1332 = vpop.permute.xlu0 %1331
        %v1333 = vlaneseq
        %v1334 = vshrl.u32 %v1333, 7
        %v1335 = vsub.s32 6, %v1334
        %v1336 = vrot.slane %v1290, %v1335
        %1338 = vbcast.lane.b32.xlu0 %v1336, 256
        %v1339 = vpop.permute.xlu0 %1338
        %v1340 = vlaneseq
        %v1341 = vshrl.u32 %v1340, 7
        %v1342 = vsub.s32 7, %v1341
        %v1343 = vrot.slane %v1290, %v1342
        %1345 = vbcast.lane.b32.xlu0 %v1343, 256
        %v1346 = vpop.permute.xlu0 %1345
        %vm1347 = vcmp.eq.s32.totalorder %v1297, %v1109
        %vm1348 = vcmp.eq.s32.totalorder %v1304, %v1109
        %vm1349 = vcmp.eq.s32.totalorder %v1311, %v1109
        %vm1350 = vcmp.eq.s32.totalorder %v1318, %v1109
        %vm1351 = vcmp.eq.s32.totalorder %v1325, %v1109
        %vm1352 = vcmp.eq.s32.totalorder %v1332, %v1109
        %vm1353 = vcmp.eq.s32.totalorder %v1339, %v1109
        %vm1354 = vcmp.eq.s32.totalorder %v1346, %v1109
        %v1355 = vsel %vm1347, 1, 0
        %v1356 = vsel %vm1348, 1, 0
        %v1357 = vsel %vm1349, 1, 0
        %v1358 = vsel %vm1350, 1, 0
        %v1359 = vsel %vm1351, 1, 0
        %v1360 = vsel %vm1352, 1, 0
        %v1361 = vsel %vm1353, 1, 0
        %v1362 = vsel %vm1354, 1, 0
        %v1363 = vcvt.s32.f32 %v1355
        %v1364 = vcvt.s32.f32 %v1356
        %v1365 = vcvt.s32.f32 %v1357
        %v1366 = vcvt.s32.f32 %v1358
        %v1367 = vcvt.s32.f32 %v1359
        %v1368 = vcvt.s32.f32 %v1360
        %v1369 = vcvt.s32.f32 %v1361
        %v1370 = vcvt.s32.f32 %v1362
        %v1371 = vadd.f32 %v1281, %v1363
        %v1372 = vadd.f32 %v1282, %v1364
        %v1373 = vadd.f32 %v1283, %v1365
        %v1374 = vadd.f32 %v1284, %v1366
        %v1375 = vadd.f32 %v1285, %v1367
        %v1376 = vadd.f32 %v1286, %v1368
        %v1377 = vadd.f32 %v1287, %v1369
        %v1378 = vadd.f32 %v1288, %v1370
        %s1379 = scalar_lea.vmem %s932, 24
        %v1380 = vld [vmem:[%s1379] sm:$0xff]
        %v1381 = vlaneseq
        %v1382 = vshrl.u32 %v1381, 7
        %v1383 = vsub.s32 0, %v1382
        %v1384 = vrot.slane %v1380, %v1383
        %1386 = vbcast.lane.b32.xlu0 %v1384, 256
        %v1387 = vpop.permute.xlu0 %1386
        %v1388 = vlaneseq
        %v1389 = vshrl.u32 %v1388, 7
        %v1390 = vsub.s32 1, %v1389
        %v1391 = vrot.slane %v1380, %v1390
        %1393 = vbcast.lane.b32.xlu0 %v1391, 256
        %v1394 = vpop.permute.xlu0 %1393
        %v1395 = vlaneseq
        %v1396 = vshrl.u32 %v1395, 7
        %v1397 = vsub.s32 2, %v1396
        %v1398 = vrot.slane %v1380, %v1397
        %1400 = vbcast.lane.b32.xlu0 %v1398, 256
        %v1401 = vpop.permute.xlu0 %1400
        %v1402 = vlaneseq
        %v1403 = vshrl.u32 %v1402, 7
        %v1404 = vsub.s32 3, %v1403
        %v1405 = vrot.slane %v1380, %v1404
        %1407 = vbcast.lane.b32.xlu0 %v1405, 256
        %v1408 = vpop.permute.xlu0 %1407
        %v1409 = vlaneseq
        %v1410 = vshrl.u32 %v1409, 7
        %v1411 = vsub.s32 4, %v1410
        %v1412 = vrot.slane %v1380, %v1411
        %1414 = vbcast.lane.b32.xlu0 %v1412, 256
        %v1415 = vpop.permute.xlu0 %1414
        %v1416 = vlaneseq
        %v1417 = vshrl.u32 %v1416, 7
        %v1418 = vsub.s32 5, %v1417
        %v1419 = vrot.slane %v1380, %v1418
        %1421 = vbcast.lane.b32.xlu0 %v1419, 256
        %v1422 = vpop.permute.xlu0 %1421
        %v1423 = vlaneseq
        %v1424 = vshrl.u32 %v1423, 7
        %v1425 = vsub.s32 6, %v1424
        %v1426 = vrot.slane %v1380, %v1425
        %1428 = vbcast.lane.b32.xlu0 %v1426, 256
        %v1429 = vpop.permute.xlu0 %1428
        %v1430 = vlaneseq
        %v1431 = vshrl.u32 %v1430, 7
        %v1432 = vsub.s32 7, %v1431
        %v1433 = vrot.slane %v1380, %v1432
        %1435 = vbcast.lane.b32.xlu0 %v1433, 256
        %v1436 = vpop.permute.xlu0 %1435
        %vm1437 = vcmp.eq.s32.totalorder %v1387, %v1109
        %vm1438 = vcmp.eq.s32.totalorder %v1394, %v1109
        %vm1439 = vcmp.eq.s32.totalorder %v1401, %v1109
        %vm1440 = vcmp.eq.s32.totalorder %v1408, %v1109
        %vm1441 = vcmp.eq.s32.totalorder %v1415, %v1109
        %vm1442 = vcmp.eq.s32.totalorder %v1422, %v1109
        %vm1443 = vcmp.eq.s32.totalorder %v1429, %v1109
        %vm1444 = vcmp.eq.s32.totalorder %v1436, %v1109
        %v1445 = vsel %vm1437, 1, 0
        %v1446 = vsel %vm1438, 1, 0
        %v1447 = vsel %vm1439, 1, 0
        %v1448 = vsel %vm1440, 1, 0
        %v1449 = vsel %vm1441, 1, 0
        %v1450 = vsel %vm1442, 1, 0
        %v1451 = vsel %vm1443, 1, 0
        %v1452 = vsel %vm1444, 1, 0
        %v1453 = vcvt.s32.f32 %v1445
        %v1454 = vcvt.s32.f32 %v1446
        %v1455 = vcvt.s32.f32 %v1447
        %v1456 = vcvt.s32.f32 %v1448
        %v1457 = vcvt.s32.f32 %v1449
        %v1458 = vcvt.s32.f32 %v1450
        %v1459 = vcvt.s32.f32 %v1451
        %v1460 = vcvt.s32.f32 %v1452
        %v1461 = vadd.f32 %v1371, %v1453
        %v1462 = vadd.f32 %v1372, %v1454
        %v1463 = vadd.f32 %v1373, %v1455
        %v1464 = vadd.f32 %v1374, %v1456
        %v1465 = vadd.f32 %v1375, %v1457
        %v1466 = vadd.f32 %v1376, %v1458
        %v1467 = vadd.f32 %v1377, %v1459
        %v1468 = vadd.f32 %v1378, %v1460
        %1469 = vxpose.xlu0.b32.start [1/16] %v1100, 128
        %1470 = vxpose.xlu0.b32.cont [2/16] 0.0, 128
        %1471 = vxpose.xlu0.b32.cont [3/16] 0.0, 128
        %1472 = vxpose.xlu0.b32.cont [4/16] 0.0, 128
        %1473 = vxpose.xlu0.b32.cont [5/16] 0.0, 128
        %1474 = vxpose.xlu0.b32.cont [6/16] 0.0, 128
        %1475 = vxpose.xlu0.b32.cont [7/16] 0.0, 128
        %1476 = vxpose.xlu0.b32.cont [8/16] 0.0, 128
        %1477 = vxpose.xlu0.b32.cont [9/16] 0.0, 128
        %1478 = vxpose.xlu0.b32.cont [10/16] 0.0, 128
        %1479 = vxpose.xlu0.b32.cont [11/16] 0.0, 128
        %1480 = vxpose.xlu0.b32.cont [12/16] 0.0, 128
        %1481 = vxpose.xlu0.b32.cont [13/16] 0.0, 128
        %1482 = vxpose.xlu0.b32.cont [14/16] 0.0, 128
        %1483 = vxpose.xlu0.b32.cont [15/16] 0.0, 128
        %1484 = vxpose.xlu0.b32.end [16/16] 0.0, 128
        %v1485 = vpop.trf.xlu0
        %v1486 = vpop.trf.xlu0
        %v1487 = vpop.trf.xlu0
        %v1488 = vpop.trf.xlu0
        %v1489 = vpop.trf.xlu0
        %v1490 = vpop.trf.xlu0
        %v1491 = vpop.trf.xlu0
        %v1492 = vpop.trf.xlu0
        %v1493 = vpop.trf.xlu0
        %v1494 = vpop.trf.xlu0
        %v1495 = vpop.trf.xlu0
        %v1496 = vpop.trf.xlu0
        %v1497 = vpop.trf.xlu0
        %v1498 = vpop.trf.xlu0
        %v1499 = vpop.trf.xlu0
        %v1500 = vpop.trf.xlu0
        %v1501 = vpack.c.bf16 %v1027, %v1027
        %v1502 = vpack.c.bf16 %v1486, %v1485
        %v1503 = vld [vmem:[%s4] sm:$0xff]
        %v1504 = vld [vmem:[%s4 + $0x8] sm:$0xff]
        %v1505 = vpack.c.bf16 %v1504, %v1503
        %vm1506 = vcmask 130048
        %v1508 = vsel %vm1506, %v1501, 0
        %1510 = vmatprep.subr.bf16.mxu0 0
        %1511 = vmatpush1.bf16.msra.mxu0 %v1505
        %1512 = vmatprep.subr.bf16.mxu0 0
        %1513 = vmatpush1.bf16.msra.mxu0 0
        %1514 = vmatprep.subr.bf16.mxu0 0
        %1515 = vmatpush1.bf16.msra.mxu0 0
        %1516 = vmatprep.subr.bf16.mxu0 0
        %1517 = vmatpush1.bf16.msra.mxu0 0
        %1518 = vmatprep.subr.bf16.mxu0 0
        %1519 = vmatpush1.bf16.msra.mxu0 0
        %1520 = vmatprep.subr.bf16.mxu0 0
        %1521 = vmatpush1.bf16.msra.mxu0 0
        %1522 = vmatprep.subr.bf16.mxu0 0
        %1523 = vmatpush1.bf16.msra.mxu0 0
        %1524 = vmatprep.subr.bf16.mxu0 0
        %1525 = vmatpush1.bf16.msra.mxu0 0
        %1526 = vmatprep.subr.bf16.mxu0 0
        %1527 = vmatpush1.bf16.msra.mxu0 0
        %1528 = vmatprep.subr.bf16.mxu0 0
        %1529 = vmatpush1.bf16.msra.mxu0 0
        %1530 = vmatprep.subr.bf16.mxu0 0
        %1531 = vmatpush1.bf16.msra.mxu0 0
        %1532 = vmatprep.subr.bf16.mxu0 0
        %1533 = vmatpush1.bf16.msra.mxu0 0
        %1534 = vmatprep.subr.bf16.mxu0 0
        %1535 = vmatpush1.bf16.msra.mxu0 0
        %1536 = vmatprep.subr.bf16.mxu0 0
        %1537 = vmatpush1.bf16.msra.mxu0 0
        %1538 = vmatprep.subr.bf16.mxu0 0
        %1539 = vmatpush1.bf16.msra.mxu0 0
        %1540 = vmatprep.subr.bf16.mxu0 0
        %1541 = vmatpush1.bf16.msra.mxu0 0
        %1542 = vmatprep.mubr.bf16.mxu0 0
        %1543 = vmatmul.mubr.bf16.gmra.mrb[0].mxu0 %v1508
        %v1544 = vpop.f32.mrb[0].mxu0
        %v1545 = vadd.f32 0.0, %v1544
        %v1546 = vpop.f32.mrb[0].mxu0
        %v1547 = vpop.f32.mrb[0].mxu0
        %v1548 = vpop.f32.mrb[0].mxu0
        %1549 = vdwg.mxu0
        %v1551 = vcombine.high %v1545, %v1545
        %v1553 = vunpack.c.l.s4 1966171168
        %v1554 = vunpack.c.0.s8 %v1553
        %v1555 = vlaneseq
        %v1556 = vshrl.u32 %v1555, 7
        %v1557 = vsub.s32 %v1554, %v1556
        %v1558 = vrot.slane %v1545, %v1557
        %v1560 = vunpack.c.l.s4 1966171168
        %v1561 = vunpack.c.0.s8 %v1560
        %v1562 = vlaneseq
        %v1563 = vshrl.u32 %v1562, 7
        %v1564 = vsub.s32 %v1561, %v1563
        %v1565 = vrot.slane %v1551, %v1564
        %v1566 = vcombine.high %v1558, %v1558
        %v1567 = vcombine.high %v1565, %v1565
        %v1569 = vunpack.c.l.s4 1966171168
        %v1570 = vunpack.c.0.s8 %v1569
        %v1571 = vlaneseq
        %v1572 = vshrl.u32 %v1571, 7
        %v1573 = vsub.s32 %v1570, %v1572
        %v1574 = vrot.slane %v1558, %v1573
        %v1576 = vunpack.c.l.s4 1966171168
        %v1577 = vunpack.c.0.s8 %v1576
        %v1578 = vlaneseq
        %v1579 = vshrl.u32 %v1578, 7
        %v1580 = vsub.s32 %v1577, %v1579
        %v1581 = vrot.slane %v1565, %v1580
        %v1583 = vunpack.c.l.s4 1966171168
        %v1584 = vunpack.c.0.s8 %v1583
        %v1585 = vlaneseq
        %v1586 = vshrl.u32 %v1585, 7
        %v1587 = vsub.s32 %v1584, %v1586
        %v1588 = vrot.slane %v1566, %v1587
        %v1590 = vunpack.c.l.s4 1966171168
        %v1591 = vunpack.c.0.s8 %v1590
        %v1592 = vlaneseq
        %v1593 = vshrl.u32 %v1592, 7
        %v1594 = vsub.s32 %v1591, %v1593
        %v1595 = vrot.slane %v1567, %v1594
        %v1596 = vcombine.high %v1574, %v1574
        %v1597 = vcombine.high %v1581, %v1581
        %v1598 = vcombine.high %v1588, %v1588
        %v1599 = vcombine.high %v1595, %v1595
        %v1600 = vlaneseq
        %v1601 = vshrl.u32 %v1600, 7
        %v1602 = vsub.s32 0, %v1601
        %v1603 = vrot.slane %v1574, %v1602
        %v1604 = vlaneseq
        %v1605 = vshrl.u32 %v1604, 7
        %v1606 = vsub.s32 0, %v1605
        %v1607 = vrot.slane %v1588, %v1606
        %v1608 = vlaneseq
        %v1609 = vshrl.u32 %v1608, 7
        %v1610 = vsub.s32 0, %v1609
        %v1611 = vrot.slane %v1596, %v1610
        %v1612 = vlaneseq
        %v1613 = vshrl.u32 %v1612, 7
        %v1614 = vsub.s32 0, %v1613
        %v1615 = vrot.slane %v1598, %v1614
        %v1616 = vlaneseq
        %v1617 = vshrl.u32 %v1616, 7
        %v1618 = vsub.s32 0, %v1617
        %v1619 = vrot.slane %v1581, %v1618
        %v1620 = vlaneseq
        %v1621 = vshrl.u32 %v1620, 7
        %v1622 = vsub.s32 0, %v1621
        %v1623 = vrot.slane %v1595, %v1622
        %v1624 = vlaneseq
        %v1625 = vshrl.u32 %v1624, 7
        %v1626 = vsub.s32 0, %v1625
        %v1627 = vrot.slane %v1597, %v1626
        %v1628 = vlaneseq
        %v1629 = vshrl.u32 %v1628, 7
        %v1630 = vsub.s32 0, %v1629
        %v1631 = vrot.slane %v1599, %v1630
        %v1640 = vmul.f32 %v1461, %v1603
        %v1641 = vmul.f32 %v1462, %v1607
        %v1642 = vmul.f32 %v1463, %v1611
        %v1643 = vmul.f32 %v1464, %v1615
        %v1644 = vmul.f32 %v1465, %v1619
        %v1645 = vmul.f32 %v1466, %v1623
        %v1646 = vmul.f32 %v1467, %v1627
        %v1647 = vmul.f32 %v1468, %v1631
        %1648 = vadd.xlane.f32.xlu0 %v1640
        %v1649 = vpop.xlane.xlu0 %1648
        %1650 = vadd.xlane.f32.xlu0 %v1641
        %v1651 = vpop.xlane.xlu0 %1650
        %1652 = vadd.xlane.f32.xlu0 %v1642
        %v1653 = vpop.xlane.xlu0 %1652
        %1654 = vadd.xlane.f32.xlu0 %v1643
        %v1655 = vpop.xlane.xlu0 %1654
        %1656 = vadd.xlane.f32.xlu0 %v1644
        %v1657 = vpop.xlane.xlu0 %1656
        %1658 = vadd.xlane.f32.xlu0 %v1645
        %v1659 = vpop.xlane.xlu0 %1658
        %1660 = vadd.xlane.f32.xlu0 %v1646
        %v1661 = vpop.xlane.xlu0 %1660
        %1662 = vadd.xlane.f32.xlu0 %v1647
        %v1663 = vpop.xlane.xlu0 %1662
        %v1672 = vlaneseq
        %v1673 = vshrl.u32 %v1672, 7
        %v1674 = vsub.s32 %v1109, %v1673
        %v1675 = vrot.slane %v1649, %v1674
        %v1676 = vlaneseq
        %v1677 = vshrl.u32 %v1676, 7
        %v1678 = vsub.s32 %v1109, %v1677
        %v1679 = vrot.slane %v1651, %v1678
        %v1680 = vlaneseq
        %v1681 = vshrl.u32 %v1680, 7
        %v1682 = vsub.s32 %v1109, %v1681
        %v1683 = vrot.slane %v1653, %v1682
        %v1684 = vlaneseq
        %v1685 = vshrl.u32 %v1684, 7
        %v1686 = vsub.s32 %v1109, %v1685
        %v1687 = vrot.slane %v1655, %v1686
        %v1688 = vlaneseq
        %v1689 = vshrl.u32 %v1688, 7
        %v1690 = vsub.s32 %v1109, %v1689
        %v1691 = vrot.slane %v1657, %v1690
        %v1692 = vlaneseq
        %v1693 = vshrl.u32 %v1692, 7
        %v1694 = vsub.s32 %v1109, %v1693
        %v1695 = vrot.slane %v1659, %v1694
        %v1696 = vlaneseq
        %v1697 = vshrl.u32 %v1696, 7
        %v1698 = vsub.s32 %v1109, %v1697
        %v1699 = vrot.slane %v1661, %v1698
        %v1700 = vlaneseq
        %v1701 = vshrl.u32 %v1700, 7
        %v1702 = vsub.s32 %v1109, %v1701
        %v1703 = vrot.slane %v1663, %v1702
        %vm1704 = vcmask 1041409
        %v1705 = vsel %vm1704, %v1679, %v1675
        %vm1706 = vcmask 1042434
        %v1707 = vsel %vm1706, %v1683, %v1705
        %vm1708 = vcmask 1043459
        %v1709 = vsel %vm1708, %v1687, %v1707
        %vm1710 = vcmask 1044484
        %v1711 = vsel %vm1710, %v1691, %v1709
        %vm1712 = vcmask 1045509
        %v1713 = vsel %vm1712, %v1695, %v1711
        %vm1714 = vcmask 1046534
        %v1715 = vsel %vm1714, %v1699, %v1713
        %vm1716 = vcmask 1047559
        %v1717 = vsel %vm1716, %v1703, %v1715
        %1719 = vmatprep.subr.bf16.mxu0 0
        %1720 = vmatpush1.bf16.msra.mxu0 %v1502
        %1721 = vmatprep.subr.bf16.mxu0 0
        %1722 = vmatpush1.bf16.msra.mxu0 0
        %1723 = vmatprep.subr.bf16.mxu0 0
        %1724 = vmatpush1.bf16.msra.mxu0 0
        %1725 = vmatprep.subr.bf16.mxu0 0
        %1726 = vmatpush1.bf16.msra.mxu0 0
        %1727 = vmatprep.subr.bf16.mxu0 0
        %1728 = vmatpush1.bf16.msra.mxu0 0
        %1729 = vmatprep.subr.bf16.mxu0 0
        %1730 = vmatpush1.bf16.msra.mxu0 0
        %1731 = vmatprep.subr.bf16.mxu0 0
        %1732 = vmatpush1.bf16.msra.mxu0 0
        %1733 = vmatprep.subr.bf16.mxu0 0
        %1734 = vmatpush1.bf16.msra.mxu0 0
        %1735 = vmatprep.subr.bf16.mxu0 0
        %1736 = vmatpush1.bf16.msra.mxu0 0
        %1737 = vmatprep.subr.bf16.mxu0 0
        %1738 = vmatpush1.bf16.msra.mxu0 0
        %1739 = vmatprep.subr.bf16.mxu0 0
        %1740 = vmatpush1.bf16.msra.mxu0 0
        %1741 = vmatprep.subr.bf16.mxu0 0
        %1742 = vmatpush1.bf16.msra.mxu0 0
        %1743 = vmatprep.subr.bf16.mxu0 0
        %1744 = vmatpush1.bf16.msra.mxu0 0
        %1745 = vmatprep.subr.bf16.mxu0 0
        %1746 = vmatpush1.bf16.msra.mxu0 0
        %1747 = vmatprep.subr.bf16.mxu0 0
        %1748 = vmatpush1.bf16.msra.mxu0 0
        %1749 = vmatprep.subr.bf16.mxu0 0
        %1750 = vmatpush1.bf16.msra.mxu0 0
        %1751 = vmatprep.mubr.bf16.mxu0 0
        %1752 = vmatmul.mubr.bf16.gmra.mrb[0].mxu0 %v1508
        %v1753 = vpop.f32.mrb[0].mxu0
        %v1754 = vadd.f32 %v1717, %v1753
        %v1755 = vpop.f32.mrb[0].mxu0
        %v1756 = vpop.f32.mrb[0].mxu0
        %v1757 = vpop.f32.mrb[0].mxu0
        %1758 = vdwg.mxu0
        %v1759 = vmul.f32 %v1754, 0.25
        %v1761 = vlaneseq
        %v1762 = vshrl.u32 %v1761, 7
        %v1763 = vsub.s32 0, %v1762
        %v1764 = vrot.slane %v1107, %v1763
        %v1766 = vadd.f32 %v1759, %v1764
        %v1767 = vld [vmem:[#allocation2] sm:$0xff]
        %vm1768 = vcmask 64512
        %v1769 = vsel %vm1768, %v1766, -inf
        %1770 = vmax.xlane.f32.xlu0 %v1769
        %v1771 = vpop.xlane.xlu0 %1770
        %v1772 = vmax.f32 %v1767, %v1771
        %v1773 = vsub.f32 %v1767, %v1772
        %v1774 = vmul.f32 %v1773, 1.442695
        %v1775 = vpow.pop %v1774
        %1777 = vset.pattern.permute.xlu0 0
        %1778 = vperm.xlu0 %1777, %v1772
        %v1779 = vpop.permute.xlu0 %1778
        %v1781 = vsub.f32 %v1766, %v1779
        %v1782 = vmul.f32 %v1781, 1.442695
        %v1783 = vpow.pop %v1782
        %v1784 = vld [vmem:[#allocation3] sm:$0xff]
        %v1785 = vmul.f32 %v1775, %v1784
        %v1786 = vsel %vm1768, %v1783, 0.0
        %1787 = vadd.xlane.f32.xlu0 %v1786
        %v1788 = vpop.xlane.xlu0 %1787
        %v1789 = vadd.f32 %v1785, %v1788
        %vm1790 = vcmask 7168
        %1791 = vst.msk [vmem:[#allocation3] sm:$0xff] %vm1790, %v1789
        %v1792 = vld [vmem:[#allocation4] sm:$0xff]
        %1794 = vset.pattern.permute.xlu0 0
        %1795 = vperm.xlu0 %1794, %v1775
        %v1796 = vpop.permute.xlu0 %1795
        %v1798 = vmul.f32 %v1796, %v1792
        %v1799 = vpack.c.bf16 %v1783, %v1783
        %v1800 = vpack.c.bf16 %v1100, %v1100
        %1802 = vrot.lane.b32.xlu0 %v1800, 96
        %v1803 = vpop.permute.xlu0 %1802
        %v1805 = vsel %vm1768, %v1799, 0
        %vm1807 = vcmask 1043456
        %v1809 = vsel %vm1807, %v1803, 0
        %1811 = vmatprep.subr.bf16.mxu0 0
        %1812 = vmatpush1.bf16.msra.mxu0 %v1809
        %1813 = vmatprep.subr.bf16.mxu0 0
        %1814 = vmatpush1.bf16.msra.mxu0 0
        %1815 = vmatprep.subr.bf16.mxu0 0
        %1816 = vmatpush1.bf16.msra.mxu0 0
        %1817 = vmatprep.subr.bf16.mxu0 0
        %1818 = vmatpush1.bf16.msra.mxu0 0
        %1819 = vmatprep.subr.bf16.mxu0 0
        %1820 = vmatpush1.bf16.msra.mxu0 0
        %1821 = vmatprep.subr.bf16.mxu0 0
        %1822 = vmatpush1.bf16.msra.mxu0 0
        %1823 = vmatprep.subr.bf16.mxu0 0
        %1824 = vmatpush1.bf16.msra.mxu0 0
        %1825 = vmatprep.subr.bf16.mxu0 0
        %1826 = vmatpush1.bf16.msra.mxu0 0
        %1827 = vmatprep.subr.bf16.mxu0 0
        %1828 = vmatpush1.bf16.msra.mxu0 0
        %1829 = vmatprep.subr.bf16.mxu0 0
        %1830 = vmatpush1.bf16.msra.mxu0 0
        %1831 = vmatprep.subr.bf16.mxu0 0
        %1832 = vmatpush1.bf16.msra.mxu0 0
        %1833 = vmatprep.subr.bf16.mxu0 0
        %1834 = vmatpush1.bf16.msra.mxu0 0
        %1835 = vmatprep.subr.bf16.mxu0 0
        %1836 = vmatpush1.bf16.msra.mxu0 0
        %1837 = vmatprep.subr.bf16.mxu0 0
        %1838 = vmatpush1.bf16.msra.mxu0 0
        %1839 = vmatprep.subr.bf16.mxu0 0
        %1840 = vmatpush1.bf16.msra.mxu0 0
        %1841 = vmatprep.subr.bf16.mxu0 0
        %1842 = vmatpush1.bf16.msra.mxu0 0
        %1843 = vmatprep.mubr.bf16.mxu0 0
        %1844 = vmatmul.mubr.bf16.gmra.mrb[0].mxu0 %v1805
        %v1845 = vpop.f32.mrb[0].mxu0
        %v1846 = vadd.f32 0.0, %v1845
        %v1847 = vpop.f32.mrb[0].mxu0
        %v1848 = vpop.f32.mrb[0].mxu0
        %v1849 = vpop.f32.mrb[0].mxu0
        %1850 = vdwg.mxu0
        %v1851 = vadd.f32 %v1798, %v1846
        %1852 = vst.msk [vmem:[#allocation4] sm:$0xff] %vm1506, %v1851
        %1853 = vst.msk [vmem:[#allocation2] sm:$0xff] %vm1790, %v1772
        %1855 = vrot.lane.b32.xlu0 %v1100, 112
        %v1856 = vpop.permute.xlu0 %1855
        %1858 = vxpose.xlu0.b32.start [1/16] %v1856, 128
        %1859 = vxpose.xlu0.b32.cont [2/16] 0.0, 128
        %1860 = vxpose.xlu0.b32.cont [3/16] 0.0, 128
        %1861 = vxpose.xlu0.b32.cont [4/16] 0.0, 128
        %1862 = vxpose.xlu0.b32.cont [5/16] 0.0, 128
        %1863 = vxpose.xlu0.b32.cont [6/16] 0.0, 128
        %1864 = vxpose.xlu0.b32.cont [7/16] 0.0, 128
        %1865 = vxpose.xlu0.b32.cont [8/16] 0.0, 128
        %1866 = vxpose.xlu0.b32.cont [9/16] 0.0, 128
        %1867 = vxpose.xlu0.b32.cont [10/16] 0.0, 128
        %1868 = vxpose.xlu0.b32.cont [11/16] 0.0, 128
        %1869 = vxpose.xlu0.b32.cont [12/16] 0.0, 128
        %1870 = vxpose.xlu0.b32.cont [13/16] 0.0, 128
        %1871 = vxpose.xlu0.b32.cont [14/16] 0.0, 128
        %1872 = vxpose.xlu0.b32.cont [15/16] 0.0, 128
        %1873 = vxpose.xlu0.b32.end [16/16] 0.0, 128
        %v1874 = vpop.trf.xlu0
        %v1875 = vpop.trf.xlu0
        %v1876 = vpop.trf.xlu0
        %v1877 = vpop.trf.xlu0
        %v1878 = vpop.trf.xlu0
        %v1879 = vpop.trf.xlu0
        %v1880 = vpop.trf.xlu0
        %v1881 = vpop.trf.xlu0
        %v1882 = vpop.trf.xlu0
        %v1883 = vpop.trf.xlu0
        %v1884 = vpop.trf.xlu0
        %v1885 = vpop.trf.xlu0
        %v1886 = vpop.trf.xlu0
        %v1887 = vpop.trf.xlu0
        %v1888 = vpop.trf.xlu0
        %v1889 = vpop.trf.xlu0
        %v1890 = vpack.c.bf16 %v1875, %v1874
        %v1891 = vld [vmem:[%s4 + $0x10] sm:$0xff]
        %v1892 = vld [vmem:[%s4 + $0x18] sm:$0xff]
        %v1893 = vpack.c.bf16 %v1892, %v1891
        %1895 = vrot.lane.b32.xlu0 %v1501, 112
        %v1896 = vpop.permute.xlu0 %1895
        %v1898 = vsel %vm1506, %v1896, 0
        %1900 = vmatprep.subr.bf16.mxu0 0
        %1901 = vmatpush1.bf16.msra.mxu0 %v1893
        %1902 = vmatprep.subr.bf16.mxu0 0
        %1903 = vmatpush1.bf16.msra.mxu0 0
        %1904 = vmatprep.subr.bf16.mxu0 0
        %1905 = vmatpush1.bf16.msra.mxu0 0
        %1906 = vmatprep.subr.bf16.mxu0 0
        %1907 = vmatpush1.bf16.msra.mxu0 0
        %1908 = vmatprep.subr.bf16.mxu0 0
        %1909 = vmatpush1.bf16.msra.mxu0 0
        %1910 = vmatprep.subr.bf16.mxu0 0
        %1911 = vmatpush1.bf16.msra.mxu0 0
        %1912 = vmatprep.subr.bf16.mxu0 0
        %1913 = vmatpush1.bf16.msra.mxu0 0
        %1914 = vmatprep.subr.bf16.mxu0 0
        %1915 = vmatpush1.bf16.msra.mxu0 0
        %1916 = vmatprep.subr.bf16.mxu0 0
        %1917 = vmatpush1.bf16.msra.mxu0 0
        %1918 = vmatprep.subr.bf16.mxu0 0
        %1919 = vmatpush1.bf16.msra.mxu0 0
        %1920 = vmatprep.subr.bf16.mxu0 0
        %1921 = vmatpush1.bf16.msra.mxu0 0
        %1922 = vmatprep.subr.bf16.mxu0 0
        %1923 = vmatpush1.bf16.msra.mxu0 0
        %1924 = vmatprep.subr.bf16.mxu0 0
        %1925 = vmatpush1.bf16.msra.mxu0 0
        %1926 = vmatprep.subr.bf16.mxu0 0
        %1927 = vmatpush1.bf16.msra.mxu0 0
        %1928 = vmatprep.subr.bf16.mxu0 0
        %1929 = vmatpush1.bf16.msra.mxu0 0
        %1930 = vmatprep.subr.bf16.mxu0 0
        %1931 = vmatpush1.bf16.msra.mxu0 0
        %1932 = vmatprep.mubr.bf16.mxu0 0
        %1933 = vmatmul.mubr.bf16.gmra.mrb[0].mxu0 %v1898
        %v1934 = vpop.f32.mrb[0].mxu0
        %v1935 = vadd.f32 0.0, %v1934
        %v1936 = vpop.f32.mrb[0].mxu0
        %v1937 = vpop.f32.mrb[0].mxu0
        %v1938 = vpop.f32.mrb[0].mxu0
        %1939 = vdwg.mxu0
        %v1941 = vcombine.high %v1935, %v1935
        %v1943 = vunpack.c.l.s4 1966171168
        %v1944 = vunpack.c.0.s8 %v1943
        %v1945 = vlaneseq
        %v1946 = vshrl.u32 %v1945, 7
        %v1947 = vsub.s32 %v1944, %v1946
        %v1948 = vrot.slane %v1935, %v1947
        %v1950 = vunpack.c.l.s4 1966171168
        %v1951 = vunpack.c.0.s8 %v1950
        %v1952 = vlaneseq
        %v1953 = vshrl.u32 %v1952, 7
        %v1954 = vsub.s32 %v1951, %v1953
        %v1955 = vrot.slane %v1941, %v1954
        %v1956 = vcombine.high %v1948, %v1948
        %v1957 = vcombine.high %v1955, %v1955
        %v1959 = vunpack.c.l.s4 1966171168
        %v1960 = vunpack.c.0.s8 %v1959
        %v1961 = vlaneseq
        %v1962 = vshrl.u32 %v1961, 7
        %v1963 = vsub.s32 %v1960, %v1962
        %v1964 = vrot.slane %v1948, %v1963
        %v1966 = vunpack.c.l.s4 1966171168
        %v1967 = vunpack.c.0.s8 %v1966
        %v1968 = vlaneseq
        %v1969 = vshrl.u32 %v1968, 7
        %v1970 = vsub.s32 %v1967, %v1969
        %v1971 = vrot.slane %v1955, %v1970
        %v1973 = vunpack.c.l.s4 1966171168
        %v1974 = vunpack.c.0.s8 %v1973
        %v1975 = vlaneseq
        %v1976 = vshrl.u32 %v1975, 7
        %v1977 = vsub.s32 %v1974, %v1976
        %v1978 = vrot.slane %v1956, %v1977
        %v1980 = vunpack.c.l.s4 1966171168
        %v1981 = vunpack.c.0.s8 %v1980
        %v1982 = vlaneseq
        %v1983 = vshrl.u32 %v1982, 7
        %v1984 = vsub.s32 %v1981, %v1983
        %v1985 = vrot.slane %v1957, %v1984
        %v1986 = vcombine.high %v1964, %v1964
        %v1987 = vcombine.high %v1971, %v1971
        %v1988 = vcombine.high %v1978, %v1978
        %v1989 = vcombine.high %v1985, %v1985
        %v1990 = vlaneseq
        %v1991 = vshrl.u32 %v1990, 7
        %v1992 = vsub.s32 0, %v1991
        %v1993 = vrot.slane %v1964, %v1992
        %v1994 = vlaneseq
        %v1995 = vshrl.u32 %v1994, 7
        %v1996 = vsub.s32 0, %v1995
        %v1997 = vrot.slane %v1978, %v1996
        %v1998 = vlaneseq
        %v1999 = vshrl.u32 %v1998, 7
        %v2000 = vsub.s32 0, %v1999
        %v2001 = vrot.slane %v1986, %v2000
        %v2002 = vlaneseq
        %v2003 = vshrl.u32 %v2002, 7
        %v2004 = vsub.s32 0, %v2003
        %v2005 = vrot.slane %v1988, %v2004
        %v2006 = vlaneseq
        %v2007 = vshrl.u32 %v2006, 7
        %v2008 = vsub.s32 0, %v2007
        %v2009 = vrot.slane %v1971, %v2008
        %v2010 = vlaneseq
        %v2011 = vshrl.u32 %v2010, 7
        %v2012 = vsub.s32 0, %v2011
        %v2013 = vrot.slane %v1985, %v2012
        %v2014 = vlaneseq
        %v2015 = vshrl.u32 %v2014, 7
        %v2016 = vsub.s32 0, %v2015
        %v2017 = vrot.slane %v1987, %v2016
        %v2018 = vlaneseq
        %v2019 = vshrl.u32 %v2018, 7
        %v2020 = vsub.s32 0, %v2019
        %v2021 = vrot.slane %v1989, %v2020
        %v2030 = vmul.f32 %v1461, %v1993
        %v2031 = vmul.f32 %v1462, %v1997
        %v2032 = vmul.f32 %v1463, %v2001
        %v2033 = vmul.f32 %v1464, %v2005
        %v2034 = vmul.f32 %v1465, %v2009
        %v2035 = vmul.f32 %v1466, %v2013
        %v2036 = vmul.f32 %v1467, %v2017
        %v2037 = vmul.f32 %v1468, %v2021
        %2038 = vadd.xlane.f32.xlu0 %v2030
        %v2039 = vpop.xlane.xlu0 %2038
        %2040 = vadd.xlane.f32.xlu0 %v2031
        %v2041 = vpop.xlane.xlu0 %2040
        %2042 = vadd.xlane.f32.xlu0 %v2032
        %v2043 = vpop.xlane.xlu0 %2042
        %2044 = vadd.xlane.f32.xlu0 %v2033
        %v2045 = vpop.xlane.xlu0 %2044
        %2046 = vadd.xlane.f32.xlu0 %v2034
        %v2047 = vpop.xlane.xlu0 %2046
        %2048 = vadd.xlane.f32.xlu0 %v2035
        %v2049 = vpop.xlane.xlu0 %2048
        %2050 = vadd.xlane.f32.xlu0 %v2036
        %v2051 = vpop.xlane.xlu0 %2050
        %2052 = vadd.xlane.f32.xlu0 %v2037
        %v2053 = vpop.xlane.xlu0 %2052
        %v2062 = vlaneseq
        %v2063 = vshrl.u32 %v2062, 7
        %v2064 = vsub.s32 %v1109, %v2063
        %v2065 = vrot.slane %v2039, %v2064
        %v2066 = vlaneseq
        %v2067 = vshrl.u32 %v2066, 7
        %v2068 = vsub.s32 %v1109, %v2067
        %v2069 = vrot.slane %v2041, %v2068
        %v2070 = vlaneseq
        %v2071 = vshrl.u32 %v2070, 7
        %v2072 = vsub.s32 %v1109, %v2071
        %v2073 = vrot.slane %v2043, %v2072
        %v2074 = vlaneseq
        %v2075 = vshrl.u32 %v2074, 7
        %v2076 = vsub.s32 %v1109, %v2075
        %v2077 = vrot.slane %v2045, %v2076
        %v2078 = vlaneseq
        %v2079 = vshrl.u32 %v2078, 7
        %v2080 = vsub.s32 %v1109, %v2079
        %v2081 = vrot.slane %v2047, %v2080
        %v2082 = vlaneseq
        %v2083 = vshrl.u32 %v2082, 7
        %v2084 = vsub.s32 %v1109, %v2083
        %v2085 = vrot.slane %v2049, %v2084
        %v2086 = vlaneseq
        %v2087 = vshrl.u32 %v2086, 7
        %v2088 = vsub.s32 %v1109, %v2087
        %v2089 = vrot.slane %v2051, %v2088
        %v2090 = vlaneseq
        %v2091 = vshrl.u32 %v2090, 7
        %v2092 = vsub.s32 %v1109, %v2091
        %v2093 = vrot.slane %v2053, %v2092
        %v2094 = vsel %vm1704, %v2069, %v2065
        %v2095 = vsel %vm1706, %v2073, %v2094
        %v2096 = vsel %vm1708, %v2077, %v2095
        %v2097 = vsel %vm1710, %v2081, %v2096
        %v2098 = vsel %vm1712, %v2085, %v2097
        %v2099 = vsel %vm1714, %v2089, %v2098
        %v2100 = vsel %vm1716, %v2093, %v2099
        %2102 = vmatprep.subr.bf16.mxu0 0
        %2103 = vmatpush1.bf16.msra.mxu0 %v1890
        %2104 = vmatprep.subr.bf16.mxu0 0
        %2105 = vmatpush1.bf16.msra.mxu0 0
        %2106 = vmatprep.subr.bf16.mxu0 0
        %2107 = vmatpush1.bf16.msra.mxu0 0
        %2108 = vmatprep.subr.bf16.mxu0 0
        %2109 = vmatpush1.bf16.msra.mxu0 0
        %2110 = vmatprep.subr.bf16.mxu0 0
        %2111 = vmatpush1.bf16.msra.mxu0 0
        %2112 = vmatprep.subr.bf16.mxu0 0
        %2113 = vmatpush1.bf16.msra.mxu0 0
        %2114 = vmatprep.subr.bf16.mxu0 0
        %2115 = vmatpush1.bf16.msra.mxu0 0
        %2116 = vmatprep.subr.bf16.mxu0 0
        %2117 = vmatpush1.bf16.msra.mxu0 0
        %2118 = vmatprep.subr.bf16.mxu0 0
        %2119 = vmatpush1.bf16.msra.mxu0 0
        %2120 = vmatprep.subr.bf16.mxu0 0
        %2121 = vmatpush1.bf16.msra.mxu0 0
        %2122 = vmatprep.subr.bf16.mxu0 0
        %2123 = vmatpush1.bf16.msra.mxu0 0
        %2124 = vmatprep.subr.bf16.mxu0 0
        %2125 = vmatpush1.bf16.msra.mxu0 0
        %2126 = vmatprep.subr.bf16.mxu0 0
        %2127 = vmatpush1.bf16.msra.mxu0 0
        %2128 = vmatprep.subr.bf16.mxu0 0
        %2129 = vmatpush1.bf16.msra.mxu0 0
        %2130 = vmatprep.subr.bf16.mxu0 0
        %2131 = vmatpush1.bf16.msra.mxu0 0
        %2132 = vmatprep.subr.bf16.mxu0 0
        %2133 = vmatpush1.bf16.msra.mxu0 0
        %2134 = vmatprep.mubr.bf16.mxu0 0
        %2135 = vmatmul.mubr.bf16.gmra.mrb[0].mxu0 %v1898
        %v2136 = vpop.f32.mrb[0].mxu0
        %v2137 = vadd.f32 %v2100, %v2136
        %v2138 = vpop.f32.mrb[0].mxu0
        %v2139 = vpop.f32.mrb[0].mxu0
        %v2140 = vpop.f32.mrb[0].mxu0
        %2141 = vdwg.mxu0
        %v2142 = vmul.f32 %v2137, 0.25
        %v2143 = vadd.f32 %v2142, %v1764
        %v2144 = vld [vmem:[#allocation2] sm:$0xff]
        %v2145 = vsel %vm1768, %v2143, -inf
        %2146 = vmax.xlane.f32.xlu0 %v2145
        %v2147 = vpop.xlane.xlu0 %2146
        %v2148 = vmax.f32 %v2144, %v2147
        %v2149 = vsub.f32 %v2144, %v2148
        %v2150 = vmul.f32 %v2149, 1.442695
        %v2151 = vpow.pop %v2150
        %2153 = vset.pattern.permute.xlu0 1
        %2154 = vperm.xlu0 %2153, %v2148
        %v2155 = vpop.permute.xlu0 %2154
        %v2157 = vsub.f32 %v2143, %v2155
        %v2158 = vmul.f32 %v2157, 1.442695
        %v2159 = vpow.pop %v2158
        %v2160 = vld [vmem:[#allocation3] sm:$0xff]
        %v2161 = vmul.f32 %v2151, %v2160
        %v2162 = vsel %vm1768, %v2159, 0.0
        %2163 = vadd.xlane.f32.xlu0 %v2162
        %v2164 = vpop.xlane.xlu0 %2163
        %v2165 = vadd.f32 %v2161, %v2164
        %vm2166 = vcmask 15368
        %2167 = vst.msk [vmem:[#allocation3] sm:$0xff] %vm2166, %v2165
        %v2168 = vld [vmem:[#allocation4] sm:$0xff]
        %2170 = vset.pattern.permute.xlu0 1
        %2171 = vperm.xlu0 %2170, %v2151
        %v2172 = vpop.permute.xlu0 %2171
        %v2174 = vmul.f32 %v2172, %v2168
        %v2175 = vpack.c.bf16 %v2159, %v2159
        %2176 = vrot.lane.b32.xlu0 %v1800, 80
        %v2177 = vpop.permute.xlu0 %2176
        %v2179 = vsel %vm1768, %v2175, 0
        %v2182 = vsel %vm1807, %v2177, 0
        %2184 = vmatprep.subr.bf16.mxu0 0
        %2185 = vmatpush1.bf16.msra.mxu0 %v2182
        %2186 = vmatprep.subr.bf16.mxu0 0
        %2187 = vmatpush1.bf16.msra.mxu0 0
        %2188 = vmatprep.subr.bf16.mxu0 0
        %2189 = vmatpush1.bf16.msra.mxu0 0
        %2190 = vmatprep.subr.bf16.mxu0 0
        %2191 = vmatpush1.bf16.msra.mxu0 0
        %2192 = vmatprep.subr.bf16.mxu0 0
        %2193 = vmatpush1.bf16.msra.mxu0 0
        %2194 = vmatprep.subr.bf16.mxu0 0
        %2195 = vmatpush1.bf16.msra.mxu0 0
        %2196 = vmatprep.subr.bf16.mxu0 0
        %2197 = vmatpush1.bf16.msra.mxu0 0
        %2198 = vmatprep.subr.bf16.mxu0 0
        %2199 = vmatpush1.bf16.msra.mxu0 0
        %2200 = vmatprep.subr.bf16.mxu0 0
        %2201 = vmatpush1.bf16.msra.mxu0 0
        %2202 = vmatprep.subr.bf16.mxu0 0
        %2203 = vmatpush1.bf16.msra.mxu0 0
        %2204 = vmatprep.subr.bf16.mxu0 0
        %2205 = vmatpush1.bf16.msra.mxu0 0
        %2206 = vmatprep.subr.bf16.mxu0 0
        %2207 = vmatpush1.bf16.msra.mxu0 0
        %2208 = vmatprep.subr.bf16.mxu0 0
        %2209 = vmatpush1.bf16.msra.mxu0 0
        %2210 = vmatprep.subr.bf16.mxu0 0
        %2211 = vmatpush1.bf16.msra.mxu0 0
        %2212 = vmatprep.subr.bf16.mxu0 0
        %2213 = vmatpush1.bf16.msra.mxu0 0
        %2214 = vmatprep.subr.bf16.mxu0 0
        %2215 = vmatpush1.bf16.msra.mxu0 0
        %2216 = vmatprep.mubr.bf16.mxu0 0
        %2217 = vmatmul.mubr.bf16.gmra.mrb[0].mxu0 %v2179
        %v2218 = vpop.f32.mrb[0].mxu0
        %v2219 = vadd.f32 0.0, %v2218
        %v2220 = vpop.f32.mrb[0].mxu0
        %v2221 = vpop.f32.mrb[0].mxu0
        %v2222 = vpop.f32.mrb[0].mxu0
        %2223 = vdwg.mxu0
        %2225 = vrot.lane.b32.xlu0 %v2219, 16
        %v2226 = vpop.permute.xlu0 %2225
        %v2228 = vadd.f32 %v2174, %v2226
        %vm2229 = vcmask 261248
        %2230 = vst.msk [vmem:[#allocation4] sm:$0xff] %vm2229, %v2228
        %2231 = vst.msk [vmem:[#allocation2] sm:$0xff] %vm2166, %v2148
        // Predicated region
        $region165: #{tpu_custom_call.1} parent=103 // pred_check
          %p2232 = pneg %p934
        $region166: #{tpu_custom_call.1} parent=103 // pred_check_branch
          %2234 = sbr.rel (%p2232) target = $region168
        $region167: #{tpu_custom_call.1} parent=103 // pred_region
          %v2235 = vld [vmem:[#allocation3] sm:$0xff]
          %v2236 = vrcp.pop %v2235
          %v2237 = vld [vmem:[#allocation4] sm:$0xff]
          %2239 = vset.pattern.permute.xlu0 0
          %2240 = vperm.xlu0 %2239, %v2236
          %v2241 = vpop.permute.xlu0 %2240
          %v2243 = vmul.f32 %v2237, %v2241
          %2244 = vset.pattern.permute.xlu0 1
          %2245 = vperm.xlu0 %2244, %v2236
          %v2246 = vpop.permute.xlu0 %2245
          %v2248 = vmul.f32 %v2237, %v2246
          %v2249 = vsel %vm1506, %v2243, %v2248
          %v2250 = vld [vmem:[#allocation19] sm:$0xff]
          %v2251 = vld [vmem:[#allocation19 + $0x8] sm:$0xff]
          %v2252 = vld [vmem:[#allocation19 + $0x10] sm:$0xff]
          %v2253 = vld [vmem:[#allocation19 + $0x18] sm:$0xff]
          %v2254 = vpack.c.bf16 %v2249, %v2249
          %v2255 = vpack.c.bf16 %v2251, %v2250
          %v2256 = vpack.c.bf16 %v2253, %v2252
          %v2257 = vld [vmem:[#allocation20] sm:$0x1]
          %v2259 = vlaneseq
          %v2260 = vshrl.u32 %v2259, 7
          %v2261 = vsub.s32 0, %v2260
          %v2262 = vrot.slane %v2257, %v2261
          %v2265 = vsel %vm946, %v2254, 0
          %2267 = vmatprep.subr.bf16.mxu0 0
          %2268 = vmatpush1.bf16.msra.mxu0 %v2255
          %2269 = vmatprep.subr.bf16.mxu0 0
          %2270 = vmatpush1.bf16.msra.mxu0 %v2256
          %2271 = vmatprep.subr.bf16.mxu0 0
          %2272 = vmatpush1.bf16.msra.mxu0 0
          %2273 = vmatprep.subr.bf16.mxu0 0
          %2274 = vmatpush1.bf16.msra.mxu0 0
          %2275 = vmatprep.subr.bf16.mxu0 0
          %2276 = vmatpush1.bf16.msra.mxu0 0
          %2277 = vmatprep.subr.bf16.mxu0 0
          %2278 = vmatpush1.bf16.msra.mxu0 0
          %2279 = vmatprep.subr.bf16.mxu0 0
          %2280 = vmatpush1.bf16.msra.mxu0 0
          %2281 = vmatprep.subr.bf16.mxu0 0
          %2282 = vmatpush1.bf16.msra.mxu0 0
          %2283 = vmatprep.subr.bf16.mxu0 0
          %2284 = vmatpush1.bf16.msra.mxu0 0
          %2285 = vmatprep.subr.bf16.mxu0 0
          %2286 = vmatpush1.bf16.msra.mxu0 0
          %2287 = vmatprep.subr.bf16.mxu0 0
          %2288 = vmatpush1.bf16.msra.mxu0 0
          %2289 = vmatprep.subr.bf16.mxu0 0
          %2290 = vmatpush1.bf16.msra.mxu0 0
          %2291 = vmatprep.subr.bf16.mxu0 0
          %2292 = vmatpush1.bf16.msra.mxu0 0
          %2293 = vmatprep.subr.bf16.mxu0 0
          %2294 = vmatpush1.bf16.msra.mxu0 0
          %2295 = vmatprep.subr.bf16.mxu0 0
          %2296 = vmatpush1.bf16.msra.mxu0 0
          %2297 = vmatprep.subr.bf16.mxu0 0
          %2298 = vmatpush1.bf16.msra.mxu0 0
          %2299 = vmatprep.mubr.bf16.mxu0 0
          %2300 = vmatmul.mubr.bf16.gmra.mrb[0].mxu0 %v2265
          %v2301 = vpop.f32.mrb[0].mxu0
          %v2302 = vadd.f32 %v2262, %v2301
          %v2303 = vpop.f32.mrb[0].mxu0
          %v2304 = vpop.f32.mrb[0].mxu0
          %v2305 = vpop.f32.mrb[0].mxu0
          %2306 = vdwg.mxu0
          %v2307 = vadd.f32 %v2302, %v974
          %v2308 = vld [vmem:[#allocation22] sm:$0x1]
          %v2309 = vld [vmem:[#allocation23] sm:$0x1]
          %v2310 = vsel %vm946, %v2307, 0.0
          %2311 = vadd.xlane.f32.xlu0 %v2310
          %v2312 = vpop.xlane.xlu0 %2311
          %v2313 = vmul.f32 %v2312, %v950
          %v2314 = vsub.f32 %v2307, %v2313
          %v2315 = vmul.f32 %v2314, %v2314
          %v2316 = vsel %vm946, %v2315, 0.0
          %2317 = vadd.xlane.f32.xlu0 %v2316
          %v2318 = vpop.xlane.xlu0 %2317
          %v2319 = vmul.f32 %v2318, %v950
          %v2320 = vadd.f32 %v2319, 1e-12
          %v2321 = vrsqrt.pop %v2320
          %v2322 = vmul.f32 %v2314, %v2321
          %v2324 = vlaneseq
          %v2325 = vshrl.u32 %v2324, 7
          %v2326 = vsub.s32 0, %v2325
          %v2327 = vrot.slane %v2308, %v2326
          %v2329 = vmul.f32 %v2322, %v2327
          %v2331 = vlaneseq
          %v2332 = vshrl.u32 %v2331, 7
          %v2333 = vsub.s32 0, %v2332
          %v2334 = vrot.slane %v2309, %v2333
          %v2336 = vadd.f32 %v2329, %v2334
          %v2337 = vld [vmem:[#allocation25] sm:$0xff]
          %v2338 = vld [vmem:[#allocation25 + $0x8] sm:$0xff]
          %v2339 = vld [vmem:[#allocation25 + $0x10] sm:$0xff]
          %v2340 = vld [vmem:[#allocation25 + $0x18] sm:$0xff]
          %v2341 = vpack.c.bf16 %v2336, %v2336
          %v2342 = vpack.c.bf16 %v2338, %v2337
          %v2343 = vpack.c.bf16 %v2340, %v2339
          %v2344 = vld [vmem:[#allocation26] sm:$0x1]
          %v2346 = vlaneseq
          %v2347 = vshrl.u32 %v2346, 7
          %v2348 = vsub.s32 0, %v2347
          %v2349 = vrot.slane %v2344, %v2348
          %v2352 = vsel %vm946, %v2341, 0
          %2354 = vmatprep.subr.bf16.mxu0 0
          %2355 = vmatpush1.bf16.msra.mxu0 %v2342
          %2356 = vmatprep.subr.bf16.mxu0 0
          %2357 = vmatpush1.bf16.msra.mxu0 %v2343
          %2358 = vmatprep.subr.bf16.mxu0 0
          %2359 = vmatpush1.bf16.msra.mxu0 0
          %2360 = vmatprep.subr.bf16.mxu0 0
          %2361 = vmatpush1.bf16.msra.mxu0 0
          %2362 = vmatprep.subr.bf16.mxu0 0
          %2363 = vmatpush1.bf16.msra.mxu0 0
          %2364 = vmatprep.subr.bf16.mxu0 0
          %2365 = vmatpush1.bf16.msra.mxu0 0
          %2366 = vmatprep.subr.bf16.mxu0 0
          %2367 = vmatpush1.bf16.msra.mxu0 0
          %2368 = vmatprep.subr.bf16.mxu0 0
          %2369 = vmatpush1.bf16.msra.mxu0 0
          %2370 = vmatprep.subr.bf16.mxu0 0
          %2371 = vmatpush1.bf16.msra.mxu0 0
          %2372 = vmatprep.subr.bf16.mxu0 0
          %2373 = vmatpush1.bf16.msra.mxu0 0
          %2374 = vmatprep.subr.bf16.mxu0 0
          %2375 = vmatpush1.bf16.msra.mxu0 0
          %2376 = vmatprep.subr.bf16.mxu0 0
          %2377 = vmatpush1.bf16.msra.mxu0 0
          %2378 = vmatprep.subr.bf16.mxu0 0
          %2379 = vmatpush1.bf16.msra.mxu0 0
          %2380 = vmatprep.subr.bf16.mxu0 0
          %2381 = vmatpush1.bf16.msra.mxu0 0
          %2382 = vmatprep.subr.bf16.mxu0 0
          %2383 = vmatpush1.bf16.msra.mxu0 0
          %2384 = vmatprep.subr.bf16.mxu0 0
          %2385 = vmatpush1.bf16.msra.mxu0 0
          %2386 = vmatprep.mubr.bf16.mxu0 0
          %2387 = vmatmul.mubr.bf16.gmra.mrb[0].mxu0 %v2352
          %v2388 = vpop.f32.mrb[0].mxu0
          %v2389 = vadd.f32 %v2349, %v2388
          %v2390 = vpop.f32.mrb[0].mxu0
          %v2391 = vpop.f32.mrb[0].mxu0
          %v2392 = vpop.f32.mrb[0].mxu0
          %2393 = vdwg.mxu0
          %v2394 = vmul.f32 %v2389, 0.5
          %v2395 = vmul.f32 %v2389, 0.70710677
          %vm2396 = vcmp.ge.f32.partialorder %v2395, 0.0
          %v2397 = vsel %vm2396, 1.0, -1.0
          %v2398 = vand.u32 2147483647, %v2395
          %v2399 = vmul.f32 %v2398, 0.3275911
          %v2400 = vadd.f32 %v2399, 1.0
          %v2401 = vrcp.pop %v2400
          %v2402 = vmul.f32 %v2401, 1.0614054
          %v2403 = vadd.f32 %v2402, -1.4531521
          %v2404 = vmul.f32 %v2403, %v2401
          %v2405 = vadd.f32 %v2404, 1.4214138
          %v2406 = vmul.f32 %v2405, %v2401
          %v2407 = vadd.f32 %v2406, -0.28449672
          %v2408 = vmul.f32 %v2407, %v2401
          %v2409 = vadd.f32 %v2408, 0.2548296
          %v2410 = vmul.f32 %v2409, %v2401
          %v2411 = vsub.f32 0.0, %v2398
          %v2412 = vmul.f32 %v2411, %v2398
          %v2413 = vmul.f32 %v2412, 1.442695
          %v2414 = vpow.pop %v2413
          %v2415 = vmul.f32 %v2410, %v2414
          %v2416 = vsub.f32 1.0, %v2415
          %v2417 = vmul.f32 %v2397, %v2416
          %v2418 = vadd.f32 %v2417, 1.0
          %v2419 = vmul.f32 %v2394, %v2418
          %v2420 = vld [vmem:[%s17] sm:$0xff]
          %v2421 = vld [vmem:[%s17 + $0x8] sm:$0xff]
          %v2422 = vld [vmem:[%s17 + $0x10] sm:$0xff]
          %v2423 = vld [vmem:[%s17 + $0x18] sm:$0xff]
          %v2424 = vld [vmem:[%s17 + $0x20] sm:$0xff]
          %v2425 = vld [vmem:[%s17 + $0x28] sm:$0xff]
          %v2426 = vld [vmem:[%s17 + $0x30] sm:$0xff]
          %v2427 = vld [vmem:[%s17 + $0x38] sm:$0xff]
          %v2428 = vpack.c.bf16 %v2419, %v2419
          %v2429 = vpack.c.bf16 %v2421, %v2420
          %v2430 = vpack.c.bf16 %v2423, %v2422
          %v2431 = vpack.c.bf16 %v2425, %v2424
          %v2432 = vpack.c.bf16 %v2427, %v2426
          %v2433 = vld [vmem:[%s18] sm:$0x1]
          %v2435 = vlaneseq
          %v2436 = vshrl.u32 %v2435, 7
          %v2437 = vsub.s32 0, %v2436
          %v2438 = vrot.slane %v2433, %v2437
          %vm2440 = vcmask 523264
          %v2442 = vsel %vm2440, %v2428, 0
          %2444 = vmatprep.subr.bf16.mxu0 0
          %2445 = vmatpush1.bf16.msra.mxu0 %v2429
          %2446 = vmatprep.subr.bf16.mxu0 0
          %2447 = vmatpush1.bf16.msra.mxu0 %v2430
          %2448 = vmatprep.subr.bf16.mxu0 0
          %2449 = vmatpush1.bf16.msra.mxu0 %v2431
          %2450 = vmatprep.subr.bf16.mxu0 0
          %2451 = vmatpush1.bf16.msra.mxu0 %v2432
          %2452 = vmatprep.subr.bf16.mxu0 0
          %2453 = vmatpush1.bf16.msra.mxu0 0
          %2454 = vmatprep.subr.bf16.mxu0 0
          %2455 = vmatpush1.bf16.msra.mxu0 0
          %2456 = vmatprep.subr.bf16.mxu0 0
          %2457 = vmatpush1.bf16.msra.mxu0 0
          %2458 = vmatprep.subr.bf16.mxu0 0
          %2459 = vmatpush1.bf16.msra.mxu0 0
          %2460 = vmatprep.subr.bf16.mxu0 0
          %2461 = vmatpush1.bf16.msra.mxu0 0
          %2462 = vmatprep.subr.bf16.mxu0 0
          %2463 = vmatpush1.bf16.msra.mxu0 0
          %2464 = vmatprep.subr.bf16.mxu0 0
          %2465 = vmatpush1.bf16.msra.mxu0 0
          %2466 = vmatprep.subr.bf16.mxu0 0
          %2467 = vmatpush1.bf16.msra.mxu0 0
          %2468 = vmatprep.subr.bf16.mxu0 0
          %2469 = vmatpush1.bf16.msra.mxu0 0
          %2470 = vmatprep.subr.bf16.mxu0 0
          %2471 = vmatpush1.bf16.msra.mxu0 0
          %2472 = vmatprep.subr.bf16.mxu0 0
          %2473 = vmatpush1.bf16.msra.mxu0 0
          %2474 = vmatprep.subr.bf16.mxu0 0
          %2475 = vmatpush1.bf16.msra.mxu0 0
          %2476 = vmatprep.mubr.bf16.mxu0 0
          %2477 = vmatmul.mubr.bf16.gmra.mrb[0].mxu0 %v2442
          %v2478 = vpop.f32.mrb[0].mxu0
          %v2479 = vadd.f32 %v2438, %v2478
          %v2480 = vpop.f32.mrb[0].mxu0
          %v2481 = vpop.f32.mrb[0].mxu0
          %v2482 = vpop.f32.mrb[0].mxu0
          %2483 = vdwg.mxu0
          %v2484 = vadd.f32 %v2479, %v2336
          %v2485 = vld [vmem:[%s19] sm:$0x1]
          %v2486 = vld [vmem:[%s20] sm:$0x1]
          %v2487 = vsel %vm946, %v2484, 0.0
          %2488 = vadd.xlane.f32.xlu0 %v2487
          %v2489 = vpop.xlane.xlu0 %2488
          %v2490 = vmul.f32 %v2489, %v950
          %v2491 = vsub.f32 %v2484, %v2490
          %v2492 = vmul.f32 %v2491, %v2491
          %v2493 = vsel %vm946, %v2492, 0.0
          %2494 = vadd.xlane.f32.xlu0 %v2493
          %v2495 = vpop.xlane.xlu0 %2494
          %v2496 = vmul.f32 %v2495, %v950
          %v2497 = vadd.f32 %v2496, 1e-12
          %v2498 = vrsqrt.pop %v2497
          %v2499 = vmul.f32 %v2491, %v2498
          %v2501 = vlaneseq
          %v2502 = vshrl.u32 %v2501, 7
          %v2503 = vsub.s32 0, %v2502
          %v2504 = vrot.slane %v2485, %v2503
          %v2506 = vmul.f32 %v2499, %v2504
          %v2508 = vlaneseq
          %v2509 = vshrl.u32 %v2508, 7
          %v2510 = vsub.s32 0, %v2509
          %v2511 = vrot.slane %v2486, %v2510
          %v2513 = vadd.f32 %v2506, %v2511
          %2514 = vst.msk [vmem:[%s924] sm:$0xff] %vm946, %v2513
        $region168: #{tpu_custom_call.1} parent=103 // pred_fallthru
          _
        %s2515 = sand.u32 %s534, 1
        %s2516 = scalar_lea.sflag [#allocation7], %s2515
        %s2517 = sand.u32 %s534, 1
        %s2518 = smul.addr %s2517, 8
        %s2519 = scalar_lea.vmem [#allocation28], %s2518
        // Predicated region
        $region169: #{tpu_custom_call.1} parent=103 // pred_check
          %p2520 = pneg %p544
        $region170: #{tpu_custom_call.1} parent=103 // pred_check_branch
          %2522 = sbr.rel (%p2520) target = $region172
        $region171: #{tpu_custom_call.1} parent=103 // pred_region
          %s2524 = ssub.s32 128, 128
          %2525 = vsyncadd %s2516, %s2524
          %s2526 = smul.addr %s51, 128
          %s2527 = scalar_lea.hbm %s21, %s2526
          %s2529 = sshll.u32 %s2519, 4
          %s2530 = int_to_ptr.vmem [resolvable:$true] %s2529
          %2532 = dma.vmem_to_hbm [thread:$0]  %s2530, 128, %s2527, %s2516
        $region172: #{tpu_custom_call.1} parent=103 // pred_fallthru
          _
      $region104: #{tpu_custom_call.1} parent=5 // pred_fallthru
        _
      %p2533 = scmp.le.s32.totalorder 2, %s42
      // Predicated region
      $region173: #{tpu_custom_call.1} parent=5 // pred_check
        %p2534 = pneg %p2533
      $region174: #{tpu_custom_call.1} parent=5 // pred_check_branch
        %2536 = sbr.rel (%p2534) target = $region176
      $region175: #{tpu_custom_call.1} parent=5 // pred_region
        %s2537 = ssub.s32 %s42, 2
        // Predicated region
        $region177: #{tpu_custom_call.1} parent=175 // pred_check
          %p2538 = pneg %p550
        $region178: #{tpu_custom_call.1} parent=175 // pred_check_branch
          %2540 = sbr.rel (%p2538) target = $region180
        $region179: #{tpu_custom_call.1} parent=175 // pred_region
          %s2541 = sand.u32 %s535, 1
          %s2542 = scalar_lea.sflag [#allocation7], %s2541
          %s2543 = sand.u32 %s535, 1
          %s2544 = smul.addr %s2543, 8
          %s2545 = scalar_lea.vmem [#allocation28], %s2544
          %2546 = dma.done %s2542, 128
        $region180: #{tpu_custom_call.1} parent=175 // pred_fallthru
          _
      $region176: #{tpu_custom_call.1} parent=5 // pred_fallthru
        _
    $region6: #{tpu_custom_call.1} parent=1 // loop_footer
      %s46 = sadd.s32 1, %s42
    $region7: #{tpu_custom_call.1} parent=1 // loop_footer_branch
      %41 = sbr.rel target = $region3
    $region8: #{tpu_custom_call.1} parent=1 // loop_exit
      _
    %2547 = vsyncpa [#allocation6], 1
    %s2548 = scalar_lea.sflag [#allocation6], 1
    %2549 = vsyncpa %s2548, 1
    %2550 = vsyncpa [#allocation9], 1
    %s2551 = scalar_lea.sflag [#allocation9], 1
    %2552 = vsyncpa %s2551, 1
    %2553 = vsyncpa [#allocation12], 1
    %2554 = vsyncpa [#allocation15], 1
    %2555 = vsyncpa [#allocation18], 1
    %2556 = vsyncpa [#allocation21], 1
    %2557 = vsyncpa [#allocation24], 1
    %2558 = vsyncpa [#allocation27], 1
    %2559 = vsyncpa [#allocation7], 1
    %s2560 = scalar_lea.sflag [#allocation7], 1
    %2561 = vsyncpa %s2560, 1

</llo_original>
